<compile_context>
chip_gen: v7x
topology: tpu7x:2x2x1
jax: 0.10.0
libtpu: 0.0.40
codegen_flags: <defaults>
</compile_context>

<pallas_src>
import math
import jax
import jax.numpy as jnp
import numpy as np
from jax.experimental import pallas as pl
from jax.experimental.pallas import tpu as pltpu

# ----------------------- configuration (small, consistent with module) ----------------
B = 2
H = W = 16                 # spatial resolution (must be >= window size)
DIM = 32                   # channels
NUM_HEADS = 2
HEAD_DIM = DIM // NUM_HEADS
KERNEL_SIZE = 7            # NAT window size
DEPTH = 2                  # number of NATBlocks in the BasicLayer
MLP_RATIO = 4.0
HIDDEN = int(DIM * MLP_RATIO)
N = H * W
SCALE = HEAD_DIM ** -0.5   # qk_scale default
LN_EPS = 1e-5
NEG_INF = -1e30

PARAM_ORDER = ["ln1_w", "ln1_b", "wqkv", "bqkv", "bias", "wproj", "bproj",
               "ln2_w", "ln2_b", "w1", "b1", "w2", "b2"]


# ----------------------------------- shared math --------------------------------------
def _layer_norm(x, w, b):
    mu = jnp.mean(x, axis=-1, keepdims=True)
    var = jnp.mean(jnp.square(x - mu), axis=-1, keepdims=True)
    return (x - mu) * jax.lax.rsqrt(var + LN_EPS) * w + b


def _gelu_exact(x):
    # PyTorch nn.GELU() default (exact erf formulation) -- used by the reference
    return 0.5 * x * (1.0 + jax.lax.erf(x * (1.0 / math.sqrt(2.0))))


def _gelu_tanh(x):
    # tanh approximation (EUP tanh instead of a long f32 erf polynomial on the VPU)
    c = math.sqrt(2.0 / math.pi)
    return 0.5 * x * (1.0 + jnp.tanh(c * (x + 0.044715 * x * x * x)))


# ----------------------------------- Pallas kernel ------------------------------------
def make_basic_layer_kernel(bb, depth_axis):
    """bb = number of batch elements folded into one block; depth_axis = grid axis of d."""

    def kernel(x_ref, ln1w_ref, ln1b_ref, wqkv_ref, bqkv_ref, bias_ref,
               wproj_ref, bproj_ref, ln2w_ref, ln2b_ref,
               w1_ref, b1_ref, w2_ref, b2_ref, out_ref):
        bf16 = jnp.bfloat16
        d = pl.program_id(depth_axis)

        # residual stream lives in the resident output block across the depth axis
        @pl.when(d == 0)
        def _():
            out_ref[...] = x_ref[...]

        x = out_ref[...].reshape(bb * N, DIM)                       # (bb*N, C) f32

        # ---- attention branch: x + Proj(NA(LN1(x))) ----
        xn = _layer_norm(x, ln1w_ref[0], ln1b_ref[0]).astype(bf16)
        # one fused QKV matmul per block; qk SCALE already folded into the Q columns
        qkv = jnp.dot(xn, wqkv_ref[0],
                      preferred_element_type=jnp.float32) + bqkv_ref[0]   # (bb*N, 3C)

        parts = []
        for b in range(bb):                                         # static tiny loops
            r0 = b * N
            part = x[r0:r0 + N] + bproj_ref[0]                      # residual + proj bias
            for h in range(NUM_HEADS):
                c = h * HEAD_DIM
                q = qkv[r0:r0 + N, c:c + HEAD_DIM].astype(bf16)
                k = qkv[r0:r0 + N, DIM + c:DIM + c + HEAD_DIM].astype(bf16)
                v = qkv[r0:r0 + N, 2 * DIM + c:2 * DIM + c + HEAD_DIM].astype(bf16)

                s = jax.lax.dot_general(q, k, (((1,), (1,)), ((), ())),
                                        preferred_element_type=jnp.float32)  # (N, N)
                s = s + bias_ref[0, h].astype(jnp.float32)           # rpb + window mask
                s = s - jnp.max(s, axis=-1, keepdims=True)
                p = jnp.exp(s)
                inv_l = pl.reciprocal(jnp.sum(p, axis=-1, keepdims=True), approx=True)
                # normalize AFTER the PV matmul: scales (N,16), not (N,N)
                ho = jnp.dot(p.astype(bf16), v,
                             preferred_element_type=jnp.float32) * inv_l
                # head-concat folded into the output projection
                part = part + jnp.dot(ho.astype(bf16), wproj_ref[0, h],
                                      preferred_element_type=jnp.float32)
            parts.append(part)
        x = parts[0] if bb == 1 else jnp.concatenate(parts, axis=0)  # drop_path = identity

        # ---- MLP branch: x + fc2(GELU(fc1(LN2(x)))) ----
        xn2 = _layer_norm(x, ln2w_ref[0], ln2b_ref[0]).astype(bf16)
        hdn = jnp.dot(xn2, w1_ref[0], preferred_element_type=jnp.float32) + b1_ref[0]
        hdn = _gelu_tanh(hdn).astype(bf16)
        x = x + jnp.dot(hdn, w2_ref[0], preferred_element_type=jnp.float32) + b2_ref[0]

        out_ref[...] = x.reshape(bb, N, DIM)

    return kernel


def default_fold_batch():
    """Fold the batch into one block on single-TensorCore chips (v5e/v6e);
    keep B as a 'parallel' grid axis elsewhere (v4/v5p megacore, v7x: 2 TCs)."""
    try:
        kind = jax.devices()[0].device_kind.lower()
    except Exception:
        return False
    return any(t in kind for t in
               ("v5 lite", "v5e", "v5lite", "v6 lite", "v6e", "v6lite"))


def basic_layer_pallas(x, packed, fold_batch):
    """x: (B, N, DIM) f32 -> (B, N, DIM) f32 (full BasicLayer, DEPTH blocks)."""
    args = [packed[name] for name in PARAM_ORDER]

    if fold_batch:
        grid = (DEPTH,)
        depth_axis = 0
        bb = B
        x_spec = pl.BlockSpec((B, N, DIM), lambda d: (0, 0, 0))
        out_spec = pl.BlockSpec((B, N, DIM), lambda d: (0, 0, 0))

        def pspec(a):
            return pl.BlockSpec((1,) + a.shape[1:],
                                lambda d, nd=a.ndim: (d,) + (0,) * (nd - 1))

        semantics = ("arbitrary",)
    else:
        grid = (B, DEPTH)
        depth_axis = 1
        bb = 1
        x_spec = pl.BlockSpec((1, N, DIM), lambda b, d: (b, 0, 0))
        out_spec = pl.BlockSpec((1, N, DIM), lambda b, d: (b, 0, 0))

        def pspec(a):
            return pl.BlockSpec((1,) + a.shape[1:],
                                lambda b, d, nd=a.ndim: (d,) + (0,) * (nd - 1))

        semantics = ("parallel", "arbitrary")

    return pl.pallas_call(
        make_basic_layer_kernel(bb, depth_axis),
        out_shape=jax.ShapeDtypeStruct((B, N, DIM), jnp.float32),
        grid=grid,
        in_specs=[x_spec] + [pspec(a) for a in args],
        out_specs=out_spec,
        compiler_params=pltpu.CompilerParams(dimension_semantics=semantics),
    )(x, *args)


# -------------------- host-side glue: NAT neighborhood bias matrix --------------------
def build_na_bias(rpb, Hh, Ww, K):
    """bias[h, q, k] = rpb[h, rel_i, rel_j] if key k is inside query q's clamped KxK
    window (natten, dilation=1), else -1e30.  Returned f32 (cast to bf16 when packed)."""
    nb = K // 2

    def win_start(idx, L):
        # natten get_window_start (dilation 1)
        return np.maximum(idx - nb, 0) + (idx + nb >= L) * (L - idx - nb - 1)

    qi, qj = np.arange(Hh), np.arange(Ww)
    ki, kj = np.arange(Hh), np.arange(Ww)
    ws_i, ws_j = win_start(qi, Hh), win_start(qj, Ww)
    mem_i = (ki[None, :] >= ws_i[:, None]) & (ki[None, :] < ws_i[:, None] + K)   # (H,H)
    mem_j = (kj[None, :] >= ws_j[:, None]) & (kj[None, :] < ws_j[:, None] + K)   # (W,W)
    rel_i = np.where(mem_i, ki[None, :] - qi[:, None] + (K - 1), 0)
    rel_j = np.where(mem_j, kj[None, :] - qj[:, None] + (K - 1), 0)

    bias = rpb[:, rel_i[:, None, :, None], rel_j[None, :, None, :]]   # (heads,H,W,H,W)
    mask = mem_i[:, None, :, None] & mem_j[None, :, None, :]
    bias = jnp.where(jnp.asarray(mask)[None], bias, NEG_INF)
    return bias.reshape(rpb.shape[0], Hh * Ww, Hh * Ww).astype(jnp.float32)


# ----------------------- pack per-block params into depth-stacked slabs ----------------
def pack_layer_params(block_params, block_biases):
    bf = jnp.bfloat16
    packed = {k: [] for k in PARAM_ORDER}
    # fold qk SCALE into the Q columns of the fused QKV weight / bias
    scale_cols = jnp.concatenate([jnp.full((DIM,), SCALE, jnp.float32),
                                  jnp.ones((2 * DIM,), jnp.float32)])

    for p, bias in zip(block_params, block_biases):
        qw = p["qkv_w"] * scale_cols[None, :]        # (DIM, 3*DIM), cols [Q|K|V]
        qb = p["qkv_b"] * scale_cols
        packed["ln1_w"].append(p["ln1_w"].reshape(1, DIM))
        packed["ln1_b"].append(p["ln1_b"].reshape(1, DIM))
        packed["wqkv"].append(qw.astype(bf))
        packed["bqkv"].append(qb.reshape(1, 3 * DIM))
        packed["bias"].append(bias.astype(bf))
        packed["wproj"].append(p["proj_w"].reshape(NUM_HEADS, HEAD_DIM, DIM).astype(bf))
        packed["bproj"].append(p["proj_b"].reshape(1, DIM))
        packed["ln2_w"].append(p["ln2_w"].reshape(1, DIM))
        packed["ln2_b"].append(p["ln2_b"].reshape(1, DIM))
        packed["w1"].append(p["fc1_w"].astype(bf))
        packed["b1"].append(p["fc1_b"].reshape(1, HIDDEN))
        packed["w2"].append(p["fc2_w"].astype(bf))
        packed["b2"].append(p["fc2_b"].reshape(1, DIM))
    return {k: jnp.stack(v, axis=0) for k, v in packed.items()}


# ------------------------------- deterministic parameters -----------------------------
def init_block_params(key):
    ks = jax.random.split(key, 8)

    def lin(k, fi, fo):
        return jax.random.normal(k, (fi, fo), jnp.float32) * 0.02

    return dict(
        ln1_w=jnp.ones((DIM,), jnp.float32),
        ln1_b=jnp.zeros((DIM,), jnp.float32),
        qkv_w=lin(ks[0], DIM, 3 * DIM),
        qkv_b=jax.random.normal(ks[1], (3 * DIM,), jnp.float32) * 0.02,
        rpb=jax.random.normal(ks[2], (NUM_HEADS, 2 * KERNEL_SIZE - 1,
                                      2 * KERNEL_SIZE - 1), jnp.float32) * 0.02,
        proj_w=lin(ks[3], DIM, DIM),
        proj_b=jax.random.normal(ks[4], (DIM,), jnp.float32) * 0.02,
        ln2_w=jnp.ones((DIM,), jnp.float32),
        ln2_b=jnp.zeros((DIM,), jnp.float32),
        fc1_w=lin(ks[5], DIM, HIDDEN),
        fc1_b=jax.random.normal(ks[6], (HIDDEN,), jnp.float32) * 0.02,
        fc2_w=lin(ks[7], HIDDEN, DIM),
        fc2_b=jnp.zeros((DIM,), jnp.float32),
    )


# ------------------------------- pure-JAX reference (check) ---------------------------
def nat_block_ref(x, p, attn_bias):
    xn = _layer_norm(x, p["ln1_w"], p["ln1_b"])
    qkv = xn @ p["qkv_w"] + p["qkv_b"]
    q, k, v = jnp.split(qkv, 3, axis=-1)
    q = q.reshape(B, N, NUM_HEADS, HEAD_DIM).transpose(0, 2, 1, 3) * SCALE
    k = k.reshape(B, N, NUM_HEADS, HEAD_DIM).transpose(0, 2, 1, 3)
    v = v.reshape(B, N, NUM_HEADS, HEAD_DIM).transpose(0, 2, 1, 3)
    s = jnp.einsum("bhnd,bhmd->bhnm", q, k) + attn_bias[None]
    a = jax.nn.softmax(s, axis=-1)
    o = jnp.einsum("bhnm,bhmd->bhnd", a, v).transpose(0, 2, 1, 3).reshape(B, N, DIM)
    x = x + (o @ p["proj_w"] + p["proj_b"])
    xn2 = _layer_norm(x, p["ln2_w"], p["ln2_b"])
    hdn = _gelu_exact(xn2 @ p["fc1_w"] + p["fc1_b"])
    return x + (hdn @ p["fc2_w"] + p["fc2_b"])


# --------------------------------------- main -----------------------------------------
if __name__ == "__main__":
    key = jax.random.PRNGKey(0)
    kx, kp = jax.random.split(key)

    # input to BasicLayer: (B, H, W, C) channels-last, as NATBlock expects
    x_img = jax.random.normal(kx, (B, H, W, DIM), jnp.float32)
    x = x_img.reshape(B, N, DIM)

    block_keys = jax.random.split(kp, DEPTH)
    params = [init_block_params(k) for k in block_keys]
    biases = [build_na_bias(p["rpb"], H, W, KERNEL_SIZE) for p in params]
    packed = pack_layer_params(params, biases)

    # f32 reference: sequential NATBlocks
    y_ref = x
    for p, bias in zip(params, biases):
        y_ref = nat_block_ref(y_ref, p, bias)
    y_ref = jax.block_until_ready(y_ref)
    # TODO(synk): dilation > 1 (dilations arg) is not exercised; dilations=None -> dilation=1.

    fold = default_fold_batch()
    # Verify BOTH structural variants (batch folded for single-TC chips, batch-parallel
    # grid otherwise); the auto-selected one is the layer output.
    outs = {}
    for mode in (fold, not fold):
        yk = jax.block_until_ready(basic_layer_pallas(x, packed, fold_batch=mode))
        assert bool(jnp.all(jnp.isfinite(yk))), f"non-finite output (fold_batch={mode})"
        max_err = float(jnp.max(jnp.abs(yk - y_ref)))
        assert max_err < 5e-2, f"mismatch vs reference (fold_batch={mode}): {max_err}"
        outs[mode] = yk

    y_out = outs[fold].reshape(B, H, W, DIM)
    assert y_out.shape == (B, H, W, DIM)
    print("KERNEL_OK")
</pallas_src>

<mosaic_0001>
module attributes {stable_mosaic.version = 11 : i64} {
  func.func @kernel(%arg0: i32, %arg1: i32, %arg2: memref<1x256x32xf32, #tpu.memory_space<vmem>>, %arg3: memref<1x1x32xf32, #tpu.memory_space<vmem>>, %arg4: memref<1x1x32xf32, #tpu.memory_space<vmem>>, %arg5: memref<1x32x96xbf16, #tpu.memory_space<vmem>>, %arg6: memref<1x1x96xf32, #tpu.memory_space<vmem>>, %arg7: memref<1x2x256x256xbf16, #tpu.memory_space<vmem>>, %arg8: memref<1x2x16x32xbf16, #tpu.memory_space<vmem>>, %arg9: memref<1x1x32xf32, #tpu.memory_space<vmem>>, %arg10: memref<1x1x32xf32, #tpu.memory_space<vmem>>, %arg11: memref<1x1x32xf32, #tpu.memory_space<vmem>>, %arg12: memref<1x32x128xbf16, #tpu.memory_space<vmem>>, %arg13: memref<1x1x128xf32, #tpu.memory_space<vmem>>, %arg14: memref<1x128x32xbf16, #tpu.memory_space<vmem>>, %arg15: memref<1x1x32xf32, #tpu.memory_space<vmem>>, %arg16: memref<1x256x32xf32, #tpu.memory_space<vmem>>) attributes {dimension_semantics = [#tpu.dimension_semantics<parallel>, #tpu.dimension_semantics<arbitrary>], iteration_bounds = array<i64: 2, 2>, scalar_prefetch = 0 : i64, scratch_operands = 0 : i64, tpu.core_type = #tpu.core_type<tc>, window_params = [{transform_indices = @transform_0, window_bounds = array<i64: 1, 256, 32>}, {transform_indices = @transform_1, window_bounds = array<i64: 1, 1, 32>}, {transform_indices = @transform_2, window_bounds = array<i64: 1, 1, 32>}, {transform_indices = @transform_3, window_bounds = array<i64: 1, 32, 96>}, {transform_indices = @transform_4, window_bounds = array<i64: 1, 1, 96>}, {transform_indices = @transform_5, window_bounds = array<i64: 1, 2, 256, 256>}, {transform_indices = @transform_6, window_bounds = array<i64: 1, 2, 16, 32>}, {transform_indices = @transform_7, window_bounds = array<i64: 1, 1, 32>}, {transform_indices = @transform_8, window_bounds = array<i64: 1, 1, 32>}, {transform_indices = @transform_9, window_bounds = array<i64: 1, 1, 32>}, {transform_indices = @transform_10, window_bounds = array<i64: 1, 32, 128>}, {transform_indices = @transform_11, window_bounds = array<i64: 1, 1, 128>}, {transform_indices = @transform_12, window_bounds = array<i64: 1, 128, 32>}, {transform_indices = @transform_13, window_bounds = array<i64: 1, 1, 32>}, {transform_indices = @transform_14, window_bounds = array<i64: 1, 256, 32>}]} {
    %c0_i32 = arith.constant 0 : i32
    %0 = arith.cmpi eq, %arg1, %c0_i32 : i32
    %1 = arith.extui %0 : i1 to i32
    %c0_i32_0 = arith.constant 0 : i32
    %2 = arith.cmpi ne, %1, %c0_i32_0 : i32
    scf.if %2 {
      %c0_80 = arith.constant 0 : index
      %c0_81 = arith.constant 0 : index
      %c0_82 = arith.constant 0 : index
      %157 = vector.load %arg2[%c0_80, %c0_81, %c0_82] : memref<1x256x32xf32, #tpu.memory_space<vmem>>, vector<1x256x32xf32>
      %c0_83 = arith.constant 0 : index
      %c0_84 = arith.constant 0 : index
      %c0_85 = arith.constant 0 : index
      %158 = vector.load %arg16[%c0_83, %c0_84, %c0_85] : memref<1x256x32xf32, #tpu.memory_space<vmem>>, vector<1x256x32xf32>
      tpu.vector_store %arg16[%c0_83, %c0_84, %c0_85], %157 {strides = array<i32>} : memref<1x256x32xf32, #tpu.memory_space<vmem>>, vector<1x256x32xf32>,
    } else {
    }
    %c0 = arith.constant 0 : index
    %c0_1 = arith.constant 0 : index
    %c0_2 = arith.constant 0 : index
    %3 = vector.load %arg16[%c0, %c0_1, %c0_2] : memref<1x256x32xf32, #tpu.memory_space<vmem>>, vector<1x256x32xf32>
    %4 = vector.shape_cast %3 : vector<1x256x32xf32> to vector<256x32xf32>
    %c0_3 = arith.constant 0 : index
    %c0_4 = arith.constant 0 : index
    %c0_5 = arith.constant 0 : index
    %5 = vector.load %arg3[%c0_3, %c0_4, %c0_5] : memref<1x1x32xf32, #tpu.memory_space<vmem>>, vector<1x1x32xf32>
    %6 = vector.shape_cast %5 : vector<1x1x32xf32> to vector<1x32xf32>
    %c0_6 = arith.constant 0 : index
    %c0_7 = arith.constant 0 : index
    %c0_8 = arith.constant 0 : index
    %7 = vector.load %arg4[%c0_6, %c0_7, %c0_8] : memref<1x1x32xf32, #tpu.memory_space<vmem>>, vector<1x1x32xf32>
    %8 = vector.shape_cast %7 : vector<1x1x32xf32> to vector<1x32xf32>
    %cst = arith.constant dense<0.000000e+00> : vector<256xf32>
    %9 = vector.multi_reduction <add>, %4, %cst [1] : vector<256x32xf32> to vector<256xf32>
    %10 = vector.shape_cast %9 : vector<256xf32> to vector<256x1xf32>
    %cst_9 = arith.constant 3.200000e+01 : f32
    %11 = vector.broadcast %cst_9 : f32 to vector<256x1xf32>
    %12 = arith.divf %10, %11 : vector<256x1xf32>
    %13 = vector.broadcast %12 : vector<256x1xf32> to vector<256x32xf32>
    %14 = arith.subf %4, %13 : vector<256x32xf32>
    %15 = arith.mulf %14, %14 : vector<256x32xf32>
    %cst_10 = arith.constant dense<0.000000e+00> : vector<256xf32>
    %16 = vector.multi_reduction <add>, %15, %cst_10 [1] : vector<256x32xf32> to vector<256xf32>
    %17 = vector.shape_cast %16 : vector<256xf32> to vector<256x1xf32>
    %cst_11 = arith.constant 3.200000e+01 : f32
    %18 = vector.broadcast %cst_11 : f32 to vector<256x1xf32>
    %19 = arith.divf %17, %18 : vector<256x1xf32>
    %20 = vector.broadcast %12 : vector<256x1xf32> to vector<256x32xf32>
    %21 = arith.subf %4, %20 : vector<256x32xf32>
    %cst_12 = arith.constant 9.99999974E-6 : f32
    %22 = vector.broadcast %cst_12 : f32 to vector<256x1xf32>
    %23 = arith.addf %19, %22 : vector<256x1xf32>
    %24 = math.rsqrt %23 : vector<256x1xf32>
    %25 = vector.broadcast %24 : vector<256x1xf32> to vector<256x32xf32>
    %26 = arith.mulf %21, %25 : vector<256x32xf32>
    %27 = vector.broadcast %6 : vector<1x32xf32> to vector<256x32xf32>
    %28 = arith.mulf %26, %27 : vector<256x32xf32>
    %29 = vector.broadcast %8 : vector<1x32xf32> to vector<256x32xf32>
    %30 = arith.addf %28, %29 : vector<256x32xf32>
    %31 = arith.truncf %30 : vector<256x32xf32> to vector<256x32xbf16>
    %c0_13 = arith.constant 0 : index
    %c0_14 = arith.constant 0 : index
    %c0_15 = arith.constant 0 : index
    %32 = vector.load %arg5[%c0_13, %c0_14, %c0_15] : memref<1x32x96xbf16, #tpu.memory_space<vmem>>, vector<1x32x96xbf16>
    %33 = vector.shape_cast %32 : vector<1x32x96xbf16> to vector<32x96xbf16>
    %cst_16 = arith.constant dense<0.000000e+00> : vector<256x96xf32>
    %34 = tpu.matmul %31, %33, %cst_16 {dimension_numbers = #tpu.dot_dimension_numbers<[1], [0], [0], [1], [0, 0, 1, 1], [], []>} : vector<256x32xbf16>, vector<32x96xbf16>, vector<256x96xf32> -> vector<256x96xf32>
    %c0_17 = arith.constant 0 : index
    %c0_18 = arith.constant 0 : index
    %c0_19 = arith.constant 0 : index
    %35 = vector.load %arg6[%c0_17, %c0_18, %c0_19] : memref<1x1x96xf32, #tpu.memory_space<vmem>>, vector<1x1x96xf32>
    %36 = vector.shape_cast %35 : vector<1x1x96xf32> to vector<1x96xf32>
    %37 = vector.broadcast %36 : vector<1x96xf32> to vector<256x96xf32>
    %38 = arith.addf %34, %37 : vector<256x96xf32>
    %c0_20 = arith.constant 0 : index
    %c0_21 = arith.constant 0 : index
    %c0_22 = arith.constant 0 : index
    %39 = vector.load %arg9[%c0_20, %c0_21, %c0_22] : memref<1x1x32xf32, #tpu.memory_space<vmem>>, vector<1x1x32xf32>
    %40 = vector.shape_cast %39 : vector<1x1x32xf32> to vector<1x32xf32>
    %41 = vector.broadcast %40 : vector<1x32xf32> to vector<256x32xf32>
    %42 = arith.addf %4, %41 : vector<256x32xf32>
    %43 = vector.extract_strided_slice %38 {offsets = [0, 0], sizes = [256, 16], strides = [1, 1]} : vector<256x96xf32> to vector<256x16xf32>
    %44 = arith.truncf %43 : vector<256x16xf32> to vector<256x16xbf16>
    %45 = vector.extract_strided_slice %38 {offsets = [0, 32], sizes = [256, 16], strides = [1, 1]} : vector<256x96xf32> to vector<256x16xf32>
    %46 = arith.truncf %45 : vector<256x16xf32> to vector<256x16xbf16>
    %47 = vector.extract_strided_slice %38 {offsets = [0, 64], sizes = [256, 16], strides = [1, 1]} : vector<256x96xf32> to vector<256x16xf32>
    %48 = arith.truncf %47 : vector<256x16xf32> to vector<256x16xbf16>
    %cst_23 = arith.constant dense<0.000000e+00> : vector<256x256xf32>
    %49 = tpu.matmul %44, %46, %cst_23 {dimension_numbers = #tpu.dot_dimension_numbers<[1], [1], [0], [0], [0, 0, 1, 0], [], []>} : vector<256x16xbf16>, vector<256x16xbf16>, vector<256x256xf32> -> vector<256x256xf32>
    %c0_24 = arith.constant 0 : index
    %c0_25 = arith.constant 0 : index
    %c0_26 = arith.constant 0 : index
    %c0_27 = arith.constant 0 : index
    %50 = vector.load %arg7[%c0_24, %c0_25, %c0_26, %c0_27] : memref<1x2x256x256xbf16, #tpu.memory_space<vmem>>, vector<1x1x256x256xbf16>
    %51 = vector.shape_cast %50 : vector<1x1x256x256xbf16> to vector<256x256xbf16>
    %52 = arith.extf %51 : vector<256x256xbf16> to vector<256x256xf32>
    %53 = arith.addf %49, %52 : vector<256x256xf32>
    %cst_28 = arith.constant dense<0xFF800000> : vector<256xf32>
    %54 = vector.multi_reduction <maximumf>, %53, %cst_28 [1] : vector<256x256xf32> to vector<256xf32>
    %55 = vector.shape_cast %54 : vector<256xf32> to vector<256x1xf32>
    %56 = vector.broadcast %55 : vector<256x1xf32> to vector<256x256xf32>
    %57 = arith.subf %53, %56 : vector<256x256xf32>
    %58 = math.exp %57 : vector<256x256xf32>
    %cst_29 = arith.constant dense<0.000000e+00> : vector<256xf32>
    %59 = vector.multi_reduction <add>, %58, %cst_29 [1] : vector<256x256xf32> to vector<256xf32>
    %60 = vector.shape_cast %59 : vector<256xf32> to vector<256x1xf32>
    %61 = tpu.reciprocal %60 {approx = true} : vector<256x1xf32> -> vector<256x1xf32>
    %62 = arith.truncf %58 : vector<256x256xf32> to vector<256x256xbf16>
    %cst_30 = arith.constant dense<0.000000e+00> : vector<256x16xf32>
    %63 = tpu.matmul %62, %48, %cst_30 {dimension_numbers = #tpu.dot_dimension_numbers<[1], [0], [0], [1], [0, 0, 1, 1], [], []>} : vector<256x256xbf16>, vector<256x16xbf16>, vector<256x16xf32> -> vector<256x16xf32>
    %64 = vector.broadcast %61 : vector<256x1xf32> to vector<256x16xf32>
    %65 = arith.mulf %63, %64 : vector<256x16xf32>
    %66 = arith.truncf %65 : vector<256x16xf32> to vector<256x16xbf16>
    %c0_31 = arith.constant 0 : index
    %c0_32 = arith.constant 0 : index
    %c0_33 = arith.constant 0 : index
    %c0_34 = arith.constant 0 : index
    %67 = vector.load %arg8[%c0_31, %c0_32, %c0_33, %c0_34] : memref<1x2x16x32xbf16, #tpu.memory_space<vmem>>, vector<1x1x16x32xbf16>
    %68 = vector.shape_cast %67 : vector<1x1x16x32xbf16> to vector<16x32xbf16>
    %cst_35 = arith.constant dense<0.000000e+00> : vector<256x32xf32>
    %69 = tpu.matmul %66, %68, %cst_35 {dimension_numbers = #tpu.dot_dimension_numbers<[1], [0], [0], [1], [0, 0, 1, 1], [], []>} : vector<256x16xbf16>, vector<16x32xbf16>, vector<256x32xf32> -> vector<256x32xf32>
    %70 = arith.addf %42, %69 : vector<256x32xf32>
    %71 = vector.extract_strided_slice %38 {offsets = [0, 16], sizes = [256, 16], strides = [1, 1]} : vector<256x96xf32> to vector<256x16xf32>
    %72 = arith.truncf %71 : vector<256x16xf32> to vector<256x16xbf16>
    %73 = vector.extract_strided_slice %38 {offsets = [0, 48], sizes = [256, 16], strides = [1, 1]} : vector<256x96xf32> to vector<256x16xf32>
    %74 = arith.truncf %73 : vector<256x16xf32> to vector<256x16xbf16>
    %75 = vector.extract_strided_slice %38 {offsets = [0, 80], sizes = [256, 16], strides = [1, 1]} : vector<256x96xf32> to vector<256x16xf32>
    %76 = arith.truncf %75 : vector<256x16xf32> to vector<256x16xbf16>
    %cst_36 = arith.constant dense<0.000000e+00> : vector<256x256xf32>
    %77 = tpu.matmul %72, %74, %cst_36 {dimension_numbers = #tpu.dot_dimension_numbers<[1], [1], [0], [0], [0, 0, 1, 0], [], []>} : vector<256x16xbf16>, vector<256x16xbf16>, vector<256x256xf32> -> vector<256x256xf32>
    %c0_37 = arith.constant 0 : index
    %c1 = arith.constant 1 : index
    %c0_38 = arith.constant 0 : index
    %c0_39 = arith.constant 0 : index
    %78 = vector.load %arg7[%c0_37, %c1, %c0_38, %c0_39] : memref<1x2x256x256xbf16, #tpu.memory_space<vmem>>, vector<1x1x256x256xbf16>
    %79 = vector.shape_cast %78 : vector<1x1x256x256xbf16> to vector<256x256xbf16>
    %80 = arith.extf %79 : vector<256x256xbf16> to vector<256x256xf32>
    %81 = arith.addf %77, %80 : vector<256x256xf32>
    %cst_40 = arith.constant dense<0xFF800000> : vector<256xf32>
    %82 = vector.multi_reduction <maximumf>, %81, %cst_40 [1] : vector<256x256xf32> to vector<256xf32>
    %83 = vector.shape_cast %82 : vector<256xf32> to vector<256x1xf32>
    %84 = vector.broadcast %83 : vector<256x1xf32> to vector<256x256xf32>
    %85 = arith.subf %81, %84 : vector<256x256xf32>
    %86 = math.exp %85 : vector<256x256xf32>
    %cst_41 = arith.constant dense<0.000000e+00> : vector<256xf32>
    %87 = vector.multi_reduction <add>, %86, %cst_41 [1] : vector<256x256xf32> to vector<256xf32>
    %88 = vector.shape_cast %87 : vector<256xf32> to vector<256x1xf32>
    %89 = tpu.reciprocal %88 {approx = true} : vector<256x1xf32> -> vector<256x1xf32>
    %90 = arith.truncf %86 : vector<256x256xf32> to vector<256x256xbf16>
    %cst_42 = arith.constant dense<0.000000e+00> : vector<256x16xf32>
    %91 = tpu.matmul %90, %76, %cst_42 {dimension_numbers = #tpu.dot_dimension_numbers<[1], [0], [0], [1], [0, 0, 1, 1], [], []>} : vector<256x256xbf16>, vector<256x16xbf16>, vector<256x16xf32> -> vector<256x16xf32>
    %92 = vector.broadcast %89 : vector<256x1xf32> to vector<256x16xf32>
    %93 = arith.mulf %91, %92 : vector<256x16xf32>
    %94 = arith.truncf %93 : vector<256x16xf32> to vector<256x16xbf16>
    %c0_43 = arith.constant 0 : index
    %c1_44 = arith.constant 1 : index
    %c0_45 = arith.constant 0 : index
    %c0_46 = arith.constant 0 : index
    %95 = vector.load %arg8[%c0_43, %c1_44, %c0_45, %c0_46] : memref<1x2x16x32xbf16, #tpu.memory_space<vmem>>, vector<1x1x16x32xbf16>
    %96 = vector.shape_cast %95 : vector<1x1x16x32xbf16> to vector<16x32xbf16>
    %cst_47 = arith.constant dense<0.000000e+00> : vector<256x32xf32>
    %97 = tpu.matmul %94, %96, %cst_47 {dimension_numbers = #tpu.dot_dimension_numbers<[1], [0], [0], [1], [0, 0, 1, 1], [], []>} : vector<256x16xbf16>, vector<16x32xbf16>, vector<256x32xf32> -> vector<256x32xf32>
    %98 = arith.addf %70, %97 : vector<256x32xf32>
    %c0_48 = arith.constant 0 : index
    %c0_49 = arith.constant 0 : index
    %c0_50 = arith.constant 0 : index
    %99 = vector.load %arg10[%c0_48, %c0_49, %c0_50] : memref<1x1x32xf32, #tpu.memory_space<vmem>>, vector<1x1x32xf32>
    %100 = vector.shape_cast %99 : vector<1x1x32xf32> to vector<1x32xf32>
    %c0_51 = arith.constant 0 : index
    %c0_52 = arith.constant 0 : index
    %c0_53 = arith.constant 0 : index
    %101 = vector.load %arg11[%c0_51, %c0_52, %c0_53] : memref<1x1x32xf32, #tpu.memory_space<vmem>>, vector<1x1x32xf32>
    %102 = vector.shape_cast %101 : vector<1x1x32xf32> to vector<1x32xf32>
    %cst_54 = arith.constant dense<0.000000e+00> : vector<256xf32>
    %103 = vector.multi_reduction <add>, %98, %cst_54 [1] : vector<256x32xf32> to vector<256xf32>
    %104 = vector.shape_cast %103 : vector<256xf32> to vector<256x1xf32>
    %cst_55 = arith.constant 3.200000e+01 : f32
    %105 = vector.broadcast %cst_55 : f32 to vector<256x1xf32>
    %106 = arith.divf %104, %105 : vector<256x1xf32>
    %107 = vector.broadcast %106 : vector<256x1xf32> to vector<256x32xf32>
    %108 = arith.subf %98, %107 : vector<256x32xf32>
    %109 = arith.mulf %108, %108 : vector<256x32xf32>
    %cst_56 = arith.constant dense<0.000000e+00> : vector<256xf32>
    %110 = vector.multi_reduction <add>, %109, %cst_56 [1] : vector<256x32xf32> to vector<256xf32>
    %111 = vector.shape_cast %110 : vector<256xf32> to vector<256x1xf32>
    %cst_57 = arith.constant 3.200000e+01 : f32
    %112 = vector.broadcast %cst_57 : f32 to vector<256x1xf32>
    %113 = arith.divf %111, %112 : vector<256x1xf32>
    %114 = vector.broadcast %106 : vector<256x1xf32> to vector<256x32xf32>
    %115 = arith.subf %98, %114 : vector<256x32xf32>
    %cst_58 = arith.constant 9.99999974E-6 : f32
    %116 = vector.broadcast %cst_58 : f32 to vector<256x1xf32>
    %117 = arith.addf %113, %116 : vector<256x1xf32>
    %118 = math.rsqrt %117 : vector<256x1xf32>
    %119 = vector.broadcast %118 : vector<256x1xf32> to vector<256x32xf32>
    %120 = arith.mulf %115, %119 : vector<256x32xf32>
    %121 = vector.broadcast %100 : vector<1x32xf32> to vector<256x32xf32>
    %122 = arith.mulf %120, %121 : vector<256x32xf32>
    %123 = vector.broadcast %102 : vector<1x32xf32> to vector<256x32xf32>
    %124 = arith.addf %122, %123 : vector<256x32xf32>
    %125 = arith.truncf %124 : vector<256x32xf32> to vector<256x32xbf16>
    %c0_59 = arith.constant 0 : index
    %c0_60 = arith.constant 0 : index
    %c0_61 = arith.constant 0 : index
    %126 = vector.load %arg12[%c0_59, %c0_60, %c0_61] : memref<1x32x128xbf16, #tpu.memory_space<vmem>>, vector<1x32x128xbf16>
    %127 = vector.shape_cast %126 : vector<1x32x128xbf16> to vector<32x128xbf16>
    %cst_62 = arith.constant dense<0.000000e+00> : vector<256x128xf32>
    %128 = tpu.matmul %125, %127, %cst_62 {dimension_numbers = #tpu.dot_dimension_numbers<[1], [0], [0], [1], [0, 0, 1, 1], [], []>} : vector<256x32xbf16>, vector<32x128xbf16>, vector<256x128xf32> -> vector<256x128xf32>
    %c0_63 = arith.constant 0 : index
    %c0_64 = arith.constant 0 : index
    %c0_65 = arith.constant 0 : index
    %129 = vector.load %arg13[%c0_63, %c0_64, %c0_65] : memref<1x1x128xf32, #tpu.memory_space<vmem>>, vector<1x1x128xf32>
    %130 = vector.shape_cast %129 : vector<1x1x128xf32> to vector<1x128xf32>
    %131 = vector.broadcast %130 : vector<1x128xf32> to vector<256x128xf32>
    %132 = arith.addf %128, %131 : vector<256x128xf32>
    %cst_66 = arith.constant 5.000000e-01 : f32
    %133 = vector.broadcast %cst_66 : f32 to vector<256x128xf32>
    %134 = arith.mulf %133, %132 : vector<256x128xf32>
    %cst_67 = arith.constant 4.471500e-02 : f32
    %135 = vector.broadcast %cst_67 : f32 to vector<256x128xf32>
    %136 = arith.mulf %135, %132 : vector<256x128xf32>
    %137 = arith.mulf %136, %132 : vector<256x128xf32>
    %138 = arith.mulf %137, %132 : vector<256x128xf32>
    %139 = arith.addf %132, %138 : vector<256x128xf32>
    %cst_68 = arith.constant 0.797884583 : f32
    %140 = vector.broadcast %cst_68 : f32 to vector<256x128xf32>
    %141 = arith.mulf %140, %139 : vector<256x128xf32>
    %142 = math.tanh %141 : vector<256x128xf32>
    %cst_69 = arith.constant 1.000000e+00 : f32
    %143 = vector.broadcast %cst_69 : f32 to vector<256x128xf32>
    %144 = arith.addf %143, %142 : vector<256x128xf32>
    %145 = arith.mulf %134, %144 : vector<256x128xf32>
    %146 = arith.truncf %145 : vector<256x128xf32> to vector<256x128xbf16>
    %c0_70 = arith.constant 0 : index
    %c0_71 = arith.constant 0 : index
    %c0_72 = arith.constant 0 : index
    %147 = vector.load %arg14[%c0_70, %c0_71, %c0_72] : memref<1x128x32xbf16, #tpu.memory_space<vmem>>, vector<1x128x32xbf16>
    %148 = vector.shape_cast %147 : vector<1x128x32xbf16> to vector<128x32xbf16>
    %cst_73 = arith.constant dense<0.000000e+00> : vector<256x32xf32>
    %149 = tpu.matmul %146, %148, %cst_73 {dimension_numbers = #tpu.dot_dimension_numbers<[1], [0], [0], [1], [0, 0, 1, 1], [], []>} : vector<256x128xbf16>, vector<128x32xbf16>, vector<256x32xf32> -> vector<256x32xf32>
    %150 = arith.addf %98, %149 : vector<256x32xf32>
    %c0_74 = arith.constant 0 : index
    %c0_75 = arith.constant 0 : index
    %c0_76 = arith.constant 0 : index
    %151 = vector.load %arg15[%c0_74, %c0_75, %c0_76] : memref<1x1x32xf32, #tpu.memory_space<vmem>>, vector<1x1x32xf32>
    %152 = vector.shape_cast %151 : vector<1x1x32xf32> to vector<1x32xf32>
    %153 = vector.broadcast %152 : vector<1x32xf32> to vector<256x32xf32>
    %154 = arith.addf %150, %153 : vector<256x32xf32>
    %155 = vector.shape_cast %154 : vector<256x32xf32> to vector<1x256x32xf32>
    %c0_77 = arith.constant 0 : index
    %c0_78 = arith.constant 0 : index
    %c0_79 = arith.constant 0 : index
    %156 = vector.load %arg16[%c0_77, %c0_78, %c0_79] : memref<1x256x32xf32, #tpu.memory_space<vmem>>, vector<1x256x32xf32>
    tpu.vector_store %arg16[%c0_77, %c0_78, %c0_79], %155 {strides = array<i32>} : memref<1x256x32xf32, #tpu.memory_space<vmem>>, vector<1x256x32xf32>,
    return
  }
  func.func @transform_0(%arg0: i32, %arg1: i32) -> (i32, i32, i32) {
    %c0_i32 = arith.constant 0 : i32
    %c0_i32_0 = arith.constant 0 : i32
    %c0_i32_1 = arith.constant 0 : i32
    return %arg0, %c0_i32, %c0_i32_0 : i32, i32, i32
  }
  func.func @transform_1(%arg0: i32, %arg1: i32) -> (i32, i32, i32) {
    %c0_i32 = arith.constant 0 : i32
    %c0_i32_0 = arith.constant 0 : i32
    %c0_i32_1 = arith.constant 0 : i32
    return %arg1, %c0_i32, %c0_i32_0 : i32, i32, i32
  }
  func.func @transform_2(%arg0: i32, %arg1: i32) -> (i32, i32, i32) {
    %c0_i32 = arith.constant 0 : i32
    %c0_i32_0 = arith.constant 0 : i32
    %c0_i32_1 = arith.constant 0 : i32
    return %arg1, %c0_i32, %c0_i32_0 : i32, i32, i32
  }
  func.func @transform_3(%arg0: i32, %arg1: i32) -> (i32, i32, i32) {
    %c0_i32 = arith.constant 0 : i32
    %c0_i32_0 = arith.constant 0 : i32
    %c0_i32_1 = arith.constant 0 : i32
    return %arg1, %c0_i32, %c0_i32_0 : i32, i32, i32
  }
  func.func @transform_4(%arg0: i32, %arg1: i32) -> (i32, i32, i32) {
    %c0_i32 = arith.constant 0 : i32
    %c0_i32_0 = arith.constant 0 : i32
    %c0_i32_1 = arith.constant 0 : i32
    return %arg1, %c0_i32, %c0_i32_0 : i32, i32, i32
  }
  func.func @transform_5(%arg0: i32, %arg1: i32) -> (i32, i32, i32, i32) {
    %c0_i32 = arith.constant 0 : i32
    %c0_i32_0 = arith.constant 0 : i32
    %c0_i32_1 = arith.constant 0 : i32
    %c0_i32_2 = arith.constant 0 : i32
    return %arg1, %c0_i32, %c0_i32_0, %c0_i32_1 : i32, i32, i32, i32
  }
  func.func @transform_6(%arg0: i32, %arg1: i32) -> (i32, i32, i32, i32) {
    %c0_i32 = arith.constant 0 : i32
    %c0_i32_0 = arith.constant 0 : i32
    %c0_i32_1 = arith.constant 0 : i32
    %c0_i32_2 = arith.constant 0 : i32
    return %arg1, %c0_i32, %c0_i32_0, %c0_i32_1 : i32, i32, i32, i32
  }
  func.func @transform_7(%arg0: i32, %arg1: i32) -> (i32, i32, i32) {
    %c0_i32 = arith.constant 0 : i32
    %c0_i32_0 = arith.constant 0 : i32
    %c0_i32_1 = arith.constant 0 : i32
    return %arg1, %c0_i32, %c0_i32_0 : i32, i32, i32
  }
  func.func @transform_8(%arg0: i32, %arg1: i32) -> (i32, i32, i32) {
    %c0_i32 = arith.constant 0 : i32
    %c0_i32_0 = arith.constant 0 : i32
    %c0_i32_1 = arith.constant 0 : i32
    return %arg1, %c0_i32, %c0_i32_0 : i32, i32, i32
  }
  func.func @transform_9(%arg0: i32, %arg1: i32) -> (i32, i32, i32) {
    %c0_i32 = arith.constant 0 : i32
    %c0_i32_0 = arith.constant 0 : i32
    %c0_i32_1 = arith.constant 0 : i32
    return %arg1, %c0_i32, %c0_i32_0 : i32, i32, i32
  }
  func.func @transform_10(%arg0: i32, %arg1: i32) -> (i32, i32, i32) {
    %c0_i32 = arith.constant 0 : i32
    %c0_i32_0 = arith.constant 0 : i32
    %c0_i32_1 = arith.constant 0 : i32
    return %arg1, %c0_i32, %c0_i32_0 : i32, i32, i32
  }
  func.func @transform_11(%arg0: i32, %arg1: i32) -> (i32, i32, i32) {
    %c0_i32 = arith.constant 0 : i32
    %c0_i32_0 = arith.constant 0 : i32
    %c0_i32_1 = arith.constant 0 : i32
    return %arg1, %c0_i32, %c0_i32_0 : i32, i32, i32
  }
  func.func @transform_12(%arg0: i32, %arg1: i32) -> (i32, i32, i32) {
    %c0_i32 = arith.constant 0 : i32
    %c0_i32_0 = arith.constant 0 : i32
    %c0_i32_1 = arith.constant 0 : i32
    return %arg1, %c0_i32, %c0_i32_0 : i32, i32, i32
  }
  func.func @transform_13(%arg0: i32, %arg1: i32) -> (i32, i32, i32) {
    %c0_i32 = arith.constant 0 : i32
    %c0_i32_0 = arith.constant 0 : i32
    %c0_i32_1 = arith.constant 0 : i32
    return %arg1, %c0_i32, %c0_i32_0 : i32, i32, i32
  }
  func.func @transform_14(%arg0: i32, %arg1: i32) -> (i32, i32, i32) {
    %c0_i32 = arith.constant 0 : i32
    %c0_i32_0 = arith.constant 0 : i32
    %c0_i32_1 = arith.constant 0 : i32
    return %arg0, %c0_i32, %c0_i32_0 : i32, i32, i32
  }
}

</mosaic_0001>

<llo_original>
// kernel: tpu_custom_call.1
$region0: #{tpu_custom_call.1}
  #allocation0 [shape = 'u32[]', space=smem, size = 0x4, offset = 0x4, fixed_abs, tag = 'smem constant byte address 0x4 - core index']
  #allocation1 [shape = 'u32[144,128]{1,0:T(1,128)}', space=vmem, size = 0x12000, scoped, tag = 'internal scratch']
  %s0 = inlined_call_operand.vmem [shape: f32[2,256,32], index: 0, kind: input, shape index: {}]
  %s1 = inlined_call_operand.vmem [shape: f32[2,1,32], index: 1, kind: input, shape index: {}]
  %s2 = inlined_call_operand.vmem [shape: f32[2,1,32], index: 2, kind: input, shape index: {}]
  %s3 = inlined_call_operand.vmem [shape: bf16[2,32,96], index: 3, kind: input, shape index: {}]
  %s4 = inlined_call_operand.vmem [shape: f32[2,1,96], index: 4, kind: input, shape index: {}]
  %s5 = inlined_call_operand.hbm [shape: bf16[2,2,256,256], index: 5, kind: input, shape index: {}]
  %s6 = inlined_call_operand.vmem [shape: bf16[2,2,16,32], index: 6, kind: input, shape index: {}]
  %s7 = inlined_call_operand.vmem [shape: f32[2,1,32], index: 7, kind: input, shape index: {}]
  %s8 = inlined_call_operand.vmem [shape: f32[2,1,32], index: 8, kind: input, shape index: {}]
  %s9 = inlined_call_operand.vmem [shape: f32[2,1,32], index: 9, kind: input, shape index: {}]
  %s10 = inlined_call_operand.vmem [shape: bf16[2,32,128], index: 10, kind: input, shape index: {}]
  %s11 = inlined_call_operand.vmem [shape: f32[2,1,128], index: 11, kind: input, shape index: {}]
  %s12 = inlined_call_operand.vmem [shape: bf16[2,128,32], index: 12, kind: input, shape index: {}]
  %s13 = inlined_call_operand.vmem [shape: f32[2,1,32], index: 13, kind: input, shape index: {}]
  %s14 = inlined_call_operand.vmem [shape: f32[2,256,32], index: 14, kind: output, shape index: {}]
  %s15 = sld [smem:[#allocation0]]
  $region97: #{tpu_custom_call.1} parent=0
    _
  %s17 = ssub.s32 1, %s15
  %s18 = scalar_select 0, %s17, %s15
  $region1: #{tpu_custom_call.1} parent=0
    #allocation2 [shape = 'u8[524288]{0}', space=vmem, size = 0x80000, scoped, tag = 'input window, operand 5']
    #allocation3 [shape = 's32[2]{0}', space=sflag, size = 0x8, scoped, tag = 'scoped memory for tpu_custom_call.1']
    %19 = vsyncpa [#allocation3], 0
    %s20 = scalar_lea.sflag [#allocation3], 1
    %21 = vsyncpa %s20, 0
    loop: start=0, step=1, limit=6
    $region2: #{tpu_custom_call.1} parent=1 // loop_pre_header
      _
    $region3: #{tpu_custom_call.1} parent=1 // loop_header
      %s23 = sphi 0, %s27
      %p24 = scmp.ge.s32.totalorder %s23, 6
      %s30 = sphi 0, %s42
      %s31 = sphi 0, %s38
      %s32 = sphi 0, %s30
      %s33 = sphi 0, %s31
      %s34 = sphi 0, %s32
      %s35 = sphi 0, %s33
      %s45 = sphi 0, %s47
      %s48 = sphi 0, %s45
      %s49 = sphi 0, %s48
      %s65 = sphi 0, %s49
      %s71 = sphi 0, %s73
      %s74 = sphi 0, %s71
      %s75 = sphi 0, %s74
      %s91 = sphi 0, %s75
      %s97 = sphi 0, %s99
      %s100 = sphi 0, %s97
      %s101 = sphi 0, %s100
      %s117 = sphi 0, %s101
      %s123 = sphi 0, %s125
      %s126 = sphi 0, %s123
      %s127 = sphi 0, %s126
      %s143 = sphi 0, %s127
      %s149 = sphi 0, %s151
      %s152 = sphi 0, %s149
      %s153 = sphi 0, %s152
      %s169 = sphi 0, %s153
      %s175 = sphi 0, %s177
      %s178 = sphi 0, %s175
      %s179 = sphi 0, %s178
      %s195 = sphi 0, %s179
      %s201 = sphi 0, %s203
      %s204 = sphi 0, %s201
      %s205 = sphi 0, %s204
      %s221 = sphi 0, %s205
      %s227 = sphi 0, %s229
      %s230 = sphi 0, %s227
      %s231 = sphi 0, %s230
      %s247 = sphi 0, %s231
      %s253 = sphi 0, %s255
      %s256 = sphi 0, %s253
      %s257 = sphi 0, %s256
      %s273 = sphi 0, %s257
      %s279 = sphi 0, %s281
      %s282 = sphi 0, %s279
      %s283 = sphi 0, %s282
      %s299 = sphi 0, %s283
      %s305 = sphi 0, %s307
      %s308 = sphi 0, %s305
      %s309 = sphi 0, %s308
      %s325 = sphi 0, %s309
      %s331 = sphi 0, %s333
      %s334 = sphi 0, %s331
      %s335 = sphi 0, %s334
      %s351 = sphi 0, %s335
      %s357 = sphi 0, %s359
      %s360 = sphi 0, %s357
      %s361 = sphi 0, %s360
      %s377 = sphi 0, %s361
      %s383 = sphi 0, %s385
      %s386 = sphi 0, %s383
      %s387 = sphi 0, %s386
      %s403 = sphi 0, %s387
      %s409 = sphi 0, %s411
      %s412 = sphi 0, %s409
      %s413 = sphi 0, %s412
      %s429 = sphi 0, %s413
    $region4: #{tpu_custom_call.1} parent=1 // loop_header_branch
      %26 = sbr.rel (%p24) target = $region8
    $region5: #{tpu_custom_call.1} parent=1 // loop_body
      %s28 = ssub.s32 %s23, 1
      %s29 = ssub.s32 %s23, 2
      %s36 = sadd.s32 1, %s31
      %p37 = scmp.ge.s32.totalorder %s36, 2
      %s38 = scalar_select %p37, 0, %s36
      %s39 = sadd.s32 1, %s30
      %s40 = scalar_select %p37, %s39, %s30
      %p41 = scmp.ge.s32.totalorder %s40, 2
      %s42 = scalar_select %p41, 0, %s40
      %s43 = ssub.s32 %s30, %s42
      %p44 = scmp.eq.s32.totalorder %s43, 0
      %s46 = sadd.s32 %s45, 1
      %s47 = scalar_select %p44, %s45, %s46
      %p50 = pneg %p44
      %p51 = scmp.eq.s32.totalorder %s23, 3
      %p52 = por %p50, %p51
      %p53 = scmp.ne.s32.totalorder %s45, %s48
      %p54 = scmp.eq.s32.totalorder %s23, 0
      %p55 = por %p53, %p54
      %p56 = scmp.ne.s32.totalorder %s45, %s48
      %p57 = scmp.eq.s32.totalorder %s28, 3
      %p58 = por %p56, %p57
      %p59 = scmp.ne.s32.totalorder %s48, %s49
      %p60 = scmp.eq.s32.totalorder %s28, 0
      %p61 = por %p59, %p60
      %p62 = scmp.ne.s32.totalorder %s48, %s49
      %p63 = scmp.eq.s32.totalorder %s29, 3
      %p64 = por %p62, %p63
      %p66 = scmp.ne.s32.totalorder %s49, %s65
      %p67 = scmp.eq.s32.totalorder %s29, 0
      %p68 = por %p66, %p67
      %s69 = ssub.s32 %s31, %s38
      %p70 = scmp.eq.s32.totalorder %s69, 0
      %s72 = sadd.s32 %s71, 1
      %s73 = scalar_select %p70, %s71, %s72
      %p76 = pneg %p70
      %p77 = scmp.eq.s32.totalorder %s23, 3
      %p78 = por %p76, %p77
      %p79 = scmp.ne.s32.totalorder %s71, %s74
      %p80 = scmp.eq.s32.totalorder %s23, 0
      %p81 = por %p79, %p80
      %p82 = scmp.ne.s32.totalorder %s71, %s74
      %p83 = scmp.eq.s32.totalorder %s28, 3
      %p84 = por %p82, %p83
      %p85 = scmp.ne.s32.totalorder %s74, %s75
      %p86 = scmp.eq.s32.totalorder %s28, 0
      %p87 = por %p85, %p86
      %p88 = scmp.ne.s32.totalorder %s74, %s75
      %p89 = scmp.eq.s32.totalorder %s29, 3
      %p90 = por %p88, %p89
      %p92 = scmp.ne.s32.totalorder %s75, %s91
      %p93 = scmp.eq.s32.totalorder %s29, 0
      %p94 = por %p92, %p93
      %s95 = ssub.s32 %s31, %s38
      %p96 = scmp.eq.s32.totalorder %s95, 0
      %s98 = sadd.s32 %s97, 1
      %s99 = scalar_select %p96, %s97, %s98
      %p102 = pneg %p96
      %p103 = scmp.eq.s32.totalorder %s23, 3
      %p104 = por %p102, %p103
      %p105 = scmp.ne.s32.totalorder %s97, %s100
      %p106 = scmp.eq.s32.totalorder %s23, 0
      %p107 = por %p105, %p106
      %p108 = scmp.ne.s32.totalorder %s97, %s100
      %p109 = scmp.eq.s32.totalorder %s28, 3
      %p110 = por %p108, %p109
      %p111 = scmp.ne.s32.totalorder %s100, %s101
      %p112 = scmp.eq.s32.totalorder %s28, 0
      %p113 = por %p111, %p112
      %p114 = scmp.ne.s32.totalorder %s100, %s101
      %p115 = scmp.eq.s32.totalorder %s29, 3
      %p116 = por %p114, %p115
      %p118 = scmp.ne.s32.totalorder %s101, %s117
      %p119 = scmp.eq.s32.totalorder %s29, 0
      %p120 = por %p118, %p119
      %s121 = ssub.s32 %s31, %s38
      %p122 = scmp.eq.s32.totalorder %s121, 0
      %s124 = sadd.s32 %s123, 1
      %s125 = scalar_select %p122, %s123, %s124
      %p128 = pneg %p122
      %p129 = scmp.eq.s32.totalorder %s23, 3
      %p130 = por %p128, %p129
      %p131 = scmp.ne.s32.totalorder %s123, %s126
      %p132 = scmp.eq.s32.totalorder %s23, 0
      %p133 = por %p131, %p132
      %p134 = scmp.ne.s32.totalorder %s123, %s126
      %p135 = scmp.eq.s32.totalorder %s28, 3
      %p136 = por %p134, %p135
      %p137 = scmp.ne.s32.totalorder %s126, %s127
      %p138 = scmp.eq.s32.totalorder %s28, 0
      %p139 = por %p137, %p138
      %p140 = scmp.ne.s32.totalorder %s126, %s127
      %p141 = scmp.eq.s32.totalorder %s29, 3
      %p142 = por %p140, %p141
      %p144 = scmp.ne.s32.totalorder %s127, %s143
      %p145 = scmp.eq.s32.totalorder %s29, 0
      %p146 = por %p144, %p145
      %s147 = ssub.s32 %s31, %s38
      %p148 = scmp.eq.s32.totalorder %s147, 0
      %s150 = sadd.s32 %s149, 1
      %s151 = scalar_select %p148, %s149, %s150
      %p154 = pneg %p148
      %p155 = scmp.eq.s32.totalorder %s23, 3
      %p156 = por %p154, %p155
      %p157 = scmp.ne.s32.totalorder %s149, %s152
      %p158 = scmp.eq.s32.totalorder %s23, 0
      %p159 = por %p157, %p158
      %p160 = scmp.ne.s32.totalorder %s149, %s152
      %p161 = scmp.eq.s32.totalorder %s28, 3
      %p162 = por %p160, %p161
      %p163 = scmp.ne.s32.totalorder %s152, %s153
      %p164 = scmp.eq.s32.totalorder %s28, 0
      %p165 = por %p163, %p164
      %p166 = scmp.ne.s32.totalorder %s152, %s153
      %p167 = scmp.eq.s32.totalorder %s29, 3
      %p168 = por %p166, %p167
      %p170 = scmp.ne.s32.totalorder %s153, %s169
      %p171 = scmp.eq.s32.totalorder %s29, 0
      %p172 = por %p170, %p171
      %s173 = ssub.s32 %s31, %s38
      %p174 = scmp.eq.s32.totalorder %s173, 0
      %s176 = sadd.s32 %s175, 1
      %s177 = scalar_select %p174, %s175, %s176
      %p180 = pneg %p174
      %p181 = scmp.eq.s32.totalorder %s23, 3
      %p182 = por %p180, %p181
      %p183 = scmp.ne.s32.totalorder %s175, %s178
      %p184 = scmp.eq.s32.totalorder %s23, 0
      %p185 = por %p183, %p184
      %p186 = scmp.ne.s32.totalorder %s175, %s178
      %p187 = scmp.eq.s32.totalorder %s28, 3
      %p188 = por %p186, %p187
      %p189 = scmp.ne.s32.totalorder %s178, %s179
      %p190 = scmp.eq.s32.totalorder %s28, 0
      %p191 = por %p189, %p190
      %p192 = scmp.ne.s32.totalorder %s178, %s179
      %p193 = scmp.eq.s32.totalorder %s29, 3
      %p194 = por %p192, %p193
      %p196 = scmp.ne.s32.totalorder %s179, %s195
      %p197 = scmp.eq.s32.totalorder %s29, 0
      %p198 = por %p196, %p197
      %s199 = ssub.s32 %s31, %s38
      %p200 = scmp.eq.s32.totalorder %s199, 0
      %s202 = sadd.s32 %s201, 1
      %s203 = scalar_select %p200, %s201, %s202
      %p206 = pneg %p200
      %p207 = scmp.eq.s32.totalorder %s23, 3
      %p208 = por %p206, %p207
      %p209 = scmp.ne.s32.totalorder %s201, %s204
      %p210 = scmp.eq.s32.totalorder %s23, 0
      %p211 = por %p209, %p210
      %p212 = scmp.ne.s32.totalorder %s201, %s204
      %p213 = scmp.eq.s32.totalorder %s28, 3
      %p214 = por %p212, %p213
      %p215 = scmp.ne.s32.totalorder %s204, %s205
      %p216 = scmp.eq.s32.totalorder %s28, 0
      %p217 = por %p215, %p216
      %p218 = scmp.ne.s32.totalorder %s204, %s205
      %p219 = scmp.eq.s32.totalorder %s29, 3
      %p220 = por %p218, %p219
      %p222 = scmp.ne.s32.totalorder %s205, %s221
      %p223 = scmp.eq.s32.totalorder %s29, 0
      %p224 = por %p222, %p223
      %s225 = ssub.s32 %s31, %s38
      %p226 = scmp.eq.s32.totalorder %s225, 0
      %s228 = sadd.s32 %s227, 1
      %s229 = scalar_select %p226, %s227, %s228
      %p232 = pneg %p226
      %p233 = scmp.eq.s32.totalorder %s23, 3
      %p234 = por %p232, %p233
      %p235 = scmp.ne.s32.totalorder %s227, %s230
      %p236 = scmp.eq.s32.totalorder %s23, 0
      %p237 = por %p235, %p236
      %p238 = scmp.ne.s32.totalorder %s227, %s230
      %p239 = scmp.eq.s32.totalorder %s28, 3
      %p240 = por %p238, %p239
      %p241 = scmp.ne.s32.totalorder %s230, %s231
      %p242 = scmp.eq.s32.totalorder %s28, 0
      %p243 = por %p241, %p242
      %p244 = scmp.ne.s32.totalorder %s230, %s231
      %p245 = scmp.eq.s32.totalorder %s29, 3
      %p246 = por %p244, %p245
      %p248 = scmp.ne.s32.totalorder %s231, %s247
      %p249 = scmp.eq.s32.totalorder %s29, 0
      %p250 = por %p248, %p249
      %s251 = ssub.s32 %s31, %s38
      %p252 = scmp.eq.s32.totalorder %s251, 0
      %s254 = sadd.s32 %s253, 1
      %s255 = scalar_select %p252, %s253, %s254
      %p258 = pneg %p252
      %p259 = scmp.eq.s32.totalorder %s23, 3
      %p260 = por %p258, %p259
      %p261 = scmp.ne.s32.totalorder %s253, %s256
      %p262 = scmp.eq.s32.totalorder %s23, 0
      %p263 = por %p261, %p262
      %p264 = scmp.ne.s32.totalorder %s253, %s256
      %p265 = scmp.eq.s32.totalorder %s28, 3
      %p266 = por %p264, %p265
      %p267 = scmp.ne.s32.totalorder %s256, %s257
      %p268 = scmp.eq.s32.totalorder %s28, 0
      %p269 = por %p267, %p268
      %p270 = scmp.ne.s32.totalorder %s256, %s257
      %p271 = scmp.eq.s32.totalorder %s29, 3
      %p272 = por %p270, %p271
      %p274 = scmp.ne.s32.totalorder %s257, %s273
      %p275 = scmp.eq.s32.totalorder %s29, 0
      %p276 = por %p274, %p275
      %s277 = ssub.s32 %s31, %s38
      %p278 = scmp.eq.s32.totalorder %s277, 0
      %s280 = sadd.s32 %s279, 1
      %s281 = scalar_select %p278, %s279, %s280
      %p284 = pneg %p278
      %p285 = scmp.eq.s32.totalorder %s23, 3
      %p286 = por %p284, %p285
      %p287 = scmp.ne.s32.totalorder %s279, %s282
      %p288 = scmp.eq.s32.totalorder %s23, 0
      %p289 = por %p287, %p288
      %p290 = scmp.ne.s32.totalorder %s279, %s282
      %p291 = scmp.eq.s32.totalorder %s28, 3
      %p292 = por %p290, %p291
      %p293 = scmp.ne.s32.totalorder %s282, %s283
      %p294 = scmp.eq.s32.totalorder %s28, 0
      %p295 = por %p293, %p294
      %p296 = scmp.ne.s32.totalorder %s282, %s283
      %p297 = scmp.eq.s32.totalorder %s29, 3
      %p298 = por %p296, %p297
      %p300 = scmp.ne.s32.totalorder %s283, %s299
      %p301 = scmp.eq.s32.totalorder %s29, 0
      %p302 = por %p300, %p301
      %s303 = ssub.s32 %s31, %s38
      %p304 = scmp.eq.s32.totalorder %s303, 0
      %s306 = sadd.s32 %s305, 1
      %s307 = scalar_select %p304, %s305, %s306
      %p310 = pneg %p304
      %p311 = scmp.eq.s32.totalorder %s23, 3
      %p312 = por %p310, %p311
      %p313 = scmp.ne.s32.totalorder %s305, %s308
      %p314 = scmp.eq.s32.totalorder %s23, 0
      %p315 = por %p313, %p314
      %p316 = scmp.ne.s32.totalorder %s305, %s308
      %p317 = scmp.eq.s32.totalorder %s28, 3
      %p318 = por %p316, %p317
      %p319 = scmp.ne.s32.totalorder %s308, %s309
      %p320 = scmp.eq.s32.totalorder %s28, 0
      %p321 = por %p319, %p320
      %p322 = scmp.ne.s32.totalorder %s308, %s309
      %p323 = scmp.eq.s32.totalorder %s29, 3
      %p324 = por %p322, %p323
      %p326 = scmp.ne.s32.totalorder %s309, %s325
      %p327 = scmp.eq.s32.totalorder %s29, 0
      %p328 = por %p326, %p327
      %s329 = ssub.s32 %s31, %s38
      %p330 = scmp.eq.s32.totalorder %s329, 0
      %s332 = sadd.s32 %s331, 1
      %s333 = scalar_select %p330, %s331, %s332
      %p336 = pneg %p330
      %p337 = scmp.eq.s32.totalorder %s23, 3
      %p338 = por %p336, %p337
      %p339 = scmp.ne.s32.totalorder %s331, %s334
      %p340 = scmp.eq.s32.totalorder %s23, 0
      %p341 = por %p339, %p340
      %p342 = scmp.ne.s32.totalorder %s331, %s334
      %p343 = scmp.eq.s32.totalorder %s28, 3
      %p344 = por %p342, %p343
      %p345 = scmp.ne.s32.totalorder %s334, %s335
      %p346 = scmp.eq.s32.totalorder %s28, 0
      %p347 = por %p345, %p346
      %p348 = scmp.ne.s32.totalorder %s334, %s335
      %p349 = scmp.eq.s32.totalorder %s29, 3
      %p350 = por %p348, %p349
      %p352 = scmp.ne.s32.totalorder %s335, %s351
      %p353 = scmp.eq.s32.totalorder %s29, 0
      %p354 = por %p352, %p353
      %s355 = ssub.s32 %s31, %s38
      %p356 = scmp.eq.s32.totalorder %s355, 0
      %s358 = sadd.s32 %s357, 1
      %s359 = scalar_select %p356, %s357, %s358
      %p362 = pneg %p356
      %p363 = scmp.eq.s32.totalorder %s23, 3
      %p364 = por %p362, %p363
      %p365 = scmp.ne.s32.totalorder %s357, %s360
      %p366 = scmp.eq.s32.totalorder %s23, 0
      %p367 = por %p365, %p366
      %p368 = scmp.ne.s32.totalorder %s357, %s360
      %p369 = scmp.eq.s32.totalorder %s28, 3
      %p370 = por %p368, %p369
      %p371 = scmp.ne.s32.totalorder %s360, %s361
      %p372 = scmp.eq.s32.totalorder %s28, 0
      %p373 = por %p371, %p372
      %p374 = scmp.ne.s32.totalorder %s360, %s361
      %p375 = scmp.eq.s32.totalorder %s29, 3
      %p376 = por %p374, %p375
      %p378 = scmp.ne.s32.totalorder %s361, %s377
      %p379 = scmp.eq.s32.totalorder %s29, 0
      %p380 = por %p378, %p379
      %s381 = ssub.s32 %s31, %s38
      %p382 = scmp.eq.s32.totalorder %s381, 0
      %s384 = sadd.s32 %s383, 1
      %s385 = scalar_select %p382, %s383, %s384
      %p388 = pneg %p382
      %p389 = scmp.eq.s32.totalorder %s23, 3
      %p390 = por %p388, %p389
      %p391 = scmp.ne.s32.totalorder %s383, %s386
      %p392 = scmp.eq.s32.totalorder %s23, 0
      %p393 = por %p391, %p392
      %p394 = scmp.ne.s32.totalorder %s383, %s386
      %p395 = scmp.eq.s32.totalorder %s28, 3
      %p396 = por %p394, %p395
      %p397 = scmp.ne.s32.totalorder %s386, %s387
      %p398 = scmp.eq.s32.totalorder %s28, 0
      %p399 = por %p397, %p398
      %p400 = scmp.ne.s32.totalorder %s386, %s387
      %p401 = scmp.eq.s32.totalorder %s29, 3
      %p402 = por %p400, %p401
      %p404 = scmp.ne.s32.totalorder %s387, %s403
      %p405 = scmp.eq.s32.totalorder %s29, 0
      %p406 = por %p404, %p405
      %s407 = ssub.s32 %s30, %s42
      %p408 = scmp.eq.s32.totalorder %s407, 0
      %s410 = sadd.s32 %s409, 1
      %s411 = scalar_select %p408, %s409, %s410
      %p414 = pneg %p408
      %p415 = scmp.eq.s32.totalorder %s23, 3
      %p416 = por %p414, %p415
      %p417 = scmp.ne.s32.totalorder %s409, %s412
      %p418 = scmp.eq.s32.totalorder %s23, 0
      %p419 = por %p417, %p418
      %p420 = scmp.ne.s32.totalorder %s409, %s412
      %p421 = scmp.eq.s32.totalorder %s28, 3
      %p422 = por %p420, %p421
      %p423 = scmp.ne.s32.totalorder %s412, %s413
      %p424 = scmp.eq.s32.totalorder %s28, 0
      %p425 = por %p423, %p424
      %p426 = scmp.ne.s32.totalorder %s412, %s413
      %p427 = scmp.eq.s32.totalorder %s29, 3
      %p428 = por %p426, %p427
      %p430 = scmp.ne.s32.totalorder %s413, %s429
      %p431 = scmp.eq.s32.totalorder %s29, 0
      %p432 = por %p430, %p431
      %p433 = scmp.le.s32.totalorder 1, %s23
      %p434 = scmp.lt.s32.totalorder %s23, 5
      %p435 = pnand %p433, %p434
      %p436 = pneg %p435
      // Predicated region
      $region9: #{tpu_custom_call.1} parent=5 // pred_check
        _
      $region10: #{tpu_custom_call.1} parent=5 // pred_check_branch
        %438 = sbr.rel (%p435) target = $region12
      $region11: #{tpu_custom_call.1} parent=5 // pred_region
        %s439 = ssub.s32 %s23, 1
      $region12: #{tpu_custom_call.1} parent=5 // pred_fallthru
        _
      %p440 = scmp.lt.s32.totalorder %s23, 4
      // Predicated region
      $region13: #{tpu_custom_call.1} parent=5 // pred_check
        %p441 = pneg %p440
      $region14: #{tpu_custom_call.1} parent=5 // pred_check_branch
        %443 = sbr.rel (%p441) target = $region16
      $region15: #{tpu_custom_call.1} parent=5 // pred_region
        // Predicated region
        $region17: #{tpu_custom_call.1} parent=15 // pred_check
          %p444 = pneg %p55
        $region18: #{tpu_custom_call.1} parent=15 // pred_check_branch
          %446 = sbr.rel (%p444) target = $region20
        $region19: #{tpu_custom_call.1} parent=15 // pred_region
          %p447 = scmp.lt.s32.totalorder %s30, 1
          %s448 = scalar_select %p447, %s30, 1
          %s449 = smul.addr %s448, 32
          %s450 = smul.addr %s449, 8
          %s451 = scalar_lea.vmem %s0, %s450
        $region20: #{tpu_custom_call.1} parent=15 // pred_fallthru
          _
        // Predicated region
        $region21: #{tpu_custom_call.1} parent=15 // pred_check
          %p452 = pneg %p81
        $region22: #{tpu_custom_call.1} parent=15 // pred_check_branch
          %454 = sbr.rel (%p452) target = $region24
        $region23: #{tpu_custom_call.1} parent=15 // pred_region
          %p455 = scmp.lt.s32.totalorder %s31, 1
          %s456 = scalar_select %p455, %s31, 1
          %s457 = scalar_lea.vmem %s1, %s456
        $region24: #{tpu_custom_call.1} parent=15 // pred_fallthru
          _
        // Predicated region
        $region25: #{tpu_custom_call.1} parent=15 // pred_check
          %p458 = pneg %p107
        $region26: #{tpu_custom_call.1} parent=15 // pred_check_branch
          %460 = sbr.rel (%p458) target = $region28
        $region27: #{tpu_custom_call.1} parent=15 // pred_region
          %p461 = scmp.lt.s32.totalorder %s31, 1
          %s462 = scalar_select %p461, %s31, 1
          %s463 = scalar_lea.vmem %s2, %s462
        $region28: #{tpu_custom_call.1} parent=15 // pred_fallthru
          _
        // Predicated region
        $region29: #{tpu_custom_call.1} parent=15 // pred_check
          %p464 = pneg %p133
        $region30: #{tpu_custom_call.1} parent=15 // pred_check_branch
          %466 = sbr.rel (%p464) target = $region32
        $region31: #{tpu_custom_call.1} parent=15 // pred_region
          %p467 = scmp.lt.s32.totalorder %s31, 1
          %s468 = scalar_select %p467, %s31, 1
          %s469 = smul.addr %s468, 4
          %s470 = smul.addr %s469, 4
          %s471 = scalar_lea.vmem %s3, %s470
        $region32: #{tpu_custom_call.1} parent=15 // pred_fallthru
          _
        // Predicated region
        $region33: #{tpu_custom_call.1} parent=15 // pred_check
          %p472 = pneg %p159
        $region34: #{tpu_custom_call.1} parent=15 // pred_check_branch
          %474 = sbr.rel (%p472) target = $region36
        $region35: #{tpu_custom_call.1} parent=15 // pred_region
          %p475 = scmp.lt.s32.totalorder %s31, 1
          %s476 = scalar_select %p475, %s31, 1
          %s477 = scalar_lea.vmem %s4, %s476
        $region36: #{tpu_custom_call.1} parent=15 // pred_fallthru
          _
        // Predicated region
        $region37: #{tpu_custom_call.1} parent=15 // pred_check
          %p478 = pneg %p185
        $region38: #{tpu_custom_call.1} parent=15 // pred_check_branch
          %480 = sbr.rel (%p478) target = $region40
        $region39: #{tpu_custom_call.1} parent=15 // pred_region
          %s481 = sand.u32 %s175, 1
          %s482 = scalar_lea.sflag [#allocation3], %s481
          %s483 = sand.u32 %s175, 1
          %s484 = smul.addr %s483, 512
          %s485 = scalar_lea.vmem [#allocation2], %s484
          %s487 = ssub.s32 8192, 8192
          %488 = vsyncadd %s482, %s487
          %s489 = smul.addr %s31, 128
          %s490 = smul.addr %s489, 64
          %s491 = scalar_lea.hbm %s5, %s490
          %s492 = sshll.u32 %s485, 4
          %s493 = int_to_ptr.vmem [resolvable:$true] %s492
          %498 = dma.hbm_to_vmem [thread:$0]  %s491, 8192, %s493, %s482, 128, 128, 8
        $region40: #{tpu_custom_call.1} parent=15 // pred_fallthru
          _
        // Predicated region
        $region41: #{tpu_custom_call.1} parent=15 // pred_check
          %p499 = pneg %p211
        $region42: #{tpu_custom_call.1} parent=15 // pred_check_branch
          %501 = sbr.rel (%p499) target = $region44
        $region43: #{tpu_custom_call.1} parent=15 // pred_region
          %p502 = scmp.lt.s32.totalorder %s31, 1
          %s503 = scalar_select %p502, %s31, 1
          %s504 = smul.addr %s503, 4
          %s505 = smul.addr %s504, 4
          %s506 = scalar_lea.vmem %s6, %s505
        $region44: #{tpu_custom_call.1} parent=15 // pred_fallthru
          _
        // Predicated region
        $region45: #{tpu_custom_call.1} parent=15 // pred_check
          %p507 = pneg %p237
        $region46: #{tpu_custom_call.1} parent=15 // pred_check_branch
          %509 = sbr.rel (%p507) target = $region48
        $region47: #{tpu_custom_call.1} parent=15 // pred_region
          %p510 = scmp.lt.s32.totalorder %s31, 1
          %s511 = scalar_select %p510, %s31, 1
          %s512 = scalar_lea.vmem %s7, %s511
        $region48: #{tpu_custom_call.1} parent=15 // pred_fallthru
          _
        // Predicated region
        $region49: #{tpu_custom_call.1} parent=15 // pred_check
          %p513 = pneg %p263
        $region50: #{tpu_custom_call.1} parent=15 // pred_check_branch
          %515 = sbr.rel (%p513) target = $region52
        $region51: #{tpu_custom_call.1} parent=15 // pred_region
          %p516 = scmp.lt.s32.totalorder %s31, 1
          %s517 = scalar_select %p516, %s31, 1
          %s518 = scalar_lea.vmem %s8, %s517
        $region52: #{tpu_custom_call.1} parent=15 // pred_fallthru
          _
        // Predicated region
        $region53: #{tpu_custom_call.1} parent=15 // pred_check
          %p519 = pneg %p289
        $region54: #{tpu_custom_call.1} parent=15 // pred_check_branch
          %521 = sbr.rel (%p519) target = $region56
        $region55: #{tpu_custom_call.1} parent=15 // pred_region
          %p522 = scmp.lt.s32.totalorder %s31, 1
          %s523 = scalar_select %p522, %s31, 1
          %s524 = scalar_lea.vmem %s9, %s523
        $region56: #{tpu_custom_call.1} parent=15 // pred_fallthru
          _
        // Predicated region
        $region57: #{tpu_custom_call.1} parent=15 // pred_check
          %p525 = pneg %p315
        $region58: #{tpu_custom_call.1} parent=15 // pred_check_branch
          %527 = sbr.rel (%p525) target = $region60
        $region59: #{tpu_custom_call.1} parent=15 // pred_region
          %p528 = scmp.lt.s32.totalorder %s31, 1
          %s529 = scalar_select %p528, %s31, 1
          %s530 = smul.addr %s529, 4
          %s531 = smul.addr %s530, 4
          %s532 = scalar_lea.vmem %s10, %s531
        $region60: #{tpu_custom_call.1} parent=15 // pred_fallthru
          _
        // Predicated region
        $region61: #{tpu_custom_call.1} parent=15 // pred_check
          %p533 = pneg %p341
        $region62: #{tpu_custom_call.1} parent=15 // pred_check_branch
          %535 = sbr.rel (%p533) target = $region64
        $region63: #{tpu_custom_call.1} parent=15 // pred_region
          %p536 = scmp.lt.s32.totalorder %s31, 1
          %s537 = scalar_select %p536, %s31, 1
          %s538 = scalar_lea.vmem %s11, %s537
        $region64: #{tpu_custom_call.1} parent=15 // pred_fallthru
          _
        // Predicated region
        $region65: #{tpu_custom_call.1} parent=15 // pred_check
          %p539 = pneg %p367
        $region66: #{tpu_custom_call.1} parent=15 // pred_check_branch
          %541 = sbr.rel (%p539) target = $region68
        $region67: #{tpu_custom_call.1} parent=15 // pred_region
          %p542 = scmp.lt.s32.totalorder %s31, 1
          %s543 = scalar_select %p542, %s31, 1
          %s544 = smul.addr %s543, 16
          %s545 = smul.addr %s544, 4
          %s546 = scalar_lea.vmem %s12, %s545
        $region68: #{tpu_custom_call.1} parent=15 // pred_fallthru
          _
        // Predicated region
        $region69: #{tpu_custom_call.1} parent=15 // pred_check
          %p547 = pneg %p393
        $region70: #{tpu_custom_call.1} parent=15 // pred_check_branch
          %549 = sbr.rel (%p547) target = $region72
        $region71: #{tpu_custom_call.1} parent=15 // pred_region
          %p550 = scmp.lt.s32.totalorder %s31, 1
          %s551 = scalar_select %p550, %s31, 1
          %s552 = scalar_lea.vmem %s13, %s551
        $region72: #{tpu_custom_call.1} parent=15 // pred_fallthru
          _
      $region16: #{tpu_custom_call.1} parent=5 // pred_fallthru
        _
      %p553 = scmp.le.s32.totalorder 1, %s23
      %p554 = scmp.lt.s32.totalorder %s23, 5
      %p555 = pnand %p553, %p554
      %p556 = pneg %p555
      // Predicated region
      $region73: #{tpu_custom_call.1} parent=5 // pred_check
        _
      $region74: #{tpu_custom_call.1} parent=5 // pred_check_branch
        %558 = sbr.rel (%p555) target = $region76
      $region75: #{tpu_custom_call.1} parent=5 // pred_region
        %s559 = ssub.s32 %s23, 1
        %s560 = sand.u32 %s178, 1
        %s561 = scalar_lea.sflag [#allocation3], %s560
        %s562 = sand.u32 %s178, 1
        %s563 = smul.addr %s562, 512
        %s564 = scalar_lea.vmem [#allocation2], %s563
        // Predicated region
        $region77: #{tpu_custom_call.1} parent=75 // pred_check
          %p565 = pneg %p191
        $region78: #{tpu_custom_call.1} parent=75 // pred_check_branch
          %567 = sbr.rel (%p565) target = $region80
        $region79: #{tpu_custom_call.1} parent=75 // pred_region
          %568 = dma.done %s561, 8192
        $region80: #{tpu_custom_call.1} parent=75 // pred_fallthru
          _
        %p569 = scmp.lt.s32.totalorder %s32, 1
        %s570 = scalar_select %p569, %s32, 1
        %s571 = smul.addr %s570, 32
        %s572 = smul.addr %s571, 8
        %s573 = scalar_lea.vmem %s0, %s572
        %p574 = pneg %p61
        %p575 = pneg %p58
        %p576 = scmp.lt.s32.totalorder %s33, 1
        %s577 = scalar_select %p576, %s33, 1
        %s578 = scalar_lea.vmem %s1, %s577
        %p579 = pneg %p87
        %p580 = pneg %p84
        %p581 = scmp.lt.s32.totalorder %s33, 1
        %s582 = scalar_select %p581, %s33, 1
        %s583 = scalar_lea.vmem %s2, %s582
        %p584 = pneg %p113
        %p585 = pneg %p110
        %p586 = scmp.lt.s32.totalorder %s33, 1
        %s587 = scalar_select %p586, %s33, 1
        %s588 = smul.addr %s587, 4
        %s589 = smul.addr %s588, 4
        %s590 = scalar_lea.vmem %s3, %s589
        %p591 = pneg %p139
        %p592 = pneg %p136
        %p593 = scmp.lt.s32.totalorder %s33, 1
        %s594 = scalar_select %p593, %s33, 1
        %s595 = scalar_lea.vmem %s4, %s594
        %p596 = pneg %p165
        %p597 = pneg %p162
        %s598 = sand.u32 %s178, 1
        %s599 = scalar_lea.sflag [#allocation3], %s598
        %s600 = sand.u32 %s178, 1
        %s601 = smul.addr %s600, 512
        %s602 = scalar_lea.vmem [#allocation2], %s601
        %p603 = pneg %p191
        %p604 = pneg %p188
        %p605 = scmp.lt.s32.totalorder %s33, 1
        %s606 = scalar_select %p605, %s33, 1
        %s607 = smul.addr %s606, 4
        %s608 = smul.addr %s607, 4
        %s609 = scalar_lea.vmem %s6, %s608
        %p610 = pneg %p217
        %p611 = pneg %p214
        %p612 = scmp.lt.s32.totalorder %s33, 1
        %s613 = scalar_select %p612, %s33, 1
        %s614 = scalar_lea.vmem %s7, %s613
        %p615 = pneg %p243
        %p616 = pneg %p240
        %p617 = scmp.lt.s32.totalorder %s33, 1
        %s618 = scalar_select %p617, %s33, 1
        %s619 = scalar_lea.vmem %s8, %s618
        %p620 = pneg %p269
        %p621 = pneg %p266
        %p622 = scmp.lt.s32.totalorder %s33, 1
        %s623 = scalar_select %p622, %s33, 1
        %s624 = scalar_lea.vmem %s9, %s623
        %p625 = pneg %p295
        %p626 = pneg %p292
        %p627 = scmp.lt.s32.totalorder %s33, 1
        %s628 = scalar_select %p627, %s33, 1
        %s629 = smul.addr %s628, 4
        %s630 = smul.addr %s629, 4
        %s631 = scalar_lea.vmem %s10, %s630
        %p632 = pneg %p321
        %p633 = pneg %p318
        %p634 = scmp.lt.s32.totalorder %s33, 1
        %s635 = scalar_select %p634, %s33, 1
        %s636 = scalar_lea.vmem %s11, %s635
        %p637 = pneg %p347
        %p638 = pneg %p344
        %p639 = scmp.lt.s32.totalorder %s33, 1
        %s640 = scalar_select %p639, %s33, 1
        %s641 = smul.addr %s640, 16
        %s642 = smul.addr %s641, 4
        %s643 = scalar_lea.vmem %s12, %s642
        %p644 = pneg %p373
        %p645 = pneg %p370
        %p646 = scmp.lt.s32.totalorder %s33, 1
        %s647 = scalar_select %p646, %s33, 1
        %s648 = scalar_lea.vmem %s13, %s647
        %p649 = pneg %p399
        %p650 = pneg %p396
        %p651 = pneg %p425
        %p652 = pneg %p422
        %p653 = scmp.lt.s32.totalorder %s32, 1
        %s654 = scalar_select %p653, %s32, 1
        %s655 = smul.addr %s654, 32
        %s656 = smul.addr %s655, 8
        %s657 = scalar_lea.vmem %s14, %s656
        %p658 = scmp.lt.s32.totalorder %s32, 1
        %s659 = scalar_select %p658, %s32, 1
        %s660 = smul.addr %s659, 32
        %s661 = smul.addr %s660, 8
        %s662 = scalar_lea.vmem %s0, %s661
        %p663 = scmp.lt.s32.totalorder %s33, 1
        %s664 = scalar_select %p663, %s33, 1
        %s665 = scalar_lea.vmem %s1, %s664
        %p666 = scmp.lt.s32.totalorder %s33, 1
        %s667 = scalar_select %p666, %s33, 1
        %s668 = scalar_lea.vmem %s2, %s667
        %p669 = scmp.lt.s32.totalorder %s33, 1
        %s670 = scalar_select %p669, %s33, 1
        %s671 = smul.addr %s670, 4
        %s672 = smul.addr %s671, 4
        %s673 = scalar_lea.vmem %s3, %s672
        %p674 = scmp.lt.s32.totalorder %s33, 1
        %s675 = scalar_select %p674, %s33, 1
        %s676 = scalar_lea.vmem %s4, %s675
        %p677 = scmp.lt.s32.totalorder %s33, 1
        %s678 = scalar_select %p677, %s33, 1
        %s679 = smul.addr %s678, 4
        %s680 = smul.addr %s679, 4
        %s681 = scalar_lea.vmem %s6, %s680
        %p682 = scmp.lt.s32.totalorder %s33, 1
        %s683 = scalar_select %p682, %s33, 1
        %s684 = scalar_lea.vmem %s7, %s683
        %p685 = scmp.lt.s32.totalorder %s33, 1
        %s686 = scalar_select %p685, %s33, 1
        %s687 = scalar_lea.vmem %s8, %s686
        %p688 = scmp.lt.s32.totalorder %s33, 1
        %s689 = scalar_select %p688, %s33, 1
        %s690 = scalar_lea.vmem %s9, %s689
        %p691 = scmp.lt.s32.totalorder %s33, 1
        %s692 = scalar_select %p691, %s33, 1
        %s693 = smul.addr %s692, 4
        %s694 = smul.addr %s693, 4
        %s695 = scalar_lea.vmem %s10, %s694
        %p696 = scmp.lt.s32.totalorder %s33, 1
        %s697 = scalar_select %p696, %s33, 1
        %s698 = scalar_lea.vmem %s11, %s697
        %p699 = scmp.lt.s32.totalorder %s33, 1
        %s700 = scalar_select %p699, %s33, 1
        %s701 = smul.addr %s700, 16
        %s702 = smul.addr %s701, 4
        %s703 = scalar_lea.vmem %s12, %s702
        %p704 = scmp.lt.s32.totalorder %s33, 1
        %s705 = scalar_select %p704, %s33, 1
        %s706 = scalar_lea.vmem %s13, %s705
        %p707 = scmp.lt.s32.totalorder %s32, 1
        %s708 = scalar_select %p707, %s32, 1
        %s709 = smul.addr %s708, 32
        %s710 = smul.addr %s709, 8
        %s711 = scalar_lea.vmem %s14, %s710
        %p713 = scmp.eq.s32.totalorder %s33, 0
        // Predicated region
        $region81: #{tpu_custom_call.1} parent=75 // pred_check
          %p714 = pneg %p713
        $region82: #{tpu_custom_call.1} parent=75 // pred_check_branch
          %716 = sbr.rel (%p714) target = $region84
        $region83: #{tpu_custom_call.1} parent=75 // pred_region
          %v717 = vld [vmem:[%s662] sm:$0xff]
          %v718 = vld [vmem:[%s662 + $0x8] sm:$0xff]
          %v719 = vld [vmem:[%s662 + $0x10] sm:$0xff]
          %v720 = vld [vmem:[%s662 + $0x18] sm:$0xff]
          %v721 = vld [vmem:[%s662 + $0x20] sm:$0xff]
          %v722 = vld [vmem:[%s662 + $0x28] sm:$0xff]
          %v723 = vld [vmem:[%s662 + $0x30] sm:$0xff]
          %v724 = vld [vmem:[%s662 + $0x38] sm:$0xff]
          %v725 = vld [vmem:[%s662 + $0x40] sm:$0xff]
          %v726 = vld [vmem:[%s662 + $0x48] sm:$0xff]
          %v727 = vld [vmem:[%s662 + $0x50] sm:$0xff]
          %v728 = vld [vmem:[%s662 + $0x58] sm:$0xff]
          %v729 = vld [vmem:[%s662 + $0x60] sm:$0xff]
          %v730 = vld [vmem:[%s662 + $0x68] sm:$0xff]
          %v731 = vld [vmem:[%s662 + $0x70] sm:$0xff]
          %v732 = vld [vmem:[%s662 + $0x78] sm:$0xff]
          %v733 = vld [vmem:[%s662 + $0x80] sm:$0xff]
          %v734 = vld [vmem:[%s662 + $0x88] sm:$0xff]
          %v735 = vld [vmem:[%s662 + $0x90] sm:$0xff]
          %v736 = vld [vmem:[%s662 + $0x98] sm:$0xff]
          %v737 = vld [vmem:[%s662 + $0xa0] sm:$0xff]
          %v738 = vld [vmem:[%s662 + $0xa8] sm:$0xff]
          %v739 = vld [vmem:[%s662 + $0xb0] sm:$0xff]
          %v740 = vld [vmem:[%s662 + $0xb8] sm:$0xff]
          %v741 = vld [vmem:[%s662 + $0xc0] sm:$0xff]
          %v742 = vld [vmem:[%s662 + $0xc8] sm:$0xff]
          %v743 = vld [vmem:[%s662 + $0xd0] sm:$0xff]
          %v744 = vld [vmem:[%s662 + $0xd8] sm:$0xff]
          %v745 = vld [vmem:[%s662 + $0xe0] sm:$0xff]
          %v746 = vld [vmem:[%s662 + $0xe8] sm:$0xff]
          %v747 = vld [vmem:[%s662 + $0xf0] sm:$0xff]
          %v748 = vld [vmem:[%s662 + $0xf8] sm:$0xff]
          %vm749 = vcmask 261120
          %750 = vst.msk [vmem:[%s711] sm:$0xff] %vm749, %v717
          %751 = vst.msk [vmem:[%s711 + $0x8] sm:$0xff] %vm749, %v718
          %752 = vst.msk [vmem:[%s711 + $0x10] sm:$0xff] %vm749, %v719
          %753 = vst.msk [vmem:[%s711 + $0x18] sm:$0xff] %vm749, %v720
          %754 = vst.msk [vmem:[%s711 + $0x20] sm:$0xff] %vm749, %v721
          %755 = vst.msk [vmem:[%s711 + $0x28] sm:$0xff] %vm749, %v722
          %756 = vst.msk [vmem:[%s711 + $0x30] sm:$0xff] %vm749, %v723
          %757 = vst.msk [vmem:[%s711 + $0x38] sm:$0xff] %vm749, %v724
          %758 = vst.msk [vmem:[%s711 + $0x40] sm:$0xff] %vm749, %v725
          %759 = vst.msk [vmem:[%s711 + $0x48] sm:$0xff] %vm749, %v726
          %760 = vst.msk [vmem:[%s711 + $0x50] sm:$0xff] %vm749, %v727
          %761 = vst.msk [vmem:[%s711 + $0x58] sm:$0xff] %vm749, %v728
          %762 = vst.msk [vmem:[%s711 + $0x60] sm:$0xff] %vm749, %v729
          %763 = vst.msk [vmem:[%s711 + $0x68] sm:$0xff] %vm749, %v730
          %764 = vst.msk [vmem:[%s711 + $0x70] sm:$0xff] %vm749, %v731
          %765 = vst.msk [vmem:[%s711 + $0x78] sm:$0xff] %vm749, %v732
          %766 = vst.msk [vmem:[%s711 + $0x80] sm:$0xff] %vm749, %v733
          %767 = vst.msk [vmem:[%s711 + $0x88] sm:$0xff] %vm749, %v734
          %768 = vst.msk [vmem:[%s711 + $0x90] sm:$0xff] %vm749, %v735
          %769 = vst.msk [vmem:[%s711 + $0x98] sm:$0xff] %vm749, %v736
          %770 = vst.msk [vmem:[%s711 + $0xa0] sm:$0xff] %vm749, %v737
          %771 = vst.msk [vmem:[%s711 + $0xa8] sm:$0xff] %vm749, %v738
          %772 = vst.msk [vmem:[%s711 + $0xb0] sm:$0xff] %vm749, %v739
          %773 = vst.msk [vmem:[%s711 + $0xb8] sm:$0xff] %vm749, %v740
          %774 = vst.msk [vmem:[%s711 + $0xc0] sm:$0xff] %vm749, %v741
          %775 = vst.msk [vmem:[%s711 + $0xc8] sm:$0xff] %vm749, %v742
          %776 = vst.msk [vmem:[%s711 + $0xd0] sm:$0xff] %vm749, %v743
          %777 = vst.msk [vmem:[%s711 + $0xd8] sm:$0xff] %vm749, %v744
          %778 = vst.msk [vmem:[%s711 + $0xe0] sm:$0xff] %vm749, %v745
          %779 = vst.msk [vmem:[%s711 + $0xe8] sm:$0xff] %vm749, %v746
          %780 = vst.msk [vmem:[%s711 + $0xf0] sm:$0xff] %vm749, %v747
          %781 = vst.msk [vmem:[%s711 + $0xf8] sm:$0xff] %vm749, %v748
        $region84: #{tpu_custom_call.1} parent=75 // pred_fallthru
          _
        %v782 = vld [vmem:[%s711] sm:$0xff]
        %v783 = vld [vmem:[%s711 + $0x8] sm:$0xff]
        %v784 = vld [vmem:[%s711 + $0x10] sm:$0xff]
        %v785 = vld [vmem:[%s711 + $0x18] sm:$0xff]
        %v786 = vld [vmem:[%s711 + $0x20] sm:$0xff]
        %v787 = vld [vmem:[%s711 + $0x28] sm:$0xff]
        %v788 = vld [vmem:[%s711 + $0x30] sm:$0xff]
        %v789 = vld [vmem:[%s711 + $0x38] sm:$0xff]
        %v790 = vld [vmem:[%s711 + $0x40] sm:$0xff]
        %v791 = vld [vmem:[%s711 + $0x48] sm:$0xff]
        %v792 = vld [vmem:[%s711 + $0x50] sm:$0xff]
        %v793 = vld [vmem:[%s711 + $0x58] sm:$0xff]
        %v794 = vld [vmem:[%s711 + $0x60] sm:$0xff]
        %v795 = vld [vmem:[%s711 + $0x68] sm:$0xff]
        %v796 = vld [vmem:[%s711 + $0x70] sm:$0xff]
        %v797 = vld [vmem:[%s711 + $0x78] sm:$0xff]
        %v798 = vld [vmem:[%s711 + $0x80] sm:$0xff]
        %v799 = vld [vmem:[%s711 + $0x88] sm:$0xff]
        %v800 = vld [vmem:[%s711 + $0x90] sm:$0xff]
        %v801 = vld [vmem:[%s711 + $0x98] sm:$0xff]
        %v802 = vld [vmem:[%s711 + $0xa0] sm:$0xff]
        %v803 = vld [vmem:[%s711 + $0xa8] sm:$0xff]
        %v804 = vld [vmem:[%s711 + $0xb0] sm:$0xff]
        %v805 = vld [vmem:[%s711 + $0xb8] sm:$0xff]
        %v806 = vld [vmem:[%s711 + $0xc0] sm:$0xff]
        %v807 = vld [vmem:[%s711 + $0xc8] sm:$0xff]
        %v808 = vld [vmem:[%s711 + $0xd0] sm:$0xff]
        %v809 = vld [vmem:[%s711 + $0xd8] sm:$0xff]
        %v810 = vld [vmem:[%s711 + $0xe0] sm:$0xff]
        %v811 = vld [vmem:[%s711 + $0xe8] sm:$0xff]
        %v812 = vld [vmem:[%s711 + $0xf0] sm:$0xff]
        %v813 = vld [vmem:[%s711 + $0xf8] sm:$0xff]
        %v814 = vld [vmem:[%s665] sm:$0x1]
        %v815 = vld [vmem:[%s668] sm:$0x1]
        %vm816 = vcmask 261120
        %v817 = vsel %vm816, %v782, 0.0
        %818 = vadd.xlane.f32.xlu0 %v817
        %v819 = vpop.xlane.xlu0 %818
        %v820 = vsel %vm816, %v783, 0.0
        %821 = vadd.xlane.f32.xlu0 %v820
        %v822 = vpop.xlane.xlu0 %821
        %v823 = vsel %vm816, %v784, 0.0
        %824 = vadd.xlane.f32.xlu0 %v823
        %v825 = vpop.xlane.xlu0 %824
        %v826 = vsel %vm816, %v785, 0.0
        %827 = vadd.xlane.f32.xlu0 %v826
        %v828 = vpop.xlane.xlu0 %827
        %v829 = vsel %vm816, %v786, 0.0
        %830 = vadd.xlane.f32.xlu0 %v829
        %v831 = vpop.xlane.xlu0 %830
        %v832 = vsel %vm816, %v787, 0.0
        %833 = vadd.xlane.f32.xlu0 %v832
        %v834 = vpop.xlane.xlu0 %833
        %v835 = vsel %vm816, %v788, 0.0
        %836 = vadd.xlane.f32.xlu0 %v835
        %v837 = vpop.xlane.xlu0 %836
        %v838 = vsel %vm816, %v789, 0.0
        %839 = vadd.xlane.f32.xlu0 %v838
        %v840 = vpop.xlane.xlu0 %839
        %v841 = vsel %vm816, %v790, 0.0
        %842 = vadd.xlane.f32.xlu0 %v841
        %v843 = vpop.xlane.xlu0 %842
        %v844 = vsel %vm816, %v791, 0.0
        %845 = vadd.xlane.f32.xlu0 %v844
        %v846 = vpop.xlane.xlu0 %845
        %v847 = vsel %vm816, %v792, 0.0
        %848 = vadd.xlane.f32.xlu0 %v847
        %v849 = vpop.xlane.xlu0 %848
        %v850 = vsel %vm816, %v793, 0.0
        %851 = vadd.xlane.f32.xlu0 %v850
        %v852 = vpop.xlane.xlu0 %851
        %v853 = vsel %vm816, %v794, 0.0
        %854 = vadd.xlane.f32.xlu0 %v853
        %v855 = vpop.xlane.xlu0 %854
        %v856 = vsel %vm816, %v795, 0.0
        %857 = vadd.xlane.f32.xlu0 %v856
        %v858 = vpop.xlane.xlu0 %857
        %v859 = vsel %vm816, %v796, 0.0
        %860 = vadd.xlane.f32.xlu0 %v859
        %v861 = vpop.xlane.xlu0 %860
        %v862 = vsel %vm816, %v797, 0.0
        %863 = vadd.xlane.f32.xlu0 %v862
        %v864 = vpop.xlane.xlu0 %863
        %v865 = vsel %vm816, %v798, 0.0
        %866 = vadd.xlane.f32.xlu0 %v865
        %v867 = vpop.xlane.xlu0 %866
        %v868 = vsel %vm816, %v799, 0.0
        %869 = vadd.xlane.f32.xlu0 %v868
        %v870 = vpop.xlane.xlu0 %869
        %v871 = vsel %vm816, %v800, 0.0
        %872 = vadd.xlane.f32.xlu0 %v871
        %v873 = vpop.xlane.xlu0 %872
        %v874 = vsel %vm816, %v801, 0.0
        %875 = vadd.xlane.f32.xlu0 %v874
        %v876 = vpop.xlane.xlu0 %875
        %v877 = vsel %vm816, %v802, 0.0
        %878 = vadd.xlane.f32.xlu0 %v877
        %v879 = vpop.xlane.xlu0 %878
        %v880 = vsel %vm816, %v803, 0.0
        %881 = vadd.xlane.f32.xlu0 %v880
        %v882 = vpop.xlane.xlu0 %881
        %v883 = vsel %vm816, %v804, 0.0
        %884 = vadd.xlane.f32.xlu0 %v883
        %v885 = vpop.xlane.xlu0 %884
        %v886 = vsel %vm816, %v805, 0.0
        %887 = vadd.xlane.f32.xlu0 %v886
        %v888 = vpop.xlane.xlu0 %887
        %v889 = vsel %vm816, %v806, 0.0
        %890 = vadd.xlane.f32.xlu0 %v889
        %v891 = vpop.xlane.xlu0 %890
        %v892 = vsel %vm816, %v807, 0.0
        %893 = vadd.xlane.f32.xlu0 %v892
        %v894 = vpop.xlane.xlu0 %893
        %v895 = vsel %vm816, %v808, 0.0
        %896 = vadd.xlane.f32.xlu0 %v895
        %v897 = vpop.xlane.xlu0 %896
        %v898 = vsel %vm816, %v809, 0.0
        %899 = vadd.xlane.f32.xlu0 %v898
        %v900 = vpop.xlane.xlu0 %899
        %v901 = vsel %vm816, %v810, 0.0
        %902 = vadd.xlane.f32.xlu0 %v901
        %v903 = vpop.xlane.xlu0 %902
        %v904 = vsel %vm816, %v811, 0.0
        %905 = vadd.xlane.f32.xlu0 %v904
        %v906 = vpop.xlane.xlu0 %905
        %v907 = vsel %vm816, %v812, 0.0
        %908 = vadd.xlane.f32.xlu0 %v907
        %v909 = vpop.xlane.xlu0 %908
        %v910 = vsel %vm816, %v813, 0.0
        %911 = vadd.xlane.f32.xlu0 %v910
        %v912 = vpop.xlane.xlu0 %911
        %v913 = vrcp.pop 32.0
        %v914 = vmul.f32 %v819, %v913
        %v915 = vmul.f32 %v822, %v913
        %v916 = vmul.f32 %v825, %v913
        %v917 = vmul.f32 %v828, %v913
        %v918 = vmul.f32 %v831, %v913
        %v919 = vmul.f32 %v834, %v913
        %v920 = vmul.f32 %v837, %v913
        %v921 = vmul.f32 %v840, %v913
        %v922 = vmul.f32 %v843, %v913
        %v923 = vmul.f32 %v846, %v913
        %v924 = vmul.f32 %v849, %v913
        %v925 = vmul.f32 %v852, %v913
        %v926 = vmul.f32 %v855, %v913
        %v927 = vmul.f32 %v858, %v913
        %v928 = vmul.f32 %v861, %v913
        %v929 = vmul.f32 %v864, %v913
        %v930 = vmul.f32 %v867, %v913
        %v931 = vmul.f32 %v870, %v913
        %v932 = vmul.f32 %v873, %v913
        %v933 = vmul.f32 %v876, %v913
        %v934 = vmul.f32 %v879, %v913
        %v935 = vmul.f32 %v882, %v913
        %v936 = vmul.f32 %v885, %v913
        %v937 = vmul.f32 %v888, %v913
        %v938 = vmul.f32 %v891, %v913
        %v939 = vmul.f32 %v894, %v913
        %v940 = vmul.f32 %v897, %v913
        %v941 = vmul.f32 %v900, %v913
        %v942 = vmul.f32 %v903, %v913
        %v943 = vmul.f32 %v906, %v913
        %v944 = vmul.f32 %v909, %v913
        %v945 = vmul.f32 %v912, %v913
        %v946 = vsub.f32 %v782, %v914
        %v947 = vsub.f32 %v783, %v915
        %v948 = vsub.f32 %v784, %v916
        %v949 = vsub.f32 %v785, %v917
        %v950 = vsub.f32 %v786, %v918
        %v951 = vsub.f32 %v787, %v919
        %v952 = vsub.f32 %v788, %v920
        %v953 = vsub.f32 %v789, %v921
        %v954 = vsub.f32 %v790, %v922
        %v955 = vsub.f32 %v791, %v923
        %v956 = vsub.f32 %v792, %v924
        %v957 = vsub.f32 %v793, %v925
        %v958 = vsub.f32 %v794, %v926
        %v959 = vsub.f32 %v795, %v927
        %v960 = vsub.f32 %v796, %v928
        %v961 = vsub.f32 %v797, %v929
        %v962 = vsub.f32 %v798, %v930
        %v963 = vsub.f32 %v799, %v931
        %v964 = vsub.f32 %v800, %v932
        %v965 = vsub.f32 %v801, %v933
        %v966 = vsub.f32 %v802, %v934
        %v967 = vsub.f32 %v803, %v935
        %v968 = vsub.f32 %v804, %v936
        %v969 = vsub.f32 %v805, %v937
        %v970 = vsub.f32 %v806, %v938
        %v971 = vsub.f32 %v807, %v939
        %v972 = vsub.f32 %v808, %v940
        %v973 = vsub.f32 %v809, %v941
        %v974 = vsub.f32 %v810, %v942
        %v975 = vsub.f32 %v811, %v943
        %v976 = vsub.f32 %v812, %v944
        %v977 = vsub.f32 %v813, %v945
        %v978 = vmul.f32 %v946, %v946
        %v979 = vmul.f32 %v947, %v947
        %v980 = vmul.f32 %v948, %v948
        %v981 = vmul.f32 %v949, %v949
        %v982 = vmul.f32 %v950, %v950
        %v983 = vmul.f32 %v951, %v951
        %v984 = vmul.f32 %v952, %v952
        %v985 = vmul.f32 %v953, %v953
        %v986 = vmul.f32 %v954, %v954
        %v987 = vmul.f32 %v955, %v955
        %v988 = vmul.f32 %v956, %v956
        %v989 = vmul.f32 %v957, %v957
        %v990 = vmul.f32 %v958, %v958
        %v991 = vmul.f32 %v959, %v959
        %v992 = vmul.f32 %v960, %v960
        %v993 = vmul.f32 %v961, %v961
        %v994 = vmul.f32 %v962, %v962
        %v995 = vmul.f32 %v963, %v963
        %v996 = vmul.f32 %v964, %v964
        %v997 = vmul.f32 %v965, %v965
        %v998 = vmul.f32 %v966, %v966
        %v999 = vmul.f32 %v967, %v967
        %v1000 = vmul.f32 %v968, %v968
        %v1001 = vmul.f32 %v969, %v969
        %v1002 = vmul.f32 %v970, %v970
        %v1003 = vmul.f32 %v971, %v971
        %v1004 = vmul.f32 %v972, %v972
        %v1005 = vmul.f32 %v973, %v973
        %v1006 = vmul.f32 %v974, %v974
        %v1007 = vmul.f32 %v975, %v975
        %v1008 = vmul.f32 %v976, %v976
        %v1009 = vmul.f32 %v977, %v977
        %v1010 = vsel %vm816, %v978, 0.0
        %1011 = vadd.xlane.f32.xlu0 %v1010
        %v1012 = vpop.xlane.xlu0 %1011
        %v1013 = vsel %vm816, %v979, 0.0
        %1014 = vadd.xlane.f32.xlu0 %v1013
        %v1015 = vpop.xlane.xlu0 %1014
        %v1016 = vsel %vm816, %v980, 0.0
        %1017 = vadd.xlane.f32.xlu0 %v1016
        %v1018 = vpop.xlane.xlu0 %1017
        %v1019 = vsel %vm816, %v981, 0.0
        %1020 = vadd.xlane.f32.xlu0 %v1019
        %v1021 = vpop.xlane.xlu0 %1020
        %v1022 = vsel %vm816, %v982, 0.0
        %1023 = vadd.xlane.f32.xlu0 %v1022
        %v1024 = vpop.xlane.xlu0 %1023
        %v1025 = vsel %vm816, %v983, 0.0
        %1026 = vadd.xlane.f32.xlu0 %v1025
        %v1027 = vpop.xlane.xlu0 %1026
        %v1028 = vsel %vm816, %v984, 0.0
        %1029 = vadd.xlane.f32.xlu0 %v1028
        %v1030 = vpop.xlane.xlu0 %1029
        %v1031 = vsel %vm816, %v985, 0.0
        %1032 = vadd.xlane.f32.xlu0 %v1031
        %v1033 = vpop.xlane.xlu0 %1032
        %v1034 = vsel %vm816, %v986, 0.0
        %1035 = vadd.xlane.f32.xlu0 %v1034
        %v1036 = vpop.xlane.xlu0 %1035
        %v1037 = vsel %vm816, %v987, 0.0
        %1038 = vadd.xlane.f32.xlu0 %v1037
        %v1039 = vpop.xlane.xlu0 %1038
        %v1040 = vsel %vm816, %v988, 0.0
        %1041 = vadd.xlane.f32.xlu0 %v1040
        %v1042 = vpop.xlane.xlu0 %1041
        %v1043 = vsel %vm816, %v989, 0.0
        %1044 = vadd.xlane.f32.xlu0 %v1043
        %v1045 = vpop.xlane.xlu0 %1044
        %v1046 = vsel %vm816, %v990, 0.0
        %1047 = vadd.xlane.f32.xlu0 %v1046
        %v1048 = vpop.xlane.xlu0 %1047
        %v1049 = vsel %vm816, %v991, 0.0
        %1050 = vadd.xlane.f32.xlu0 %v1049
        %v1051 = vpop.xlane.xlu0 %1050
        %v1052 = vsel %vm816, %v992, 0.0
        %1053 = vadd.xlane.f32.xlu0 %v1052
        %v1054 = vpop.xlane.xlu0 %1053
        %v1055 = vsel %vm816, %v993, 0.0
        %1056 = vadd.xlane.f32.xlu0 %v1055
        %v1057 = vpop.xlane.xlu0 %1056
        %v1058 = vsel %vm816, %v994, 0.0
        %1059 = vadd.xlane.f32.xlu0 %v1058
        %v1060 = vpop.xlane.xlu0 %1059
        %v1061 = vsel %vm816, %v995, 0.0
        %1062 = vadd.xlane.f32.xlu0 %v1061
        %v1063 = vpop.xlane.xlu0 %1062
        %v1064 = vsel %vm816, %v996, 0.0
        %1065 = vadd.xlane.f32.xlu0 %v1064
        %v1066 = vpop.xlane.xlu0 %1065
        %v1067 = vsel %vm816, %v997, 0.0
        %1068 = vadd.xlane.f32.xlu0 %v1067
        %v1069 = vpop.xlane.xlu0 %1068
        %v1070 = vsel %vm816, %v998, 0.0
        %1071 = vadd.xlane.f32.xlu0 %v1070
        %v1072 = vpop.xlane.xlu0 %1071
        %v1073 = vsel %vm816, %v999, 0.0
        %1074 = vadd.xlane.f32.xlu0 %v1073
        %v1075 = vpop.xlane.xlu0 %1074
        %v1076 = vsel %vm816, %v1000, 0.0
        %1077 = vadd.xlane.f32.xlu0 %v1076
        %v1078 = vpop.xlane.xlu0 %1077
        %v1079 = vsel %vm816, %v1001, 0.0
        %1080 = vadd.xlane.f32.xlu0 %v1079
        %v1081 = vpop.xlane.xlu0 %1080
        %v1082 = vsel %vm816, %v1002, 0.0
        %1083 = vadd.xlane.f32.xlu0 %v1082
        %v1084 = vpop.xlane.xlu0 %1083
        %v1085 = vsel %vm816, %v1003, 0.0
        %1086 = vadd.xlane.f32.xlu0 %v1085
        %v1087 = vpop.xlane.xlu0 %1086
        %v1088 = vsel %vm816, %v1004, 0.0
        %1089 = vadd.xlane.f32.xlu0 %v1088
        %v1090 = vpop.xlane.xlu0 %1089
        %v1091 = vsel %vm816, %v1005, 0.0
        %1092 = vadd.xlane.f32.xlu0 %v1091
        %v1093 = vpop.xlane.xlu0 %1092
        %v1094 = vsel %vm816, %v1006, 0.0
        %1095 = vadd.xlane.f32.xlu0 %v1094
        %v1096 = vpop.xlane.xlu0 %1095
        %v1097 = vsel %vm816, %v1007, 0.0
        %1098 = vadd.xlane.f32.xlu0 %v1097
        %v1099 = vpop.xlane.xlu0 %1098
        %v1100 = vsel %vm816, %v1008, 0.0
        %1101 = vadd.xlane.f32.xlu0 %v1100
        %v1102 = vpop.xlane.xlu0 %1101
        %v1103 = vsel %vm816, %v1009, 0.0
        %1104 = vadd.xlane.f32.xlu0 %v1103
        %v1105 = vpop.xlane.xlu0 %1104
        %v1106 = vmul.f32 %v1012, %v913
        %v1107 = vmul.f32 %v1015, %v913
        %v1108 = vmul.f32 %v1018, %v913
        %v1109 = vmul.f32 %v1021, %v913
        %v1110 = vmul.f32 %v1024, %v913
        %v1111 = vmul.f32 %v1027, %v913
        %v1112 = vmul.f32 %v1030, %v913
        %v1113 = vmul.f32 %v1033, %v913
        %v1114 = vmul.f32 %v1036, %v913
        %v1115 = vmul.f32 %v1039, %v913
        %v1116 = vmul.f32 %v1042, %v913
        %v1117 = vmul.f32 %v1045, %v913
        %v1118 = vmul.f32 %v1048, %v913
        %v1119 = vmul.f32 %v1051, %v913
        %v1120 = vmul.f32 %v1054, %v913
        %v1121 = vmul.f32 %v1057, %v913
        %v1122 = vmul.f32 %v1060, %v913
        %v1123 = vmul.f32 %v1063, %v913
        %v1124 = vmul.f32 %v1066, %v913
        %v1125 = vmul.f32 %v1069, %v913
        %v1126 = vmul.f32 %v1072, %v913
        %v1127 = vmul.f32 %v1075, %v913
        %v1128 = vmul.f32 %v1078, %v913
        %v1129 = vmul.f32 %v1081, %v913
        %v1130 = vmul.f32 %v1084, %v913
        %v1131 = vmul.f32 %v1087, %v913
        %v1132 = vmul.f32 %v1090, %v913
        %v1133 = vmul.f32 %v1093, %v913
        %v1134 = vmul.f32 %v1096, %v913
        %v1135 = vmul.f32 %v1099, %v913
        %v1136 = vmul.f32 %v1102, %v913
        %v1137 = vmul.f32 %v1105, %v913
        %v1138 = vadd.f32 %v1106, 1e-05
        %v1139 = vadd.f32 %v1107, 1e-05
        %v1140 = vadd.f32 %v1108, 1e-05
        %v1141 = vadd.f32 %v1109, 1e-05
        %v1142 = vadd.f32 %v1110, 1e-05
        %v1143 = vadd.f32 %v1111, 1e-05
        %v1144 = vadd.f32 %v1112, 1e-05
        %v1145 = vadd.f32 %v1113, 1e-05
        %v1146 = vadd.f32 %v1114, 1e-05
        %v1147 = vadd.f32 %v1115, 1e-05
        %v1148 = vadd.f32 %v1116, 1e-05
        %v1149 = vadd.f32 %v1117, 1e-05
        %v1150 = vadd.f32 %v1118, 1e-05
        %v1151 = vadd.f32 %v1119, 1e-05
        %v1152 = vadd.f32 %v1120, 1e-05
        %v1153 = vadd.f32 %v1121, 1e-05
        %v1154 = vadd.f32 %v1122, 1e-05
        %v1155 = vadd.f32 %v1123, 1e-05
        %v1156 = vadd.f32 %v1124, 1e-05
        %v1157 = vadd.f32 %v1125, 1e-05
        %v1158 = vadd.f32 %v1126, 1e-05
        %v1159 = vadd.f32 %v1127, 1e-05
        %v1160 = vadd.f32 %v1128, 1e-05
        %v1161 = vadd.f32 %v1129, 1e-05
        %v1162 = vadd.f32 %v1130, 1e-05
        %v1163 = vadd.f32 %v1131, 1e-05
        %v1164 = vadd.f32 %v1132, 1e-05
        %v1165 = vadd.f32 %v1133, 1e-05
        %v1166 = vadd.f32 %v1134, 1e-05
        %v1167 = vadd.f32 %v1135, 1e-05
        %v1168 = vadd.f32 %v1136, 1e-05
        %v1169 = vadd.f32 %v1137, 1e-05
        %v1170 = vrsqrt.pop %v1138
        %v1171 = vrsqrt.pop %v1139
        %v1172 = vrsqrt.pop %v1140
        %v1173 = vrsqrt.pop %v1141
        %v1174 = vrsqrt.pop %v1142
        %v1175 = vrsqrt.pop %v1143
        %v1176 = vrsqrt.pop %v1144
        %v1177 = vrsqrt.pop %v1145
        %v1178 = vrsqrt.pop %v1146
        %v1179 = vrsqrt.pop %v1147
        %v1180 = vrsqrt.pop %v1148
        %v1181 = vrsqrt.pop %v1149
        %v1182 = vrsqrt.pop %v1150
        %v1183 = vrsqrt.pop %v1151
        %v1184 = vrsqrt.pop %v1152
        %v1185 = vrsqrt.pop %v1153
        %v1186 = vrsqrt.pop %v1154
        %v1187 = vrsqrt.pop %v1155
        %v1188 = vrsqrt.pop %v1156
        %v1189 = vrsqrt.pop %v1157
        %v1190 = vrsqrt.pop %v1158
        %v1191 = vrsqrt.pop %v1159
        %v1192 = vrsqrt.pop %v1160
        %v1193 = vrsqrt.pop %v1161
        %v1194 = vrsqrt.pop %v1162
        %v1195 = vrsqrt.pop %v1163
        %v1196 = vrsqrt.pop %v1164
        %v1197 = vrsqrt.pop %v1165
        %v1198 = vrsqrt.pop %v1166
        %v1199 = vrsqrt.pop %v1167
        %v1200 = vrsqrt.pop %v1168
        %v1201 = vrsqrt.pop %v1169
        %v1202 = vmul.f32 %v946, %v1170
        %v1203 = vmul.f32 %v947, %v1171
        %v1204 = vmul.f32 %v948, %v1172
        %v1205 = vmul.f32 %v949, %v1173
        %v1206 = vmul.f32 %v950, %v1174
        %v1207 = vmul.f32 %v951, %v1175
        %v1208 = vmul.f32 %v952, %v1176
        %v1209 = vmul.f32 %v953, %v1177
        %v1210 = vmul.f32 %v954, %v1178
        %v1211 = vmul.f32 %v955, %v1179
        %v1212 = vmul.f32 %v956, %v1180
        %v1213 = vmul.f32 %v957, %v1181
        %v1214 = vmul.f32 %v958, %v1182
        %v1215 = vmul.f32 %v959, %v1183
        %v1216 = vmul.f32 %v960, %v1184
        %v1217 = vmul.f32 %v961, %v1185
        %v1218 = vmul.f32 %v962, %v1186
        %v1219 = vmul.f32 %v963, %v1187
        %v1220 = vmul.f32 %v964, %v1188
        %v1221 = vmul.f32 %v965, %v1189
        %v1222 = vmul.f32 %v966, %v1190
        %v1223 = vmul.f32 %v967, %v1191
        %v1224 = vmul.f32 %v968, %v1192
        %v1225 = vmul.f32 %v969, %v1193
        %v1226 = vmul.f32 %v970, %v1194
        %v1227 = vmul.f32 %v971, %v1195
        %v1228 = vmul.f32 %v972, %v1196
        %v1229 = vmul.f32 %v973, %v1197
        %v1230 = vmul.f32 %v974, %v1198
        %v1231 = vmul.f32 %v975, %v1199
        %v1232 = vmul.f32 %v976, %v1200
        %v1233 = vmul.f32 %v977, %v1201
        %v1235 = vlaneseq
        %v1236 = vshrl.u32 %v1235, 7
        %v1237 = vsub.s32 0, %v1236
        %v1238 = vrot.slane %v814, %v1237
        %v1240 = vmul.f32 %v1202, %v1238
        %v1241 = vmul.f32 %v1203, %v1238
        %v1242 = vmul.f32 %v1204, %v1238
        %v1243 = vmul.f32 %v1205, %v1238
        %v1244 = vmul.f32 %v1206, %v1238
        %v1245 = vmul.f32 %v1207, %v1238
        %v1246 = vmul.f32 %v1208, %v1238
        %v1247 = vmul.f32 %v1209, %v1238
        %v1248 = vmul.f32 %v1210, %v1238
        %v1249 = vmul.f32 %v1211, %v1238
        %v1250 = vmul.f32 %v1212, %v1238
        %v1251 = vmul.f32 %v1213, %v1238
        %v1252 = vmul.f32 %v1214, %v1238
        %v1253 = vmul.f32 %v1215, %v1238
        %v1254 = vmul.f32 %v1216, %v1238
        %v1255 = vmul.f32 %v1217, %v1238
        %v1256 = vmul.f32 %v1218, %v1238
        %v1257 = vmul.f32 %v1219, %v1238
        %v1258 = vmul.f32 %v1220, %v1238
        %v1259 = vmul.f32 %v1221, %v1238
        %v1260 = vmul.f32 %v1222, %v1238
        %v1261 = vmul.f32 %v1223, %v1238
        %v1262 = vmul.f32 %v1224, %v1238
        %v1263 = vmul.f32 %v1225, %v1238
        %v1264 = vmul.f32 %v1226, %v1238
        %v1265 = vmul.f32 %v1227, %v1238
        %v1266 = vmul.f32 %v1228, %v1238
        %v1267 = vmul.f32 %v1229, %v1238
        %v1268 = vmul.f32 %v1230, %v1238
        %v1269 = vmul.f32 %v1231, %v1238
        %v1270 = vmul.f32 %v1232, %v1238
        %v1271 = vmul.f32 %v1233, %v1238
        %v1273 = vlaneseq
        %v1274 = vshrl.u32 %v1273, 7
        %v1275 = vsub.s32 0, %v1274
        %v1276 = vrot.slane %v815, %v1275
        %v1278 = vadd.f32 %v1240, %v1276
        %v1279 = vadd.f32 %v1241, %v1276
        %v1280 = vadd.f32 %v1242, %v1276
        %v1281 = vadd.f32 %v1243, %v1276
        %v1282 = vadd.f32 %v1244, %v1276
        %v1283 = vadd.f32 %v1245, %v1276
        %v1284 = vadd.f32 %v1246, %v1276
        %v1285 = vadd.f32 %v1247, %v1276
        %v1286 = vadd.f32 %v1248, %v1276
        %v1287 = vadd.f32 %v1249, %v1276
        %v1288 = vadd.f32 %v1250, %v1276
        %v1289 = vadd.f32 %v1251, %v1276
        %v1290 = vadd.f32 %v1252, %v1276
        %v1291 = vadd.f32 %v1253, %v1276
        %v1292 = vadd.f32 %v1254, %v1276
        %v1293 = vadd.f32 %v1255, %v1276
        %v1294 = vadd.f32 %v1256, %v1276
        %v1295 = vadd.f32 %v1257, %v1276
        %v1296 = vadd.f32 %v1258, %v1276
        %v1297 = vadd.f32 %v1259, %v1276
        %v1298 = vadd.f32 %v1260, %v1276
        %v1299 = vadd.f32 %v1261, %v1276
        %v1300 = vadd.f32 %v1262, %v1276
        %v1301 = vadd.f32 %v1263, %v1276
        %v1302 = vadd.f32 %v1264, %v1276
        %v1303 = vadd.f32 %v1265, %v1276
        %v1304 = vadd.f32 %v1266, %v1276
        %v1305 = vadd.f32 %v1267, %v1276
        %v1306 = vadd.f32 %v1268, %v1276
        %v1307 = vadd.f32 %v1269, %v1276
        %v1308 = vadd.f32 %v1270, %v1276
        %v1309 = vadd.f32 %v1271, %v1276
        %v1310 = vpack.c.bf16 %v1279, %v1278
        %v1311 = vpack.c.bf16 %v1281, %v1280
        %v1312 = vpack.c.bf16 %v1283, %v1282
        %v1313 = vpack.c.bf16 %v1285, %v1284
        %v1314 = vpack.c.bf16 %v1287, %v1286
        %v1315 = vpack.c.bf16 %v1289, %v1288
        %v1316 = vpack.c.bf16 %v1291, %v1290
        %v1317 = vpack.c.bf16 %v1293, %v1292
        %v1318 = vpack.c.bf16 %v1295, %v1294
        %v1319 = vpack.c.bf16 %v1297, %v1296
        %v1320 = vpack.c.bf16 %v1299, %v1298
        %v1321 = vpack.c.bf16 %v1301, %v1300
        %v1322 = vpack.c.bf16 %v1303, %v1302
        %v1323 = vpack.c.bf16 %v1305, %v1304
        %v1324 = vpack.c.bf16 %v1307, %v1306
        %v1325 = vpack.c.bf16 %v1309, %v1308
        %v1326 = vld [vmem:[%s673] sm:$0xf]
        %v1327 = vld [vmem:[%s673 + $0x4] sm:$0xf]
        %v1328 = vld [vmem:[%s673 + $0x8] sm:$0xf]
        %v1329 = vld [vmem:[%s673 + $0xc] sm:$0xf]
        %v1330 = vld [vmem:[%s676] sm:$0x1]
        %v1332 = vlaneseq
        %v1333 = vshrl.u32 %v1332, 7
        %v1334 = vsub.s32 0, %v1333
        %v1335 = vrot.slane %v1330, %v1334
        %v1341 = vunpack.c.l.b16 %v1326
        %v1342 = vunpack.c.l.b16 %v1327
        %v1343 = vunpack.c.l.b16 %v1328
        %v1344 = vunpack.c.l.b16 %v1329
        %v1345 = vpack.c.b16 %v1342, %v1341
        %v1346 = vpack.c.b16 %v1344, %v1343
        %v1350 = vsel %vm816, %v1310, 0
        %v1353 = vsel %vm816, %v1311, 0
        %v1356 = vsel %vm816, %v1312, 0
        %v1359 = vsel %vm816, %v1313, 0
        %v1362 = vsel %vm816, %v1314, 0
        %v1365 = vsel %vm816, %v1315, 0
        %v1368 = vsel %vm816, %v1316, 0
        %v1371 = vsel %vm816, %v1317, 0
        %v1374 = vsel %vm816, %v1318, 0
        %v1377 = vsel %vm816, %v1319, 0
        %v1380 = vsel %vm816, %v1320, 0
        %v1383 = vsel %vm816, %v1321, 0
        %v1386 = vsel %vm816, %v1322, 0
        %v1389 = vsel %vm816, %v1323, 0
        %v1392 = vsel %vm816, %v1324, 0
        %v1395 = vsel %vm816, %v1325, 0
        %1397 = vmatprep.subr.bf16.mxu0 0
        %1398 = vmatpush1.bf16.msra.mxu0 %v1345
        %1399 = vmatprep.subr.bf16.mxu0 0
        %1400 = vmatpush1.bf16.msra.mxu0 %v1346
        %1401 = vmatprep.subr.bf16.mxu0 0
        %1402 = vmatpush1.bf16.msra.mxu0 0
        %1403 = vmatprep.subr.bf16.mxu0 0
        %1404 = vmatpush1.bf16.msra.mxu0 0
        %1405 = vmatprep.subr.bf16.mxu0 0
        %1406 = vmatpush1.bf16.msra.mxu0 0
        %1407 = vmatprep.subr.bf16.mxu0 0
        %1408 = vmatpush1.bf16.msra.mxu0 0
        %1409 = vmatprep.subr.bf16.mxu0 0
        %1410 = vmatpush1.bf16.msra.mxu0 0
        %1411 = vmatprep.subr.bf16.mxu0 0
        %1412 = vmatpush1.bf16.msra.mxu0 0
        %1413 = vmatprep.subr.bf16.mxu0 0
        %1414 = vmatpush1.bf16.msra.mxu0 0
        %1415 = vmatprep.subr.bf16.mxu0 0
        %1416 = vmatpush1.bf16.msra.mxu0 0
        %1417 = vmatprep.subr.bf16.mxu0 0
        %1418 = vmatpush1.bf16.msra.mxu0 0
        %1419 = vmatprep.subr.bf16.mxu0 0
        %1420 = vmatpush1.bf16.msra.mxu0 0
        %1421 = vmatprep.subr.bf16.mxu0 0
        %1422 = vmatpush1.bf16.msra.mxu0 0
        %1423 = vmatprep.subr.bf16.mxu0 0
        %1424 = vmatpush1.bf16.msra.mxu0 0
        %1425 = vmatprep.subr.bf16.mxu0 0
        %1426 = vmatpush1.bf16.msra.mxu0 0
        %1427 = vmatprep.subr.bf16.mxu0 0
        %1428 = vmatpush1.bf16.msra.mxu0 0
        %1429 = vmatprep.mubr.bf16.mxu0 0
        %1430 = vmatmul.mubr.bf16.gmra.mrb[0].mxu0 %v1350
        %v1431 = vpop.f32.mrb[0].mxu0
        %v1432 = vadd.f32 %v1335, %v1431
        %v1433 = vpop.f32.mrb[0].mxu0
        %v1434 = vpop.f32.mrb[0].mxu0
        %v1435 = vadd.f32 %v1335, %v1434
        %v1436 = vpop.f32.mrb[0].mxu0
        %1437 = vmatprep.mubr.bf16.mxu0 0
        %1438 = vmatmul.mubr.bf16.gmra.mrb[0].mxu0 %v1353
        %v1439 = vpop.f32.mrb[0].mxu0
        %v1440 = vadd.f32 %v1335, %v1439
        %v1441 = vpop.f32.mrb[0].mxu0
        %v1442 = vpop.f32.mrb[0].mxu0
        %v1443 = vadd.f32 %v1335, %v1442
        %v1444 = vpop.f32.mrb[0].mxu0
        %1445 = vmatprep.mubr.bf16.mxu0 0
        %1446 = vmatmul.mubr.bf16.gmra.mrb[0].mxu0 %v1356
        %v1447 = vpop.f32.mrb[0].mxu0
        %v1448 = vadd.f32 %v1335, %v1447
        %v1449 = vpop.f32.mrb[0].mxu0
        %v1450 = vpop.f32.mrb[0].mxu0
        %v1451 = vadd.f32 %v1335, %v1450
        %v1452 = vpop.f32.mrb[0].mxu0
        %1453 = vmatprep.mubr.bf16.mxu0 0
        %1454 = vmatmul.mubr.bf16.gmra.mrb[0].mxu0 %v1359
        %v1455 = vpop.f32.mrb[0].mxu0
        %v1456 = vadd.f32 %v1335, %v1455
        %v1457 = vpop.f32.mrb[0].mxu0
        %v1458 = vpop.f32.mrb[0].mxu0
        %v1459 = vadd.f32 %v1335, %v1458
        %v1460 = vpop.f32.mrb[0].mxu0
        %1461 = vmatprep.mubr.bf16.mxu0 0
        %1462 = vmatmul.mubr.bf16.gmra.mrb[0].mxu0 %v1362
        %v1463 = vpop.f32.mrb[0].mxu0
        %v1464 = vadd.f32 %v1335, %v1463
        %v1465 = vpop.f32.mrb[0].mxu0
        %v1466 = vpop.f32.mrb[0].mxu0
        %v1467 = vadd.f32 %v1335, %v1466
        %v1468 = vpop.f32.mrb[0].mxu0
        %1469 = vmatprep.mubr.bf16.mxu0 0
        %1470 = vmatmul.mubr.bf16.gmra.mrb[0].mxu0 %v1365
        %v1471 = vpop.f32.mrb[0].mxu0
        %v1472 = vadd.f32 %v1335, %v1471
        %v1473 = vpop.f32.mrb[0].mxu0
        %v1474 = vpop.f32.mrb[0].mxu0
        %v1475 = vadd.f32 %v1335, %v1474
        %v1476 = vpop.f32.mrb[0].mxu0
        %1477 = vmatprep.mubr.bf16.mxu0 0
        %1478 = vmatmul.mubr.bf16.gmra.mrb[0].mxu0 %v1368
        %v1479 = vpop.f32.mrb[0].mxu0
        %v1480 = vadd.f32 %v1335, %v1479
        %v1481 = vpop.f32.mrb[0].mxu0
        %v1482 = vpop.f32.mrb[0].mxu0
        %v1483 = vadd.f32 %v1335, %v1482
        %v1484 = vpop.f32.mrb[0].mxu0
        %1485 = vmatprep.mubr.bf16.mxu0 0
        %1486 = vmatmul.mubr.bf16.gmra.mrb[0].mxu0 %v1371
        %v1487 = vpop.f32.mrb[0].mxu0
        %v1488 = vadd.f32 %v1335, %v1487
        %v1489 = vpop.f32.mrb[0].mxu0
        %v1490 = vpop.f32.mrb[0].mxu0
        %v1491 = vadd.f32 %v1335, %v1490
        %v1492 = vpop.f32.mrb[0].mxu0
        %1493 = vmatprep.mubr.bf16.mxu0 0
        %1494 = vmatmul.mubr.bf16.gmra.mrb[0].mxu0 %v1374
        %v1495 = vpop.f32.mrb[0].mxu0
        %v1496 = vadd.f32 %v1335, %v1495
        %v1497 = vpop.f32.mrb[0].mxu0
        %v1498 = vpop.f32.mrb[0].mxu0
        %v1499 = vadd.f32 %v1335, %v1498
        %v1500 = vpop.f32.mrb[0].mxu0
        %1501 = vmatprep.mubr.bf16.mxu0 0
        %1502 = vmatmul.mubr.bf16.gmra.mrb[0].mxu0 %v1377
        %v1503 = vpop.f32.mrb[0].mxu0
        %v1504 = vadd.f32 %v1335, %v1503
        %v1505 = vpop.f32.mrb[0].mxu0
        %v1506 = vpop.f32.mrb[0].mxu0
        %v1507 = vadd.f32 %v1335, %v1506
        %v1508 = vpop.f32.mrb[0].mxu0
        %1509 = vmatprep.mubr.bf16.mxu0 0
        %1510 = vmatmul.mubr.bf16.gmra.mrb[0].mxu0 %v1380
        %v1511 = vpop.f32.mrb[0].mxu0
        %v1512 = vadd.f32 %v1335, %v1511
        %v1513 = vpop.f32.mrb[0].mxu0
        %v1514 = vpop.f32.mrb[0].mxu0
        %v1515 = vadd.f32 %v1335, %v1514
        %v1516 = vpop.f32.mrb[0].mxu0
        %1517 = vmatprep.mubr.bf16.mxu0 0
        %1518 = vmatmul.mubr.bf16.gmra.mrb[0].mxu0 %v1383
        %v1519 = vpop.f32.mrb[0].mxu0
        %v1520 = vadd.f32 %v1335, %v1519
        %v1521 = vpop.f32.mrb[0].mxu0
        %v1522 = vpop.f32.mrb[0].mxu0
        %v1523 = vadd.f32 %v1335, %v1522
        %v1524 = vpop.f32.mrb[0].mxu0
        %1525 = vmatprep.mubr.bf16.mxu0 0
        %1526 = vmatmul.mubr.bf16.gmra.mrb[0].mxu0 %v1386
        %v1527 = vpop.f32.mrb[0].mxu0
        %v1528 = vadd.f32 %v1335, %v1527
        %v1529 = vpop.f32.mrb[0].mxu0
        %v1530 = vpop.f32.mrb[0].mxu0
        %v1531 = vadd.f32 %v1335, %v1530
        %v1532 = vpop.f32.mrb[0].mxu0
        %1533 = vmatprep.mubr.bf16.mxu0 0
        %1534 = vmatmul.mubr.bf16.gmra.mrb[0].mxu0 %v1389
        %v1535 = vpop.f32.mrb[0].mxu0
        %v1536 = vadd.f32 %v1335, %v1535
        %v1537 = vpop.f32.mrb[0].mxu0
        %v1538 = vpop.f32.mrb[0].mxu0
        %v1539 = vadd.f32 %v1335, %v1538
        %v1540 = vpop.f32.mrb[0].mxu0
        %1541 = vmatprep.mubr.bf16.mxu0 0
        %1542 = vmatmul.mubr.bf16.gmra.mrb[0].mxu0 %v1392
        %v1543 = vpop.f32.mrb[0].mxu0
        %v1544 = vadd.f32 %v1335, %v1543
        %v1545 = vpop.f32.mrb[0].mxu0
        %v1546 = vpop.f32.mrb[0].mxu0
        %v1547 = vadd.f32 %v1335, %v1546
        %v1548 = vpop.f32.mrb[0].mxu0
        %1549 = vmatprep.mubr.bf16.mxu0 0
        %1550 = vmatmul.mubr.bf16.gmra.mrb[0].mxu0 %v1395
        %v1551 = vpop.f32.mrb[0].mxu0
        %v1552 = vadd.f32 %v1335, %v1551
        %v1553 = vpop.f32.mrb[0].mxu0
        %v1554 = vpop.f32.mrb[0].mxu0
        %v1555 = vadd.f32 %v1335, %v1554
        %v1556 = vpop.f32.mrb[0].mxu0
        %1557 = vdwg.mxu0
        %v1558 = vld [vmem:[%s684] sm:$0x1]
        %v1560 = vlaneseq
        %v1561 = vshrl.u32 %v1560, 7
        %v1562 = vsub.s32 0, %v1561
        %v1563 = vrot.slane %v1558, %v1562
        %v1565 = vadd.f32 %v782, %v1563
        %v1566 = vadd.f32 %v783, %v1563
        %v1567 = vadd.f32 %v784, %v1563
        %v1568 = vadd.f32 %v785, %v1563
        %v1569 = vadd.f32 %v786, %v1563
        %v1570 = vadd.f32 %v787, %v1563
        %v1571 = vadd.f32 %v788, %v1563
        %v1572 = vadd.f32 %v789, %v1563
        %v1573 = vadd.f32 %v790, %v1563
        %v1574 = vadd.f32 %v791, %v1563
        %v1575 = vadd.f32 %v792, %v1563
        %v1576 = vadd.f32 %v793, %v1563
        %v1577 = vadd.f32 %v794, %v1563
        %v1578 = vadd.f32 %v795, %v1563
        %v1579 = vadd.f32 %v796, %v1563
        %v1580 = vadd.f32 %v797, %v1563
        %v1581 = vadd.f32 %v798, %v1563
        %v1582 = vadd.f32 %v799, %v1563
        %v1583 = vadd.f32 %v800, %v1563
        %v1584 = vadd.f32 %v801, %v1563
        %v1585 = vadd.f32 %v802, %v1563
        %v1586 = vadd.f32 %v803, %v1563
        %v1587 = vadd.f32 %v804, %v1563
        %v1588 = vadd.f32 %v805, %v1563
        %v1589 = vadd.f32 %v806, %v1563
        %v1590 = vadd.f32 %v807, %v1563
        %v1591 = vadd.f32 %v808, %v1563
        %v1592 = vadd.f32 %v809, %v1563
        %v1593 = vadd.f32 %v810, %v1563
        %v1594 = vadd.f32 %v811, %v1563
        %v1595 = vadd.f32 %v812, %v1563
        %v1596 = vadd.f32 %v813, %v1563
        %v1597 = vpack.c.bf16 %v1435, %v1432
        %v1598 = vpack.c.bf16 %v1443, %v1440
        %v1599 = vpack.c.bf16 %v1451, %v1448
        %v1600 = vpack.c.bf16 %v1459, %v1456
        %v1601 = vpack.c.bf16 %v1467, %v1464
        %v1602 = vpack.c.bf16 %v1475, %v1472
        %v1603 = vpack.c.bf16 %v1483, %v1480
        %v1604 = vpack.c.bf16 %v1491, %v1488
        %v1605 = vpack.c.bf16 %v1499, %v1496
        %v1606 = vpack.c.bf16 %v1507, %v1504
        %v1607 = vpack.c.bf16 %v1515, %v1512
        %v1608 = vpack.c.bf16 %v1523, %v1520
        %v1609 = vpack.c.bf16 %v1531, %v1528
        %v1610 = vpack.c.bf16 %v1539, %v1536
        %v1611 = vpack.c.bf16 %v1547, %v1544
        %v1612 = vpack.c.bf16 %v1555, %v1552
        %v1613 = vld [vmem:[%s564] sm:$0xff]
        %v1614 = vld [vmem:[%s564 + $0x8] sm:$0xff]
        %v1615 = vld [vmem:[%s564 + $0x10] sm:$0xff]
        %v1616 = vld [vmem:[%s564 + $0x18] sm:$0xff]
        %v1617 = vld [vmem:[%s564 + $0x20] sm:$0xff]
        %v1618 = vld [vmem:[%s564 + $0x28] sm:$0xff]
        %v1619 = vld [vmem:[%s564 + $0x30] sm:$0xff]
        %v1620 = vld [vmem:[%s564 + $0x38] sm:$0xff]
        %v1621 = vld [vmem:[%s564 + $0x40] sm:$0xff]
        %v1622 = vld [vmem:[%s564 + $0x48] sm:$0xff]
        %v1623 = vld [vmem:[%s564 + $0x50] sm:$0xff]
        %v1624 = vld [vmem:[%s564 + $0x58] sm:$0xff]
        %v1625 = vld [vmem:[%s564 + $0x60] sm:$0xff]
        %v1626 = vld [vmem:[%s564 + $0x68] sm:$0xff]
        %v1627 = vld [vmem:[%s564 + $0x70] sm:$0xff]
        %v1628 = vld [vmem:[%s564 + $0x78] sm:$0xff]
        %v1629 = vld [vmem:[%s564 + $0x80] sm:$0xff]
        %v1630 = vld [vmem:[%s564 + $0x88] sm:$0xff]
        %v1631 = vld [vmem:[%s564 + $0x90] sm:$0xff]
        %v1632 = vld [vmem:[%s564 + $0x98] sm:$0xff]
        %v1633 = vld [vmem:[%s564 + $0xa0] sm:$0xff]
        %v1634 = vld [vmem:[%s564 + $0xa8] sm:$0xff]
        %v1635 = vld [vmem:[%s564 + $0xb0] sm:$0xff]
        %v1636 = vld [vmem:[%s564 + $0xb8] sm:$0xff]
        %v1637 = vld [vmem:[%s564 + $0xc0] sm:$0xff]
        %v1638 = vld [vmem:[%s564 + $0xc8] sm:$0xff]
        %v1639 = vld [vmem:[%s564 + $0xd0] sm:$0xff]
        %v1640 = vld [vmem:[%s564 + $0xd8] sm:$0xff]
        %v1641 = vld [vmem:[%s564 + $0xe0] sm:$0xff]
        %v1642 = vld [vmem:[%s564 + $0xe8] sm:$0xff]
        %v1643 = vld [vmem:[%s564 + $0xf0] sm:$0xff]
        %v1644 = vld [vmem:[%s564 + $0xf8] sm:$0xff]
        %v1645 = vunpack.c.l.bf16 %v1613
        %v1646 = vunpack.c.h.bf16 %v1613
        %v1647 = vunpack.c.l.bf16 %v1614
        %v1648 = vunpack.c.h.bf16 %v1614
        %v1649 = vunpack.c.l.bf16 %v1615
        %v1650 = vunpack.c.h.bf16 %v1615
        %v1651 = vunpack.c.l.bf16 %v1616
        %v1652 = vunpack.c.h.bf16 %v1616
        %v1653 = vunpack.c.l.bf16 %v1617
        %v1654 = vunpack.c.h.bf16 %v1617
        %v1655 = vunpack.c.l.bf16 %v1618
        %v1656 = vunpack.c.h.bf16 %v1618
        %v1657 = vunpack.c.l.bf16 %v1619
        %v1658 = vunpack.c.h.bf16 %v1619
        %v1659 = vunpack.c.l.bf16 %v1620
        %v1660 = vunpack.c.h.bf16 %v1620
        %v1661 = vunpack.c.l.bf16 %v1621
        %v1662 = vunpack.c.h.bf16 %v1621
        %v1663 = vunpack.c.l.bf16 %v1622
        %v1664 = vunpack.c.h.bf16 %v1622
        %v1665 = vunpack.c.l.bf16 %v1623
        %v1666 = vunpack.c.h.bf16 %v1623
        %v1667 = vunpack.c.l.bf16 %v1624
        %v1668 = vunpack.c.h.bf16 %v1624
        %v1669 = vunpack.c.l.bf16 %v1625
        %v1670 = vunpack.c.h.bf16 %v1625
        %v1671 = vunpack.c.l.bf16 %v1626
        %v1672 = vunpack.c.h.bf16 %v1626
        %v1673 = vunpack.c.l.bf16 %v1627
        %v1674 = vunpack.c.h.bf16 %v1627
        %v1675 = vunpack.c.l.bf16 %v1628
        %v1676 = vunpack.c.h.bf16 %v1628
        %v1677 = vunpack.c.l.bf16 %v1629
        %v1678 = vunpack.c.h.bf16 %v1629
        %v1679 = vunpack.c.l.bf16 %v1630
        %v1680 = vunpack.c.h.bf16 %v1630
        %v1681 = vunpack.c.l.bf16 %v1631
        %v1682 = vunpack.c.h.bf16 %v1631
        %v1683 = vunpack.c.l.bf16 %v1632
        %v1684 = vunpack.c.h.bf16 %v1632
        %v1685 = vunpack.c.l.bf16 %v1633
        %v1686 = vunpack.c.h.bf16 %v1633
        %v1687 = vunpack.c.l.bf16 %v1634
        %v1688 = vunpack.c.h.bf16 %v1634
        %v1689 = vunpack.c.l.bf16 %v1635
        %v1690 = vunpack.c.h.bf16 %v1635
        %v1691 = vunpack.c.l.bf16 %v1636
        %v1692 = vunpack.c.h.bf16 %v1636
        %v1693 = vunpack.c.l.bf16 %v1637
        %v1694 = vunpack.c.h.bf16 %v1637
        %v1695 = vunpack.c.l.bf16 %v1638
        %v1696 = vunpack.c.h.bf16 %v1638
        %v1697 = vunpack.c.l.bf16 %v1639
        %v1698 = vunpack.c.h.bf16 %v1639
        %v1699 = vunpack.c.l.bf16 %v1640
        %v1700 = vunpack.c.h.bf16 %v1640
        %v1701 = vunpack.c.l.bf16 %v1641
        %v1702 = vunpack.c.h.bf16 %v1641
        %v1703 = vunpack.c.l.bf16 %v1642
        %v1704 = vunpack.c.h.bf16 %v1642
        %v1705 = vunpack.c.l.bf16 %v1643
        %v1706 = vunpack.c.h.bf16 %v1643
        %v1707 = vunpack.c.l.bf16 %v1644
        %v1708 = vunpack.c.h.bf16 %v1644
        %1725 = vrot.lane.b32.xlu0 %v1597, 96
        %v1726 = vpop.permute.xlu0 %1725
        %1727 = vrot.lane.b32.xlu0 %v1598, 96
        %v1728 = vpop.permute.xlu0 %1727
        %1729 = vrot.lane.b32.xlu0 %v1599, 96
        %v1730 = vpop.permute.xlu0 %1729
        %1731 = vrot.lane.b32.xlu0 %v1600, 96
        %v1732 = vpop.permute.xlu0 %1731
        %1733 = vrot.lane.b32.xlu0 %v1601, 96
        %v1734 = vpop.permute.xlu0 %1733
        %1735 = vrot.lane.b32.xlu0 %v1602, 96
        %v1736 = vpop.permute.xlu0 %1735
        %1737 = vrot.lane.b32.xlu0 %v1603, 96
        %v1738 = vpop.permute.xlu0 %1737
        %1739 = vrot.lane.b32.xlu0 %v1604, 96
        %v1740 = vpop.permute.xlu0 %1739
        %1741 = vrot.lane.b32.xlu0 %v1605, 96
        %v1742 = vpop.permute.xlu0 %1741
        %1743 = vrot.lane.b32.xlu0 %v1606, 96
        %v1744 = vpop.permute.xlu0 %1743
        %1745 = vrot.lane.b32.xlu0 %v1607, 96
        %v1746 = vpop.permute.xlu0 %1745
        %1747 = vrot.lane.b32.xlu0 %v1608, 96
        %v1748 = vpop.permute.xlu0 %1747
        %1749 = vrot.lane.b32.xlu0 %v1609, 96
        %v1750 = vpop.permute.xlu0 %1749
        %1751 = vrot.lane.b32.xlu0 %v1610, 96
        %v1752 = vpop.permute.xlu0 %1751
        %1753 = vrot.lane.b32.xlu0 %v1611, 96
        %v1754 = vpop.permute.xlu0 %1753
        %1755 = vrot.lane.b32.xlu0 %v1612, 96
        %v1756 = vpop.permute.xlu0 %1755
        %vm1757 = vcmask 130048
        %v1759 = vsel %vm1757, %v1597, 0
        %v1762 = vsel %vm1757, %v1598, 0
        %v1765 = vsel %vm1757, %v1599, 0
        %v1768 = vsel %vm1757, %v1600, 0
        %v1771 = vsel %vm1757, %v1601, 0
        %v1774 = vsel %vm1757, %v1602, 0
        %v1777 = vsel %vm1757, %v1603, 0
        %v1780 = vsel %vm1757, %v1604, 0
        %v1783 = vsel %vm1757, %v1605, 0
        %v1786 = vsel %vm1757, %v1606, 0
        %v1789 = vsel %vm1757, %v1607, 0
        %v1792 = vsel %vm1757, %v1608, 0
        %v1795 = vsel %vm1757, %v1609, 0
        %v1798 = vsel %vm1757, %v1610, 0
        %v1801 = vsel %vm1757, %v1611, 0
        %v1804 = vsel %vm1757, %v1612, 0
        %v1807 = vsel %vm1757, %v1726, 0
        %v1810 = vsel %vm1757, %v1728, 0
        %v1813 = vsel %vm1757, %v1730, 0
        %v1816 = vsel %vm1757, %v1732, 0
        %v1819 = vsel %vm1757, %v1734, 0
        %v1822 = vsel %vm1757, %v1736, 0
        %v1825 = vsel %vm1757, %v1738, 0
        %v1828 = vsel %vm1757, %v1740, 0
        %v1831 = vsel %vm1757, %v1742, 0
        %v1834 = vsel %vm1757, %v1744, 0
        %v1837 = vsel %vm1757, %v1746, 0
        %v1840 = vsel %vm1757, %v1748, 0
        %v1843 = vsel %vm1757, %v1750, 0
        %v1846 = vsel %vm1757, %v1752, 0
        %v1849 = vsel %vm1757, %v1754, 0
        %v1852 = vsel %vm1757, %v1756, 0
        %1854 = vmatprep.subr.bf16.mxu0 0
        %1855 = vmatpush1.bf16.xpose.msra.mxu0 %v1807
        %1856 = vmatprep.subr.bf16.mxu0 0
        %1857 = vmatpush1.bf16.xpose.msra.mxu0 %v1810
        %1858 = vmatprep.subr.bf16.mxu0 0
        %1859 = vmatpush1.bf16.xpose.msra.mxu0 %v1813
        %1860 = vmatprep.subr.bf16.mxu0 0
        %1861 = vmatpush1.bf16.xpose.msra.mxu0 %v1816
        %1862 = vmatprep.subr.bf16.mxu0 0
        %1863 = vmatpush1.bf16.xpose.msra.mxu0 %v1819
        %1864 = vmatprep.subr.bf16.mxu0 0
        %1865 = vmatpush1.bf16.xpose.msra.mxu0 %v1822
        %1866 = vmatprep.subr.bf16.mxu0 0
        %1867 = vmatpush1.bf16.xpose.msra.mxu0 %v1825
        %1868 = vmatprep.subr.bf16.mxu0 0
        %1869 = vmatpush1.bf16.xpose.msra.mxu0 %v1828
        %1870 = vmatprep.subr.bf16.mxu0 0
        %1871 = vmatpush1.bf16.xpose.msra.mxu0 %v1831
        %1872 = vmatprep.subr.bf16.mxu0 0
        %1873 = vmatpush1.bf16.xpose.msra.mxu0 %v1834
        %1874 = vmatprep.subr.bf16.mxu0 0
        %1875 = vmatpush1.bf16.xpose.msra.mxu0 %v1837
        %1876 = vmatprep.subr.bf16.mxu0 0
        %1877 = vmatpush1.bf16.xpose.msra.mxu0 %v1840
        %1878 = vmatprep.subr.bf16.mxu0 0
        %1879 = vmatpush1.bf16.xpose.msra.mxu0 %v1843
        %1880 = vmatprep.subr.bf16.mxu0 0
        %1881 = vmatpush1.bf16.xpose.msra.mxu0 %v1846
        %1882 = vmatprep.subr.bf16.mxu0 0
        %1883 = vmatpush1.bf16.xpose.msra.mxu0 %v1849
        %1884 = vmatprep.subr.bf16.mxu0 0
        %1885 = vmatpush1.bf16.xpose.msra.mxu0 %v1852
        %1886 = vmatprep.mubr.bf16.mxu0 0
        %1887 = vmatmul.mubr.bf16.gmra.mrb[0].mxu0 %v1759
        %v1888 = vpop.f32.mrb[0].mxu0
        %v1889 = vadd.f32 %v1645, %v1888
        %v1890 = vpop.f32.mrb[0].mxu0
        %v1891 = vadd.f32 %v1646, %v1890
        %v1892 = vpop.f32.mrb[0].mxu0
        %v1893 = vadd.f32 %v1647, %v1892
        %v1894 = vpop.f32.mrb[0].mxu0
        %v1895 = vadd.f32 %v1648, %v1894
        %1896 = vmatprep.mubr.bf16.mxu0 0
        %1897 = vmatmul.mubr.bf16.gmra.mrb[0].mxu0 %v1762
        %v1898 = vpop.f32.mrb[0].mxu0
        %v1899 = vadd.f32 %v1649, %v1898
        %v1900 = vpop.f32.mrb[0].mxu0
        %v1901 = vadd.f32 %v1650, %v1900
        %v1902 = vpop.f32.mrb[0].mxu0
        %v1903 = vadd.f32 %v1651, %v1902
        %v1904 = vpop.f32.mrb[0].mxu0
        %v1905 = vadd.f32 %v1652, %v1904
        %1906 = vmatprep.mubr.bf16.mxu0 0
        %1907 = vmatmul.mubr.bf16.gmra.mrb[0].mxu0 %v1765
        %v1908 = vpop.f32.mrb[0].mxu0
        %v1909 = vadd.f32 %v1653, %v1908
        %v1910 = vpop.f32.mrb[0].mxu0
        %v1911 = vadd.f32 %v1654, %v1910
        %v1912 = vpop.f32.mrb[0].mxu0
        %v1913 = vadd.f32 %v1655, %v1912
        %v1914 = vpop.f32.mrb[0].mxu0
        %v1915 = vadd.f32 %v1656, %v1914
        %1916 = vmatprep.mubr.bf16.mxu0 0
        %1917 = vmatmul.mubr.bf16.gmra.mrb[0].mxu0 %v1768
        %v1918 = vpop.f32.mrb[0].mxu0
        %v1919 = vadd.f32 %v1657, %v1918
        %v1920 = vpop.f32.mrb[0].mxu0
        %v1921 = vadd.f32 %v1658, %v1920
        %v1922 = vpop.f32.mrb[0].mxu0
        %v1923 = vadd.f32 %v1659, %v1922
        %v1924 = vpop.f32.mrb[0].mxu0
        %v1925 = vadd.f32 %v1660, %v1924
        %1926 = vmatprep.mubr.bf16.mxu0 0
        %1927 = vmatmul.mubr.bf16.gmra.mrb[0].mxu0 %v1771
        %v1928 = vpop.f32.mrb[0].mxu0
        %v1929 = vadd.f32 %v1661, %v1928
        %v1930 = vpop.f32.mrb[0].mxu0
        %v1931 = vadd.f32 %v1662, %v1930
        %v1932 = vpop.f32.mrb[0].mxu0
        %v1933 = vadd.f32 %v1663, %v1932
        %v1934 = vpop.f32.mrb[0].mxu0
        %v1935 = vadd.f32 %v1664, %v1934
        %1936 = vmatprep.mubr.bf16.mxu0 0
        %1937 = vmatmul.mubr.bf16.gmra.mrb[0].mxu0 %v1774
        %v1938 = vpop.f32.mrb[0].mxu0
        %v1939 = vadd.f32 %v1665, %v1938
        %v1940 = vpop.f32.mrb[0].mxu0
        %v1941 = vadd.f32 %v1666, %v1940
        %v1942 = vpop.f32.mrb[0].mxu0
        %v1943 = vadd.f32 %v1667, %v1942
        %v1944 = vpop.f32.mrb[0].mxu0
        %v1945 = vadd.f32 %v1668, %v1944
        %1946 = vmatprep.mubr.bf16.mxu0 0
        %1947 = vmatmul.mubr.bf16.gmra.mrb[0].mxu0 %v1777
        %v1948 = vpop.f32.mrb[0].mxu0
        %v1949 = vadd.f32 %v1669, %v1948
        %v1950 = vpop.f32.mrb[0].mxu0
        %v1951 = vadd.f32 %v1670, %v1950
        %v1952 = vpop.f32.mrb[0].mxu0
        %v1953 = vadd.f32 %v1671, %v1952
        %v1954 = vpop.f32.mrb[0].mxu0
        %v1955 = vadd.f32 %v1672, %v1954
        %1956 = vmatprep.mubr.bf16.mxu0 0
        %1957 = vmatmul.mubr.bf16.gmra.mrb[0].mxu0 %v1780
        %v1958 = vpop.f32.mrb[0].mxu0
        %v1959 = vadd.f32 %v1673, %v1958
        %v1960 = vpop.f32.mrb[0].mxu0
        %v1961 = vadd.f32 %v1674, %v1960
        %v1962 = vpop.f32.mrb[0].mxu0
        %v1963 = vadd.f32 %v1675, %v1962
        %v1964 = vpop.f32.mrb[0].mxu0
        %v1965 = vadd.f32 %v1676, %v1964
        %1966 = vmatprep.mubr.bf16.mxu0 0
        %1967 = vmatmul.mubr.bf16.gmra.mrb[0].mxu0 %v1783
        %v1968 = vpop.f32.mrb[0].mxu0
        %v1969 = vadd.f32 %v1677, %v1968
        %v1970 = vpop.f32.mrb[0].mxu0
        %v1971 = vadd.f32 %v1678, %v1970
        %v1972 = vpop.f32.mrb[0].mxu0
        %v1973 = vadd.f32 %v1679, %v1972
        %v1974 = vpop.f32.mrb[0].mxu0
        %v1975 = vadd.f32 %v1680, %v1974
        %1976 = vmatprep.mubr.bf16.mxu0 0
        %1977 = vmatmul.mubr.bf16.gmra.mrb[0].mxu0 %v1786
        %v1978 = vpop.f32.mrb[0].mxu0
        %v1979 = vadd.f32 %v1681, %v1978
        %v1980 = vpop.f32.mrb[0].mxu0
        %v1981 = vadd.f32 %v1682, %v1980
        %v1982 = vpop.f32.mrb[0].mxu0
        %v1983 = vadd.f32 %v1683, %v1982
        %v1984 = vpop.f32.mrb[0].mxu0
        %v1985 = vadd.f32 %v1684, %v1984
        %1986 = vmatprep.mubr.bf16.mxu0 0
        %1987 = vmatmul.mubr.bf16.gmra.mrb[0].mxu0 %v1789
        %v1988 = vpop.f32.mrb[0].mxu0
        %v1989 = vadd.f32 %v1685, %v1988
        %v1990 = vpop.f32.mrb[0].mxu0
        %v1991 = vadd.f32 %v1686, %v1990
        %v1992 = vpop.f32.mrb[0].mxu0
        %v1993 = vadd.f32 %v1687, %v1992
        %v1994 = vpop.f32.mrb[0].mxu0
        %v1995 = vadd.f32 %v1688, %v1994
        %1996 = vmatprep.mubr.bf16.mxu0 0
        %1997 = vmatmul.mubr.bf16.gmra.mrb[0].mxu0 %v1792
        %v1998 = vpop.f32.mrb[0].mxu0
        %v1999 = vadd.f32 %v1689, %v1998
        %v2000 = vpop.f32.mrb[0].mxu0
        %v2001 = vadd.f32 %v1690, %v2000
        %v2002 = vpop.f32.mrb[0].mxu0
        %v2003 = vadd.f32 %v1691, %v2002
        %v2004 = vpop.f32.mrb[0].mxu0
        %v2005 = vadd.f32 %v1692, %v2004
        %2006 = vmatprep.mubr.bf16.mxu0 0
        %2007 = vmatmul.mubr.bf16.gmra.mrb[0].mxu0 %v1795
        %v2008 = vpop.f32.mrb[0].mxu0
        %v2009 = vadd.f32 %v1693, %v2008
        %v2010 = vpop.f32.mrb[0].mxu0
        %v2011 = vadd.f32 %v1694, %v2010
        %v2012 = vpop.f32.mrb[0].mxu0
        %v2013 = vadd.f32 %v1695, %v2012
        %v2014 = vpop.f32.mrb[0].mxu0
        %v2015 = vadd.f32 %v1696, %v2014
        %2016 = vmatprep.mubr.bf16.mxu0 0
        %2017 = vmatmul.mubr.bf16.gmra.mrb[0].mxu0 %v1798
        %v2018 = vpop.f32.mrb[0].mxu0
        %v2019 = vadd.f32 %v1697, %v2018
        %v2020 = vpop.f32.mrb[0].mxu0
        %v2021 = vadd.f32 %v1698, %v2020
        %v2022 = vpop.f32.mrb[0].mxu0
        %v2023 = vadd.f32 %v1699, %v2022
        %v2024 = vpop.f32.mrb[0].mxu0
        %v2025 = vadd.f32 %v1700, %v2024
        %2026 = vmatprep.mubr.bf16.mxu0 0
        %2027 = vmatmul.mubr.bf16.gmra.mrb[0].mxu0 %v1801
        %v2028 = vpop.f32.mrb[0].mxu0
        %v2029 = vadd.f32 %v1701, %v2028
        %v2030 = vpop.f32.mrb[0].mxu0
        %v2031 = vadd.f32 %v1702, %v2030
        %v2032 = vpop.f32.mrb[0].mxu0
        %v2033 = vadd.f32 %v1703, %v2032
        %v2034 = vpop.f32.mrb[0].mxu0
        %v2035 = vadd.f32 %v1704, %v2034
        %2036 = vmatprep.mubr.bf16.mxu0 0
        %2037 = vmatmul.mubr.bf16.gmra.mrb[0].mxu0 %v1804
        %v2038 = vpop.f32.mrb[0].mxu0
        %v2039 = vadd.f32 %v1705, %v2038
        %v2040 = vpop.f32.mrb[0].mxu0
        %v2041 = vadd.f32 %v1706, %v2040
        %v2042 = vpop.f32.mrb[0].mxu0
        %v2043 = vadd.f32 %v1707, %v2042
        %v2044 = vpop.f32.mrb[0].mxu0
        %v2045 = vadd.f32 %v1708, %v2044
        %2046 = vdwg.mxu0
        %v2047 = vmax.f32 %v1889, %v1891
        %2048 = vmax.xlane.f32.xlu0 %v2047
        %v2049 = vpop.xlane.xlu0 %2048
        %v2050 = vmax.f32 %v1893, %v1895
        %2051 = vmax.xlane.f32.xlu0 %v2050
        %v2052 = vpop.xlane.xlu0 %2051
        %v2053 = vmax.f32 %v1899, %v1901
        %2054 = vmax.xlane.f32.xlu0 %v2053
        %v2055 = vpop.xlane.xlu0 %2054
        %v2056 = vmax.f32 %v1903, %v1905
        %2057 = vmax.xlane.f32.xlu0 %v2056
        %v2058 = vpop.xlane.xlu0 %2057
        %v2059 = vmax.f32 %v1909, %v1911
        %2060 = vmax.xlane.f32.xlu0 %v2059
        %v2061 = vpop.xlane.xlu0 %2060
        %v2062 = vmax.f32 %v1913, %v1915
        %2063 = vmax.xlane.f32.xlu0 %v2062
        %v2064 = vpop.xlane.xlu0 %2063
        %v2065 = vmax.f32 %v1919, %v1921
        %2066 = vmax.xlane.f32.xlu0 %v2065
        %v2067 = vpop.xlane.xlu0 %2066
        %v2068 = vmax.f32 %v1923, %v1925
        %2069 = vmax.xlane.f32.xlu0 %v2068
        %v2070 = vpop.xlane.xlu0 %2069
        %v2071 = vmax.f32 %v1929, %v1931
        %2072 = vmax.xlane.f32.xlu0 %v2071
        %v2073 = vpop.xlane.xlu0 %2072
        %v2074 = vmax.f32 %v1933, %v1935
        %2075 = vmax.xlane.f32.xlu0 %v2074
        %v2076 = vpop.xlane.xlu0 %2075
        %v2077 = vmax.f32 %v1939, %v1941
        %2078 = vmax.xlane.f32.xlu0 %v2077
        %v2079 = vpop.xlane.xlu0 %2078
        %v2080 = vmax.f32 %v1943, %v1945
        %2081 = vmax.xlane.f32.xlu0 %v2080
        %v2082 = vpop.xlane.xlu0 %2081
        %v2083 = vmax.f32 %v1949, %v1951
        %2084 = vmax.xlane.f32.xlu0 %v2083
        %v2085 = vpop.xlane.xlu0 %2084
        %v2086 = vmax.f32 %v1953, %v1955
        %2087 = vmax.xlane.f32.xlu0 %v2086
        %v2088 = vpop.xlane.xlu0 %2087
        %v2089 = vmax.f32 %v1959, %v1961
        %2090 = vmax.xlane.f32.xlu0 %v2089
        %v2091 = vpop.xlane.xlu0 %2090
        %v2092 = vmax.f32 %v1963, %v1965
        %2093 = vmax.xlane.f32.xlu0 %v2092
        %v2094 = vpop.xlane.xlu0 %2093
        %v2095 = vmax.f32 %v1969, %v1971
        %2096 = vmax.xlane.f32.xlu0 %v2095
        %v2097 = vpop.xlane.xlu0 %2096
        %v2098 = vmax.f32 %v1973, %v1975
        %2099 = vmax.xlane.f32.xlu0 %v2098
        %v2100 = vpop.xlane.xlu0 %2099
        %v2101 = vmax.f32 %v1979, %v1981
        %2102 = vmax.xlane.f32.xlu0 %v2101
        %v2103 = vpop.xlane.xlu0 %2102
        %v2104 = vmax.f32 %v1983, %v1985
        %2105 = vmax.xlane.f32.xlu0 %v2104
        %v2106 = vpop.xlane.xlu0 %2105
        %v2107 = vmax.f32 %v1989, %v1991
        %2108 = vmax.xlane.f32.xlu0 %v2107
        %v2109 = vpop.xlane.xlu0 %2108
        %v2110 = vmax.f32 %v1993, %v1995
        %2111 = vmax.xlane.f32.xlu0 %v2110
        %v2112 = vpop.xlane.xlu0 %2111
        %v2113 = vmax.f32 %v1999, %v2001
        %2114 = vmax.xlane.f32.xlu0 %v2113
        %v2115 = vpop.xlane.xlu0 %2114
        %v2116 = vmax.f32 %v2003, %v2005
        %2117 = vmax.xlane.f32.xlu0 %v2116
        %v2118 = vpop.xlane.xlu0 %2117
        %v2119 = vmax.f32 %v2009, %v2011
        %2120 = vmax.xlane.f32.xlu0 %v2119
        %v2121 = vpop.xlane.xlu0 %2120
        %v2122 = vmax.f32 %v2013, %v2015
        %2123 = vmax.xlane.f32.xlu0 %v2122
        %v2124 = vpop.xlane.xlu0 %2123
        %v2125 = vmax.f32 %v2019, %v2021
        %2126 = vmax.xlane.f32.xlu0 %v2125
        %v2127 = vpop.xlane.xlu0 %2126
        %v2128 = vmax.f32 %v2023, %v2025
        %2129 = vmax.xlane.f32.xlu0 %v2128
        %v2130 = vpop.xlane.xlu0 %2129
        %v2131 = vmax.f32 %v2029, %v2031
        %2132 = vmax.xlane.f32.xlu0 %v2131
        %v2133 = vpop.xlane.xlu0 %2132
        %v2134 = vmax.f32 %v2033, %v2035
        %2135 = vmax.xlane.f32.xlu0 %v2134
        %v2136 = vpop.xlane.xlu0 %2135
        %v2137 = vmax.f32 %v2039, %v2041
        %2138 = vmax.xlane.f32.xlu0 %v2137
        %v2139 = vpop.xlane.xlu0 %2138
        %v2140 = vmax.f32 %v2043, %v2045
        %2141 = vmax.xlane.f32.xlu0 %v2140
        %v2142 = vpop.xlane.xlu0 %2141
        %v2143 = vsub.f32 %v1889, %v2049
        %v2144 = vsub.f32 %v1891, %v2049
        %v2145 = vsub.f32 %v1893, %v2052
        %v2146 = vsub.f32 %v1895, %v2052
        %v2147 = vsub.f32 %v1899, %v2055
        %v2148 = vsub.f32 %v1901, %v2055
        %v2149 = vsub.f32 %v1903, %v2058
        %v2150 = vsub.f32 %v1905, %v2058
        %v2151 = vsub.f32 %v1909, %v2061
        %v2152 = vsub.f32 %v1911, %v2061
        %v2153 = vsub.f32 %v1913, %v2064
        %v2154 = vsub.f32 %v1915, %v2064
        %v2155 = vsub.f32 %v1919, %v2067
        %v2156 = vsub.f32 %v1921, %v2067
        %v2157 = vsub.f32 %v1923, %v2070
        %v2158 = vsub.f32 %v1925, %v2070
        %v2159 = vsub.f32 %v1929, %v2073
        %v2160 = vsub.f32 %v1931, %v2073
        %v2161 = vsub.f32 %v1933, %v2076
        %v2162 = vsub.f32 %v1935, %v2076
        %v2163 = vsub.f32 %v1939, %v2079
        %v2164 = vsub.f32 %v1941, %v2079
        %v2165 = vsub.f32 %v1943, %v2082
        %v2166 = vsub.f32 %v1945, %v2082
        %v2167 = vsub.f32 %v1949, %v2085
        %v2168 = vsub.f32 %v1951, %v2085
        %v2169 = vsub.f32 %v1953, %v2088
        %v2170 = vsub.f32 %v1955, %v2088
        %v2171 = vsub.f32 %v1959, %v2091
        %v2172 = vsub.f32 %v1961, %v2091
        %v2173 = vsub.f32 %v1963, %v2094
        %v2174 = vsub.f32 %v1965, %v2094
        %v2175 = vsub.f32 %v1969, %v2097
        %v2176 = vsub.f32 %v1971, %v2097
        %v2177 = vsub.f32 %v1973, %v2100
        %v2178 = vsub.f32 %v1975, %v2100
        %v2179 = vsub.f32 %v1979, %v2103
        %v2180 = vsub.f32 %v1981, %v2103
        %v2181 = vsub.f32 %v1983, %v2106
        %v2182 = vsub.f32 %v1985, %v2106
        %v2183 = vsub.f32 %v1989, %v2109
        %v2184 = vsub.f32 %v1991, %v2109
        %v2185 = vsub.f32 %v1993, %v2112
        %v2186 = vsub.f32 %v1995, %v2112
        %v2187 = vsub.f32 %v1999, %v2115
        %v2188 = vsub.f32 %v2001, %v2115
        %v2189 = vsub.f32 %v2003, %v2118
        %v2190 = vsub.f32 %v2005, %v2118
        %v2191 = vsub.f32 %v2009, %v2121
        %v2192 = vsub.f32 %v2011, %v2121
        %v2193 = vsub.f32 %v2013, %v2124
        %v2194 = vsub.f32 %v2015, %v2124
        %v2195 = vsub.f32 %v2019, %v2127
        %v2196 = vsub.f32 %v2021, %v2127
        %v2197 = vsub.f32 %v2023, %v2130
        %v2198 = vsub.f32 %v2025, %v2130
        %v2199 = vsub.f32 %v2029, %v2133
        %v2200 = vsub.f32 %v2031, %v2133
        %v2201 = vsub.f32 %v2033, %v2136
        %v2202 = vsub.f32 %v2035, %v2136
        %v2203 = vsub.f32 %v2039, %v2139
        %v2204 = vsub.f32 %v2041, %v2139
        %v2205 = vsub.f32 %v2043, %v2142
        %v2206 = vsub.f32 %v2045, %v2142
        %v2207 = vmul.f32 %v2143, 1.442695
        %v2208 = vpow.pop %v2207
        %v2209 = vmul.f32 %v2144, 1.442695
        %v2210 = vpow.pop %v2209
        %v2211 = vmul.f32 %v2145, 1.442695
        %v2212 = vpow.pop %v2211
        %v2213 = vmul.f32 %v2146, 1.442695
        %v2214 = vpow.pop %v2213
        %v2215 = vmul.f32 %v2147, 1.442695
        %v2216 = vpow.pop %v2215
        %v2217 = vmul.f32 %v2148, 1.442695
        %v2218 = vpow.pop %v2217
        %v2219 = vmul.f32 %v2149, 1.442695
        %v2220 = vpow.pop %v2219
        %v2221 = vmul.f32 %v2150, 1.442695
        %v2222 = vpow.pop %v2221
        %v2223 = vmul.f32 %v2151, 1.442695
        %v2224 = vpow.pop %v2223
        %v2225 = vmul.f32 %v2152, 1.442695
        %v2226 = vpow.pop %v2225
        %v2227 = vmul.f32 %v2153, 1.442695
        %v2228 = vpow.pop %v2227
        %v2229 = vmul.f32 %v2154, 1.442695
        %v2230 = vpow.pop %v2229
        %v2231 = vmul.f32 %v2155, 1.442695
        %v2232 = vpow.pop %v2231
        %v2233 = vmul.f32 %v2156, 1.442695
        %v2234 = vpow.pop %v2233
        %v2235 = vmul.f32 %v2157, 1.442695
        %v2236 = vpow.pop %v2235
        %v2237 = vmul.f32 %v2158, 1.442695
        %v2238 = vpow.pop %v2237
        %v2239 = vmul.f32 %v2159, 1.442695
        %v2240 = vpow.pop %v2239
        %v2241 = vmul.f32 %v2160, 1.442695
        %v2242 = vpow.pop %v2241
        %v2243 = vmul.f32 %v2161, 1.442695
        %v2244 = vpow.pop %v2243
        %v2245 = vmul.f32 %v2162, 1.442695
        %v2246 = vpow.pop %v2245
        %v2247 = vmul.f32 %v2163, 1.442695
        %v2248 = vpow.pop %v2247
        %v2249 = vmul.f32 %v2164, 1.442695
        %v2250 = vpow.pop %v2249
        %v2251 = vmul.f32 %v2165, 1.442695
        %v2252 = vpow.pop %v2251
        %v2253 = vmul.f32 %v2166, 1.442695
        %v2254 = vpow.pop %v2253
        %v2255 = vmul.f32 %v2167, 1.442695
        %v2256 = vpow.pop %v2255
        %v2257 = vmul.f32 %v2168, 1.442695
        %v2258 = vpow.pop %v2257
        %v2259 = vmul.f32 %v2169, 1.442695
        %v2260 = vpow.pop %v2259
        %v2261 = vmul.f32 %v2170, 1.442695
        %v2262 = vpow.pop %v2261
        %v2263 = vmul.f32 %v2171, 1.442695
        %v2264 = vpow.pop %v2263
        %v2265 = vmul.f32 %v2172, 1.442695
        %v2266 = vpow.pop %v2265
        %v2267 = vmul.f32 %v2173, 1.442695
        %v2268 = vpow.pop %v2267
        %v2269 = vmul.f32 %v2174, 1.442695
        %v2270 = vpow.pop %v2269
        %v2271 = vmul.f32 %v2175, 1.442695
        %v2272 = vpow.pop %v2271
        %v2273 = vmul.f32 %v2176, 1.442695
        %v2274 = vpow.pop %v2273
        %v2275 = vmul.f32 %v2177, 1.442695
        %v2276 = vpow.pop %v2275
        %v2277 = vmul.f32 %v2178, 1.442695
        %v2278 = vpow.pop %v2277
        %v2279 = vmul.f32 %v2179, 1.442695
        %v2280 = vpow.pop %v2279
        %v2281 = vmul.f32 %v2180, 1.442695
        %v2282 = vpow.pop %v2281
        %v2283 = vmul.f32 %v2181, 1.442695
        %v2284 = vpow.pop %v2283
        %v2285 = vmul.f32 %v2182, 1.442695
        %v2286 = vpow.pop %v2285
        %v2287 = vmul.f32 %v2183, 1.442695
        %v2288 = vpow.pop %v2287
        %v2289 = vmul.f32 %v2184, 1.442695
        %v2290 = vpow.pop %v2289
        %v2291 = vmul.f32 %v2185, 1.442695
        %v2292 = vpow.pop %v2291
        %v2293 = vmul.f32 %v2186, 1.442695
        %v2294 = vpow.pop %v2293
        %v2295 = vmul.f32 %v2187, 1.442695
        %v2296 = vpow.pop %v2295
        %v2297 = vmul.f32 %v2188, 1.442695
        %v2298 = vpow.pop %v2297
        %v2299 = vmul.f32 %v2189, 1.442695
        %v2300 = vpow.pop %v2299
        %v2301 = vmul.f32 %v2190, 1.442695
        %v2302 = vpow.pop %v2301
        %v2303 = vmul.f32 %v2191, 1.442695
        %v2304 = vpow.pop %v2303
        %v2305 = vmul.f32 %v2192, 1.442695
        %v2306 = vpow.pop %v2305
        %v2307 = vmul.f32 %v2193, 1.442695
        %v2308 = vpow.pop %v2307
        %v2309 = vmul.f32 %v2194, 1.442695
        %v2310 = vpow.pop %v2309
        %v2311 = vmul.f32 %v2195, 1.442695
        %v2312 = vpow.pop %v2311
        %v2313 = vmul.f32 %v2196, 1.442695
        %v2314 = vpow.pop %v2313
        %v2315 = vmul.f32 %v2197, 1.442695
        %v2316 = vpow.pop %v2315
        %v2317 = vmul.f32 %v2198, 1.442695
        %v2318 = vpow.pop %v2317
        %v2319 = vmul.f32 %v2199, 1.442695
        %v2320 = vpow.pop %v2319
        %v2321 = vmul.f32 %v2200, 1.442695
        %v2322 = vpow.pop %v2321
        %v2323 = vmul.f32 %v2201, 1.442695
        %v2324 = vpow.pop %v2323
        %v2325 = vmul.f32 %v2202, 1.442695
        %v2326 = vpow.pop %v2325
        %v2327 = vmul.f32 %v2203, 1.442695
        %v2328 = vpow.pop %v2327
        %v2329 = vmul.f32 %v2204, 1.442695
        %v2330 = vpow.pop %v2329
        %v2331 = vmul.f32 %v2205, 1.442695
        %v2332 = vpow.pop %v2331
        %v2333 = vmul.f32 %v2206, 1.442695
        %v2334 = vpow.pop %v2333
        %v2335 = vadd.f32 %v2208, %v2210
        %2336 = vadd.xlane.f32.xlu0 %v2335
        %v2337 = vpop.xlane.xlu0 %2336
        %v2338 = vadd.f32 %v2212, %v2214
        %2339 = vadd.xlane.f32.xlu0 %v2338
        %v2340 = vpop.xlane.xlu0 %2339
        %v2341 = vadd.f32 %v2216, %v2218
        %2342 = vadd.xlane.f32.xlu0 %v2341
        %v2343 = vpop.xlane.xlu0 %2342
        %v2344 = vadd.f32 %v2220, %v2222
        %2345 = vadd.xlane.f32.xlu0 %v2344
        %v2346 = vpop.xlane.xlu0 %2345
        %v2347 = vadd.f32 %v2224, %v2226
        %2348 = vadd.xlane.f32.xlu0 %v2347
        %v2349 = vpop.xlane.xlu0 %2348
        %v2350 = vadd.f32 %v2228, %v2230
        %2351 = vadd.xlane.f32.xlu0 %v2350
        %v2352 = vpop.xlane.xlu0 %2351
        %v2353 = vadd.f32 %v2232, %v2234
        %2354 = vadd.xlane.f32.xlu0 %v2353
        %v2355 = vpop.xlane.xlu0 %2354
        %v2356 = vadd.f32 %v2236, %v2238
        %2357 = vadd.xlane.f32.xlu0 %v2356
        %v2358 = vpop.xlane.xlu0 %2357
        %v2359 = vadd.f32 %v2240, %v2242
        %2360 = vadd.xlane.f32.xlu0 %v2359
        %v2361 = vpop.xlane.xlu0 %2360
        %v2362 = vadd.f32 %v2244, %v2246
        %2363 = vadd.xlane.f32.xlu0 %v2362
        %v2364 = vpop.xlane.xlu0 %2363
        %v2365 = vadd.f32 %v2248, %v2250
        %2366 = vadd.xlane.f32.xlu0 %v2365
        %v2367 = vpop.xlane.xlu0 %2366
        %v2368 = vadd.f32 %v2252, %v2254
        %2369 = vadd.xlane.f32.xlu0 %v2368
        %v2370 = vpop.xlane.xlu0 %2369
        %v2371 = vadd.f32 %v2256, %v2258
        %2372 = vadd.xlane.f32.xlu0 %v2371
        %v2373 = vpop.xlane.xlu0 %2372
        %v2374 = vadd.f32 %v2260, %v2262
        %2375 = vadd.xlane.f32.xlu0 %v2374
        %v2376 = vpop.xlane.xlu0 %2375
        %v2377 = vadd.f32 %v2264, %v2266
        %2378 = vadd.xlane.f32.xlu0 %v2377
        %v2379 = vpop.xlane.xlu0 %2378
        %v2380 = vadd.f32 %v2268, %v2270
        %2381 = vadd.xlane.f32.xlu0 %v2380
        %v2382 = vpop.xlane.xlu0 %2381
        %v2383 = vadd.f32 %v2272, %v2274
        %2384 = vadd.xlane.f32.xlu0 %v2383
        %v2385 = vpop.xlane.xlu0 %2384
        %v2386 = vadd.f32 %v2276, %v2278
        %2387 = vadd.xlane.f32.xlu0 %v2386
        %v2388 = vpop.xlane.xlu0 %2387
        %v2389 = vadd.f32 %v2280, %v2282
        %2390 = vadd.xlane.f32.xlu0 %v2389
        %v2391 = vpop.xlane.xlu0 %2390
        %v2392 = vadd.f32 %v2284, %v2286
        %2393 = vadd.xlane.f32.xlu0 %v2392
        %v2394 = vpop.xlane.xlu0 %2393
        %v2395 = vadd.f32 %v2288, %v2290
        %2396 = vadd.xlane.f32.xlu0 %v2395
        %v2397 = vpop.xlane.xlu0 %2396
        %v2398 = vadd.f32 %v2292, %v2294
        %2399 = vadd.xlane.f32.xlu0 %v2398
        %v2400 = vpop.xlane.xlu0 %2399
        %v2401 = vadd.f32 %v2296, %v2298
        %2402 = vadd.xlane.f32.xlu0 %v2401
        %v2403 = vpop.xlane.xlu0 %2402
        %v2404 = vadd.f32 %v2300, %v2302
        %2405 = vadd.xlane.f32.xlu0 %v2404
        %v2406 = vpop.xlane.xlu0 %2405
        %v2407 = vadd.f32 %v2304, %v2306
        %2408 = vadd.xlane.f32.xlu0 %v2407
        %v2409 = vpop.xlane.xlu0 %2408
        %v2410 = vadd.f32 %v2308, %v2310
        %2411 = vadd.xlane.f32.xlu0 %v2410
        %v2412 = vpop.xlane.xlu0 %2411
        %v2413 = vadd.f32 %v2312, %v2314
        %2414 = vadd.xlane.f32.xlu0 %v2413
        %v2415 = vpop.xlane.xlu0 %2414
        %v2416 = vadd.f32 %v2316, %v2318
        %2417 = vadd.xlane.f32.xlu0 %v2416
        %v2418 = vpop.xlane.xlu0 %2417
        %v2419 = vadd.f32 %v2320, %v2322
        %2420 = vadd.xlane.f32.xlu0 %v2419
        %v2421 = vpop.xlane.xlu0 %2420
        %v2422 = vadd.f32 %v2324, %v2326
        %2423 = vadd.xlane.f32.xlu0 %v2422
        %v2424 = vpop.xlane.xlu0 %2423
        %v2425 = vadd.f32 %v2328, %v2330
        %2426 = vadd.xlane.f32.xlu0 %v2425
        %v2427 = vpop.xlane.xlu0 %2426
        %v2428 = vadd.f32 %v2332, %v2334
        %2429 = vadd.xlane.f32.xlu0 %v2428
        %v2430 = vpop.xlane.xlu0 %2429
        %v2431 = vrcp.pop %v2337
        %v2432 = vrcp.pop %v2340
        %v2433 = vrcp.pop %v2343
        %v2434 = vrcp.pop %v2346
        %v2435 = vrcp.pop %v2349
        %v2436 = vrcp.pop %v2352
        %v2437 = vrcp.pop %v2355
        %v2438 = vrcp.pop %v2358
        %v2439 = vrcp.pop %v2361
        %v2440 = vrcp.pop %v2364
        %v2441 = vrcp.pop %v2367
        %v2442 = vrcp.pop %v2370
        %v2443 = vrcp.pop %v2373
        %v2444 = vrcp.pop %v2376
        %v2445 = vrcp.pop %v2379
        %v2446 = vrcp.pop %v2382
        %v2447 = vrcp.pop %v2385
        %v2448 = vrcp.pop %v2388
        %v2449 = vrcp.pop %v2391
        %v2450 = vrcp.pop %v2394
        %v2451 = vrcp.pop %v2397
        %v2452 = vrcp.pop %v2400
        %v2453 = vrcp.pop %v2403
        %v2454 = vrcp.pop %v2406
        %v2455 = vrcp.pop %v2409
        %v2456 = vrcp.pop %v2412
        %v2457 = vrcp.pop %v2415
        %v2458 = vrcp.pop %v2418
        %v2459 = vrcp.pop %v2421
        %v2460 = vrcp.pop %v2424
        %v2461 = vrcp.pop %v2427
        %v2462 = vrcp.pop %v2430
        %v2463 = vpack.c.bf16 %v2212, %v2208
        %v2464 = vpack.c.bf16 %v2214, %v2210
        %v2465 = vpack.c.bf16 %v2220, %v2216
        %v2466 = vpack.c.bf16 %v2222, %v2218
        %v2467 = vpack.c.bf16 %v2228, %v2224
        %v2468 = vpack.c.bf16 %v2230, %v2226
        %v2469 = vpack.c.bf16 %v2236, %v2232
        %v2470 = vpack.c.bf16 %v2238, %v2234
        %v2471 = vpack.c.bf16 %v2244, %v2240
        %v2472 = vpack.c.bf16 %v2246, %v2242
        %v2473 = vpack.c.bf16 %v2252, %v2248
        %v2474 = vpack.c.bf16 %v2254, %v2250
        %v2475 = vpack.c.bf16 %v2260, %v2256
        %v2476 = vpack.c.bf16 %v2262, %v2258
        %v2477 = vpack.c.bf16 %v2268, %v2264
        %v2478 = vpack.c.bf16 %v2270, %v2266
        %v2479 = vpack.c.bf16 %v2276, %v2272
        %v2480 = vpack.c.bf16 %v2278, %v2274
        %v2481 = vpack.c.bf16 %v2284, %v2280
        %v2482 = vpack.c.bf16 %v2286, %v2282
        %v2483 = vpack.c.bf16 %v2292, %v2288
        %v2484 = vpack.c.bf16 %v2294, %v2290
        %v2485 = vpack.c.bf16 %v2300, %v2296
        %v2486 = vpack.c.bf16 %v2302, %v2298
        %v2487 = vpack.c.bf16 %v2308, %v2304
        %v2488 = vpack.c.bf16 %v2310, %v2306
        %v2489 = vpack.c.bf16 %v2316, %v2312
        %v2490 = vpack.c.bf16 %v2318, %v2314
        %v2491 = vpack.c.bf16 %v2324, %v2320
        %v2492 = vpack.c.bf16 %v2326, %v2322
        %v2493 = vpack.c.bf16 %v2332, %v2328
        %v2494 = vpack.c.bf16 %v2334, %v2330
        %2495 = vrot.lane.b32.xlu0 %v1597, 64
        %v2496 = vpop.permute.xlu0 %2495
        %2497 = vrot.lane.b32.xlu0 %v1598, 64
        %v2498 = vpop.permute.xlu0 %2497
        %2499 = vrot.lane.b32.xlu0 %v1599, 64
        %v2500 = vpop.permute.xlu0 %2499
        %2501 = vrot.lane.b32.xlu0 %v1600, 64
        %v2502 = vpop.permute.xlu0 %2501
        %2503 = vrot.lane.b32.xlu0 %v1601, 64
        %v2504 = vpop.permute.xlu0 %2503
        %2505 = vrot.lane.b32.xlu0 %v1602, 64
        %v2506 = vpop.permute.xlu0 %2505
        %2507 = vrot.lane.b32.xlu0 %v1603, 64
        %v2508 = vpop.permute.xlu0 %2507
        %2509 = vrot.lane.b32.xlu0 %v1604, 64
        %v2510 = vpop.permute.xlu0 %2509
        %2511 = vrot.lane.b32.xlu0 %v1605, 64
        %v2512 = vpop.permute.xlu0 %2511
        %2513 = vrot.lane.b32.xlu0 %v1606, 64
        %v2514 = vpop.permute.xlu0 %2513
        %2515 = vrot.lane.b32.xlu0 %v1607, 64
        %v2516 = vpop.permute.xlu0 %2515
        %2517 = vrot.lane.b32.xlu0 %v1608, 64
        %v2518 = vpop.permute.xlu0 %2517
        %2519 = vrot.lane.b32.xlu0 %v1609, 64
        %v2520 = vpop.permute.xlu0 %2519
        %2521 = vrot.lane.b32.xlu0 %v1610, 64
        %v2522 = vpop.permute.xlu0 %2521
        %2523 = vrot.lane.b32.xlu0 %v1611, 64
        %v2524 = vpop.permute.xlu0 %2523
        %2525 = vrot.lane.b32.xlu0 %v1612, 64
        %v2526 = vpop.permute.xlu0 %2525
        %2543 = vmatprep.subr.bf16.mxu0 0
        %2544 = vmatpush1.bf16.msra.mxu0 %v2496
        %2545 = vmatprep.subr.bf16.mxu0 0
        %2546 = vmatpush1.bf16.msra.mxu0 %v2498
        %2547 = vmatprep.subr.bf16.mxu0 0
        %2548 = vmatpush1.bf16.msra.mxu0 %v2500
        %2549 = vmatprep.subr.bf16.mxu0 0
        %2550 = vmatpush1.bf16.msra.mxu0 %v2502
        %2551 = vmatprep.subr.bf16.mxu0 0
        %2552 = vmatpush1.bf16.msra.mxu0 %v2504
        %2553 = vmatprep.subr.bf16.mxu0 0
        %2554 = vmatpush1.bf16.msra.mxu0 %v2506
        %2555 = vmatprep.subr.bf16.mxu0 0
        %2556 = vmatpush1.bf16.msra.mxu0 %v2508
        %2557 = vmatprep.subr.bf16.mxu0 0
        %2558 = vmatpush1.bf16.msra.mxu0 %v2510
        %2559 = vmatprep.subr.bf16.mxu0 0
        %2560 = vmatpush1.bf16.msra.mxu0 %v2512
        %2561 = vmatprep.subr.bf16.mxu0 0
        %2562 = vmatpush1.bf16.msra.mxu0 %v2514
        %2563 = vmatprep.subr.bf16.mxu0 0
        %2564 = vmatpush1.bf16.msra.mxu0 %v2516
        %2565 = vmatprep.subr.bf16.mxu0 0
        %2566 = vmatpush1.bf16.msra.mxu0 %v2518
        %2567 = vmatprep.subr.bf16.mxu0 0
        %2568 = vmatpush1.bf16.msra.mxu0 %v2520
        %2569 = vmatprep.subr.bf16.mxu0 0
        %2570 = vmatpush1.bf16.msra.mxu0 %v2522
        %2571 = vmatprep.subr.bf16.mxu0 0
        %2572 = vmatpush1.bf16.msra.mxu0 %v2524
        %2573 = vmatprep.subr.bf16.mxu0 0
        %2574 = vmatpush1.bf16.msra.mxu0 %v2526
        %2575 = vmatprep.mubr.bf16.mxu0 %v2464
        %2576 = vmatmul.mubr.bf16.gmra.mrb[0].mxu0 %v2463
        %v2577 = vpop.f32.mrb[0].mxu0
        %v2578 = vadd.f32 0.0, %v2577
        %v2579 = vpop.f32.mrb[0].mxu0
        %v2580 = vpop.f32.mrb[0].mxu0
        %v2581 = vadd.f32 0.0, %v2580
        %v2582 = vpop.f32.mrb[0].mxu0
        %2583 = vmatprep.mubr.bf16.mxu0 %v2466
        %2584 = vmatmul.mubr.bf16.gmra.mrb[0].mxu0 %v2465
        %v2585 = vpop.f32.mrb[0].mxu0
        %v2586 = vadd.f32 0.0, %v2585
        %v2587 = vpop.f32.mrb[0].mxu0
        %v2588 = vpop.f32.mrb[0].mxu0
        %v2589 = vadd.f32 0.0, %v2588
        %v2590 = vpop.f32.mrb[0].mxu0
        %2591 = vmatprep.mubr.bf16.mxu0 %v2468
        %2592 = vmatmul.mubr.bf16.gmra.mrb[0].mxu0 %v2467
        %v2593 = vpop.f32.mrb[0].mxu0
        %v2594 = vadd.f32 0.0, %v2593
        %v2595 = vpop.f32.mrb[0].mxu0
        %v2596 = vpop.f32.mrb[0].mxu0
        %v2597 = vadd.f32 0.0, %v2596
        %v2598 = vpop.f32.mrb[0].mxu0
        %2599 = vmatprep.mubr.bf16.mxu0 %v2470
        %2600 = vmatmul.mubr.bf16.gmra.mrb[0].mxu0 %v2469
        %v2601 = vpop.f32.mrb[0].mxu0
        %v2602 = vadd.f32 0.0, %v2601
        %v2603 = vpop.f32.mrb[0].mxu0
        %v2604 = vpop.f32.mrb[0].mxu0
        %v2605 = vadd.f32 0.0, %v2604
        %v2606 = vpop.f32.mrb[0].mxu0
        %2607 = vmatprep.mubr.bf16.mxu0 %v2472
        %2608 = vmatmul.mubr.bf16.gmra.mrb[0].mxu0 %v2471
        %v2609 = vpop.f32.mrb[0].mxu0
        %v2610 = vadd.f32 0.0, %v2609
        %v2611 = vpop.f32.mrb[0].mxu0
        %v2612 = vpop.f32.mrb[0].mxu0
        %v2613 = vadd.f32 0.0, %v2612
        %v2614 = vpop.f32.mrb[0].mxu0
        %2615 = vmatprep.mubr.bf16.mxu0 %v2474
        %2616 = vmatmul.mubr.bf16.gmra.mrb[0].mxu0 %v2473
        %v2617 = vpop.f32.mrb[0].mxu0
        %v2618 = vadd.f32 0.0, %v2617
        %v2619 = vpop.f32.mrb[0].mxu0
        %v2620 = vpop.f32.mrb[0].mxu0
        %v2621 = vadd.f32 0.0, %v2620
        %v2622 = vpop.f32.mrb[0].mxu0
        %2623 = vmatprep.mubr.bf16.mxu0 %v2476
        %2624 = vmatmul.mubr.bf16.gmra.mrb[0].mxu0 %v2475
        %v2625 = vpop.f32.mrb[0].mxu0
        %v2626 = vadd.f32 0.0, %v2625
        %v2627 = vpop.f32.mrb[0].mxu0
        %v2628 = vpop.f32.mrb[0].mxu0
        %v2629 = vadd.f32 0.0, %v2628
        %v2630 = vpop.f32.mrb[0].mxu0
        %2631 = vmatprep.mubr.bf16.mxu0 %v2478
        %2632 = vmatmul.mubr.bf16.gmra.mrb[0].mxu0 %v2477
        %v2633 = vpop.f32.mrb[0].mxu0
        %v2634 = vadd.f32 0.0, %v2633
        %v2635 = vpop.f32.mrb[0].mxu0
        %v2636 = vpop.f32.mrb[0].mxu0
        %v2637 = vadd.f32 0.0, %v2636
        %v2638 = vpop.f32.mrb[0].mxu0
        %2639 = vmatprep.mubr.bf16.mxu0 %v2480
        %2640 = vmatmul.mubr.bf16.gmra.mrb[0].mxu0 %v2479
        %v2641 = vpop.f32.mrb[0].mxu0
        %v2642 = vadd.f32 0.0, %v2641
        %v2643 = vpop.f32.mrb[0].mxu0
        %v2644 = vpop.f32.mrb[0].mxu0
        %v2645 = vadd.f32 0.0, %v2644
        %v2646 = vpop.f32.mrb[0].mxu0
        %2647 = vmatprep.mubr.bf16.mxu0 %v2482
        %2648 = vmatmul.mubr.bf16.gmra.mrb[0].mxu0 %v2481
        %v2649 = vpop.f32.mrb[0].mxu0
        %v2650 = vadd.f32 0.0, %v2649
        %v2651 = vpop.f32.mrb[0].mxu0
        %v2652 = vpop.f32.mrb[0].mxu0
        %v2653 = vadd.f32 0.0, %v2652
        %v2654 = vpop.f32.mrb[0].mxu0
        %2655 = vmatprep.mubr.bf16.mxu0 %v2484
        %2656 = vmatmul.mubr.bf16.gmra.mrb[0].mxu0 %v2483
        %v2657 = vpop.f32.mrb[0].mxu0
        %v2658 = vadd.f32 0.0, %v2657
        %v2659 = vpop.f32.mrb[0].mxu0
        %v2660 = vpop.f32.mrb[0].mxu0
        %v2661 = vadd.f32 0.0, %v2660
        %v2662 = vpop.f32.mrb[0].mxu0
        %2663 = vmatprep.mubr.bf16.mxu0 %v2486
        %2664 = vmatmul.mubr.bf16.gmra.mrb[0].mxu0 %v2485
        %v2665 = vpop.f32.mrb[0].mxu0
        %v2666 = vadd.f32 0.0, %v2665
        %v2667 = vpop.f32.mrb[0].mxu0
        %v2668 = vpop.f32.mrb[0].mxu0
        %v2669 = vadd.f32 0.0, %v2668
        %v2670 = vpop.f32.mrb[0].mxu0
        %2671 = vmatprep.mubr.bf16.mxu0 %v2488
        %2672 = vmatmul.mubr.bf16.gmra.mrb[0].mxu0 %v2487
        %v2673 = vpop.f32.mrb[0].mxu0
        %v2674 = vadd.f32 0.0, %v2673
        %v2675 = vpop.f32.mrb[0].mxu0
        %v2676 = vpop.f32.mrb[0].mxu0
        %v2677 = vadd.f32 0.0, %v2676
        %v2678 = vpop.f32.mrb[0].mxu0
        %2679 = vmatprep.mubr.bf16.mxu0 %v2490
        %2680 = vmatmul.mubr.bf16.gmra.mrb[0].mxu0 %v2489
        %v2681 = vpop.f32.mrb[0].mxu0
        %v2682 = vadd.f32 0.0, %v2681
        %v2683 = vpop.f32.mrb[0].mxu0
        %v2684 = vpop.f32.mrb[0].mxu0
        %v2685 = vadd.f32 0.0, %v2684
        %v2686 = vpop.f32.mrb[0].mxu0
        %2687 = vmatprep.mubr.bf16.mxu0 %v2492
        %2688 = vmatmul.mubr.bf16.gmra.mrb[0].mxu0 %v2491
        %v2689 = vpop.f32.mrb[0].mxu0
        %v2690 = vadd.f32 0.0, %v2689
        %v2691 = vpop.f32.mrb[0].mxu0
        %v2692 = vpop.f32.mrb[0].mxu0
        %v2693 = vadd.f32 0.0, %v2692
        %v2694 = vpop.f32.mrb[0].mxu0
        %2695 = vmatprep.mubr.bf16.mxu0 %v2494
        %2696 = vmatmul.mubr.bf16.gmra.mrb[0].mxu0 %v2493
        %v2697 = vpop.f32.mrb[0].mxu0
        %v2698 = vadd.f32 0.0, %v2697
        %v2699 = vpop.f32.mrb[0].mxu0
        %v2700 = vpop.f32.mrb[0].mxu0
        %v2701 = vadd.f32 0.0, %v2700
        %v2702 = vpop.f32.mrb[0].mxu0
        %2703 = vdwg.mxu0
        %v2704 = vmul.f32 %v2578, %v2431
        %v2705 = vmul.f32 %v2581, %v2432
        %v2706 = vmul.f32 %v2586, %v2433
        %v2707 = vmul.f32 %v2589, %v2434
        %v2708 = vmul.f32 %v2594, %v2435
        %v2709 = vmul.f32 %v2597, %v2436
        %v2710 = vmul.f32 %v2602, %v2437
        %v2711 = vmul.f32 %v2605, %v2438
        %v2712 = vmul.f32 %v2610, %v2439
        %v2713 = vmul.f32 %v2613, %v2440
        %v2714 = vmul.f32 %v2618, %v2441
        %v2715 = vmul.f32 %v2621, %v2442
        %v2716 = vmul.f32 %v2626, %v2443
        %v2717 = vmul.f32 %v2629, %v2444
        %v2718 = vmul.f32 %v2634, %v2445
        %v2719 = vmul.f32 %v2637, %v2446
        %v2720 = vmul.f32 %v2642, %v2447
        %v2721 = vmul.f32 %v2645, %v2448
        %v2722 = vmul.f32 %v2650, %v2449
        %v2723 = vmul.f32 %v2653, %v2450
        %v2724 = vmul.f32 %v2658, %v2451
        %v2725 = vmul.f32 %v2661, %v2452
        %v2726 = vmul.f32 %v2666, %v2453
        %v2727 = vmul.f32 %v2669, %v2454
        %v2728 = vmul.f32 %v2674, %v2455
        %v2729 = vmul.f32 %v2677, %v2456
        %v2730 = vmul.f32 %v2682, %v2457
        %v2731 = vmul.f32 %v2685, %v2458
        %v2732 = vmul.f32 %v2690, %v2459
        %v2733 = vmul.f32 %v2693, %v2460
        %v2734 = vmul.f32 %v2698, %v2461
        %v2735 = vmul.f32 %v2701, %v2462
        %v2736 = vpack.c.bf16 %v2705, %v2704
        %v2737 = vpack.c.bf16 %v2707, %v2706
        %v2738 = vpack.c.bf16 %v2709, %v2708
        %v2739 = vpack.c.bf16 %v2711, %v2710
        %v2740 = vpack.c.bf16 %v2713, %v2712
        %v2741 = vpack.c.bf16 %v2715, %v2714
        %v2742 = vpack.c.bf16 %v2717, %v2716
        %v2743 = vpack.c.bf16 %v2719, %v2718
        %v2744 = vpack.c.bf16 %v2721, %v2720
        %v2745 = vpack.c.bf16 %v2723, %v2722
        %v2746 = vpack.c.bf16 %v2725, %v2724
        %v2747 = vpack.c.bf16 %v2727, %v2726
        %v2748 = vpack.c.bf16 %v2729, %v2728
        %v2749 = vpack.c.bf16 %v2731, %v2730
        %v2750 = vpack.c.bf16 %v2733, %v2732
        %v2751 = vpack.c.bf16 %v2735, %v2734
        %v2752 = vld [vmem:[%s681] sm:$0xf]
        %v2753 = vld [vmem:[%s681 + $0x4] sm:$0xf]
        %v2756 = vunpack.c.l.b16 %v2752
        %v2757 = vunpack.c.l.b16 %v2753
        %v2758 = vpack.c.b16 %v2757, %v2756
        %v2761 = vsel %vm1757, %v2736, 0
        %v2764 = vsel %vm1757, %v2737, 0
        %v2767 = vsel %vm1757, %v2738, 0
        %v2770 = vsel %vm1757, %v2739, 0
        %v2773 = vsel %vm1757, %v2740, 0
        %v2776 = vsel %vm1757, %v2741, 0
        %v2779 = vsel %vm1757, %v2742, 0
        %v2782 = vsel %vm1757, %v2743, 0
        %v2785 = vsel %vm1757, %v2744, 0
        %v2788 = vsel %vm1757, %v2745, 0
        %v2791 = vsel %vm1757, %v2746, 0
        %v2794 = vsel %vm1757, %v2747, 0
        %v2797 = vsel %vm1757, %v2748, 0
        %v2800 = vsel %vm1757, %v2749, 0
        %v2803 = vsel %vm1757, %v2750, 0
        %v2806 = vsel %vm1757, %v2751, 0
        %2808 = vmatprep.subr.bf16.mxu0 0
        %2809 = vmatpush1.bf16.msra.mxu0 %v2758
        %2810 = vmatprep.subr.bf16.mxu0 0
        %2811 = vmatpush1.bf16.msra.mxu0 0
        %2812 = vmatprep.subr.bf16.mxu0 0
        %2813 = vmatpush1.bf16.msra.mxu0 0
        %2814 = vmatprep.subr.bf16.mxu0 0
        %2815 = vmatpush1.bf16.msra.mxu0 0
        %2816 = vmatprep.subr.bf16.mxu0 0
        %2817 = vmatpush1.bf16.msra.mxu0 0
        %2818 = vmatprep.subr.bf16.mxu0 0
        %2819 = vmatpush1.bf16.msra.mxu0 0
        %2820 = vmatprep.subr.bf16.mxu0 0
        %2821 = vmatpush1.bf16.msra.mxu0 0
        %2822 = vmatprep.subr.bf16.mxu0 0
        %2823 = vmatpush1.bf16.msra.mxu0 0
        %2824 = vmatprep.subr.bf16.mxu0 0
        %2825 = vmatpush1.bf16.msra.mxu0 0
        %2826 = vmatprep.subr.bf16.mxu0 0
        %2827 = vmatpush1.bf16.msra.mxu0 0
        %2828 = vmatprep.subr.bf16.mxu0 0
        %2829 = vmatpush1.bf16.msra.mxu0 0
        %2830 = vmatprep.subr.bf16.mxu0 0
        %2831 = vmatpush1.bf16.msra.mxu0 0
        %2832 = vmatprep.subr.bf16.mxu0 0
        %2833 = vmatpush1.bf16.msra.mxu0 0
        %2834 = vmatprep.subr.bf16.mxu0 0
        %2835 = vmatpush1.bf16.msra.mxu0 0
        %2836 = vmatprep.subr.bf16.mxu0 0
        %2837 = vmatpush1.bf16.msra.mxu0 0
        %2838 = vmatprep.subr.bf16.mxu0 0
        %2839 = vmatpush1.bf16.msra.mxu0 0
        %2840 = vmatprep.mubr.bf16.mxu0 0
        %2841 = vmatmul.mubr.bf16.gmra.mrb[0].mxu0 %v2761
        %v2842 = vpop.f32.mrb[0].mxu0
        %v2843 = vadd.f32 0.0, %v2842
        %v2844 = vpop.f32.mrb[0].mxu0
        %v2845 = vpop.f32.mrb[0].mxu0
        %v2846 = vadd.f32 0.0, %v2845
        %v2847 = vpop.f32.mrb[0].mxu0
        %2848 = vmatprep.mubr.bf16.mxu0 0
        %2849 = vmatmul.mubr.bf16.gmra.mrb[0].mxu0 %v2764
        %v2850 = vpop.f32.mrb[0].mxu0
        %v2851 = vadd.f32 0.0, %v2850
        %v2852 = vpop.f32.mrb[0].mxu0
        %v2853 = vpop.f32.mrb[0].mxu0
        %v2854 = vadd.f32 0.0, %v2853
        %v2855 = vpop.f32.mrb[0].mxu0
        %2856 = vmatprep.mubr.bf16.mxu0 0
        %2857 = vmatmul.mubr.bf16.gmra.mrb[0].mxu0 %v2767
        %v2858 = vpop.f32.mrb[0].mxu0
        %v2859 = vadd.f32 0.0, %v2858
        %v2860 = vpop.f32.mrb[0].mxu0
        %v2861 = vpop.f32.mrb[0].mxu0
        %v2862 = vadd.f32 0.0, %v2861
        %v2863 = vpop.f32.mrb[0].mxu0
        %2864 = vmatprep.mubr.bf16.mxu0 0
        %2865 = vmatmul.mubr.bf16.gmra.mrb[0].mxu0 %v2770
        %v2866 = vpop.f32.mrb[0].mxu0
        %v2867 = vadd.f32 0.0, %v2866
        %v2868 = vpop.f32.mrb[0].mxu0
        %v2869 = vpop.f32.mrb[0].mxu0
        %v2870 = vadd.f32 0.0, %v2869
        %v2871 = vpop.f32.mrb[0].mxu0
        %2872 = vmatprep.mubr.bf16.mxu0 0
        %2873 = vmatmul.mubr.bf16.gmra.mrb[0].mxu0 %v2773
        %v2874 = vpop.f32.mrb[0].mxu0
        %v2875 = vadd.f32 0.0, %v2874
        %v2876 = vpop.f32.mrb[0].mxu0
        %v2877 = vpop.f32.mrb[0].mxu0
        %v2878 = vadd.f32 0.0, %v2877
        %v2879 = vpop.f32.mrb[0].mxu0
        %2880 = vmatprep.mubr.bf16.mxu0 0
        %2881 = vmatmul.mubr.bf16.gmra.mrb[0].mxu0 %v2776
        %v2882 = vpop.f32.mrb[0].mxu0
        %v2883 = vadd.f32 0.0, %v2882
        %v2884 = vpop.f32.mrb[0].mxu0
        %v2885 = vpop.f32.mrb[0].mxu0
        %v2886 = vadd.f32 0.0, %v2885
        %v2887 = vpop.f32.mrb[0].mxu0
        %2888 = vmatprep.mubr.bf16.mxu0 0
        %2889 = vmatmul.mubr.bf16.gmra.mrb[0].mxu0 %v2779
        %v2890 = vpop.f32.mrb[0].mxu0
        %v2891 = vadd.f32 0.0, %v2890
        %v2892 = vpop.f32.mrb[0].mxu0
        %v2893 = vpop.f32.mrb[0].mxu0
        %v2894 = vadd.f32 0.0, %v2893
        %v2895 = vpop.f32.mrb[0].mxu0
        %2896 = vmatprep.mubr.bf16.mxu0 0
        %2897 = vmatmul.mubr.bf16.gmra.mrb[0].mxu0 %v2782
        %v2898 = vpop.f32.mrb[0].mxu0
        %v2899 = vadd.f32 0.0, %v2898
        %v2900 = vpop.f32.mrb[0].mxu0
        %v2901 = vpop.f32.mrb[0].mxu0
        %v2902 = vadd.f32 0.0, %v2901
        %v2903 = vpop.f32.mrb[0].mxu0
        %2904 = vmatprep.mubr.bf16.mxu0 0
        %2905 = vmatmul.mubr.bf16.gmra.mrb[0].mxu0 %v2785
        %v2906 = vpop.f32.mrb[0].mxu0
        %v2907 = vadd.f32 0.0, %v2906
        %v2908 = vpop.f32.mrb[0].mxu0
        %v2909 = vpop.f32.mrb[0].mxu0
        %v2910 = vadd.f32 0.0, %v2909
        %v2911 = vpop.f32.mrb[0].mxu0
        %2912 = vmatprep.mubr.bf16.mxu0 0
        %2913 = vmatmul.mubr.bf16.gmra.mrb[0].mxu0 %v2788
        %v2914 = vpop.f32.mrb[0].mxu0
        %v2915 = vadd.f32 0.0, %v2914
        %v2916 = vpop.f32.mrb[0].mxu0
        %v2917 = vpop.f32.mrb[0].mxu0
        %v2918 = vadd.f32 0.0, %v2917
        %v2919 = vpop.f32.mrb[0].mxu0
        %2920 = vmatprep.mubr.bf16.mxu0 0
        %2921 = vmatmul.mubr.bf16.gmra.mrb[0].mxu0 %v2791
        %v2922 = vpop.f32.mrb[0].mxu0
        %v2923 = vadd.f32 0.0, %v2922
        %v2924 = vpop.f32.mrb[0].mxu0
        %v2925 = vpop.f32.mrb[0].mxu0
        %v2926 = vadd.f32 0.0, %v2925
        %v2927 = vpop.f32.mrb[0].mxu0
        %2928 = vmatprep.mubr.bf16.mxu0 0
        %2929 = vmatmul.mubr.bf16.gmra.mrb[0].mxu0 %v2794
        %v2930 = vpop.f32.mrb[0].mxu0
        %v2931 = vadd.f32 0.0, %v2930
        %v2932 = vpop.f32.mrb[0].mxu0
        %v2933 = vpop.f32.mrb[0].mxu0
        %v2934 = vadd.f32 0.0, %v2933
        %v2935 = vpop.f32.mrb[0].mxu0
        %2936 = vmatprep.mubr.bf16.mxu0 0
        %2937 = vmatmul.mubr.bf16.gmra.mrb[0].mxu0 %v2797
        %v2938 = vpop.f32.mrb[0].mxu0
        %v2939 = vadd.f32 0.0, %v2938
        %v2940 = vpop.f32.mrb[0].mxu0
        %v2941 = vpop.f32.mrb[0].mxu0
        %v2942 = vadd.f32 0.0, %v2941
        %v2943 = vpop.f32.mrb[0].mxu0
        %2944 = vmatprep.mubr.bf16.mxu0 0
        %2945 = vmatmul.mubr.bf16.gmra.mrb[0].mxu0 %v2800
        %v2946 = vpop.f32.mrb[0].mxu0
        %v2947 = vadd.f32 0.0, %v2946
        %v2948 = vpop.f32.mrb[0].mxu0
        %v2949 = vpop.f32.mrb[0].mxu0
        %v2950 = vadd.f32 0.0, %v2949
        %v2951 = vpop.f32.mrb[0].mxu0
        %2952 = vmatprep.mubr.bf16.mxu0 0
        %2953 = vmatmul.mubr.bf16.gmra.mrb[0].mxu0 %v2803
        %v2954 = vpop.f32.mrb[0].mxu0
        %v2955 = vadd.f32 0.0, %v2954
        %v2956 = vpop.f32.mrb[0].mxu0
        %v2957 = vpop.f32.mrb[0].mxu0
        %v2958 = vadd.f32 0.0, %v2957
        %v2959 = vpop.f32.mrb[0].mxu0
        %2960 = vmatprep.mubr.bf16.mxu0 0
        %2961 = vmatmul.mubr.bf16.gmra.mrb[0].mxu0 %v2806
        %v2962 = vpop.f32.mrb[0].mxu0
        %v2963 = vadd.f32 0.0, %v2962
        %v2964 = vpop.f32.mrb[0].mxu0
        %v2965 = vpop.f32.mrb[0].mxu0
        %v2966 = vadd.f32 0.0, %v2965
        %v2967 = vpop.f32.mrb[0].mxu0
        %2968 = vdwg.mxu0
        %v2969 = vadd.f32 %v1565, %v2843
        %v2970 = vadd.f32 %v1566, %v2846
        %v2971 = vadd.f32 %v1567, %v2851
        %v2972 = vadd.f32 %v1568, %v2854
        %v2973 = vadd.f32 %v1569, %v2859
        %v2974 = vadd.f32 %v1570, %v2862
        %v2975 = vadd.f32 %v1571, %v2867
        %v2976 = vadd.f32 %v1572, %v2870
        %v2977 = vadd.f32 %v1573, %v2875
        %v2978 = vadd.f32 %v1574, %v2878
        %v2979 = vadd.f32 %v1575, %v2883
        %v2980 = vadd.f32 %v1576, %v2886
        %v2981 = vadd.f32 %v1577, %v2891
        %v2982 = vadd.f32 %v1578, %v2894
        %v2983 = vadd.f32 %v1579, %v2899
        %v2984 = vadd.f32 %v1580, %v2902
        %v2985 = vadd.f32 %v1581, %v2907
        %v2986 = vadd.f32 %v1582, %v2910
        %v2987 = vadd.f32 %v1583, %v2915
        %v2988 = vadd.f32 %v1584, %v2918
        %v2989 = vadd.f32 %v1585, %v2923
        %v2990 = vadd.f32 %v1586, %v2926
        %v2991 = vadd.f32 %v1587, %v2931
        %v2992 = vadd.f32 %v1588, %v2934
        %v2993 = vadd.f32 %v1589, %v2939
        %v2994 = vadd.f32 %v1590, %v2942
        %v2995 = vadd.f32 %v1591, %v2947
        %v2996 = vadd.f32 %v1592, %v2950
        %v2997 = vadd.f32 %v1593, %v2955
        %v2998 = vadd.f32 %v1594, %v2958
        %v2999 = vadd.f32 %v1595, %v2963
        %v3000 = vadd.f32 %v1596, %v2966
        %s3001 = scalar_lea.vmem %s564, 256 [#allocation2]
        %v3002 = vld [vmem:[%s3001] sm:$0xff]
        %v3003 = vld [vmem:[%s3001 + $0x8] sm:$0xff]
        %v3004 = vld [vmem:[%s3001 + $0x10] sm:$0xff]
        %v3005 = vld [vmem:[%s3001 + $0x18] sm:$0xff]
        %v3006 = vld [vmem:[%s3001 + $0x20] sm:$0xff]
        %v3007 = vld [vmem:[%s3001 + $0x28] sm:$0xff]
        %v3008 = vld [vmem:[%s3001 + $0x30] sm:$0xff]
        %v3009 = vld [vmem:[%s3001 + $0x38] sm:$0xff]
        %v3010 = vld [vmem:[%s3001 + $0x40] sm:$0xff]
        %v3011 = vld [vmem:[%s3001 + $0x48] sm:$0xff]
        %v3012 = vld [vmem:[%s3001 + $0x50] sm:$0xff]
        %v3013 = vld [vmem:[%s3001 + $0x58] sm:$0xff]
        %v3014 = vld [vmem:[%s3001 + $0x60] sm:$0xff]
        %v3015 = vld [vmem:[%s3001 + $0x68] sm:$0xff]
        %v3016 = vld [vmem:[%s3001 + $0x70] sm:$0xff]
        %v3017 = vld [vmem:[%s3001 + $0x78] sm:$0xff]
        %v3018 = vld [vmem:[%s3001 + $0x80] sm:$0xff]
        %v3019 = vld [vmem:[%s3001 + $0x88] sm:$0xff]
        %v3020 = vld [vmem:[%s3001 + $0x90] sm:$0xff]
        %v3021 = vld [vmem:[%s3001 + $0x98] sm:$0xff]
        %v3022 = vld [vmem:[%s3001 + $0xa0] sm:$0xff]
        %v3023 = vld [vmem:[%s3001 + $0xa8] sm:$0xff]
        %v3024 = vld [vmem:[%s3001 + $0xb0] sm:$0xff]
        %v3025 = vld [vmem:[%s3001 + $0xb8] sm:$0xff]
        %v3026 = vld [vmem:[%s3001 + $0xc0] sm:$0xff]
        %v3027 = vld [vmem:[%s3001 + $0xc8] sm:$0xff]
        %v3028 = vld [vmem:[%s3001 + $0xd0] sm:$0xff]
        %v3029 = vld [vmem:[%s3001 + $0xd8] sm:$0xff]
        %v3030 = vld [vmem:[%s3001 + $0xe0] sm:$0xff]
        %v3031 = vld [vmem:[%s3001 + $0xe8] sm:$0xff]
        %v3032 = vld [vmem:[%s3001 + $0xf0] sm:$0xff]
        %v3033 = vld [vmem:[%s3001 + $0xf8] sm:$0xff]
        %v3034 = vunpack.c.l.bf16 %v3002
        %v3035 = vunpack.c.h.bf16 %v3002
        %v3036 = vunpack.c.l.bf16 %v3003
        %v3037 = vunpack.c.h.bf16 %v3003
        %v3038 = vunpack.c.l.bf16 %v3004
        %v3039 = vunpack.c.h.bf16 %v3004
        %v3040 = vunpack.c.l.bf16 %v3005
        %v3041 = vunpack.c.h.bf16 %v3005
        %v3042 = vunpack.c.l.bf16 %v3006
        %v3043 = vunpack.c.h.bf16 %v3006
        %v3044 = vunpack.c.l.bf16 %v3007
        %v3045 = vunpack.c.h.bf16 %v3007
        %v3046 = vunpack.c.l.bf16 %v3008
        %v3047 = vunpack.c.h.bf16 %v3008
        %v3048 = vunpack.c.l.bf16 %v3009
        %v3049 = vunpack.c.h.bf16 %v3009
        %v3050 = vunpack.c.l.bf16 %v3010
        %v3051 = vunpack.c.h.bf16 %v3010
        %v3052 = vunpack.c.l.bf16 %v3011
        %v3053 = vunpack.c.h.bf16 %v3011
        %v3054 = vunpack.c.l.bf16 %v3012
        %v3055 = vunpack.c.h.bf16 %v3012
        %v3056 = vunpack.c.l.bf16 %v3013
        %v3057 = vunpack.c.h.bf16 %v3013
        %v3058 = vunpack.c.l.bf16 %v3014
        %v3059 = vunpack.c.h.bf16 %v3014
        %v3060 = vunpack.c.l.bf16 %v3015
        %v3061 = vunpack.c.h.bf16 %v3015
        %v3062 = vunpack.c.l.bf16 %v3016
        %v3063 = vunpack.c.h.bf16 %v3016
        %v3064 = vunpack.c.l.bf16 %v3017
        %v3065 = vunpack.c.h.bf16 %v3017
        %v3066 = vunpack.c.l.bf16 %v3018
        %v3067 = vunpack.c.h.bf16 %v3018
        %v3068 = vunpack.c.l.bf16 %v3019
        %v3069 = vunpack.c.h.bf16 %v3019
        %v3070 = vunpack.c.l.bf16 %v3020
        %v3071 = vunpack.c.h.bf16 %v3020
        %v3072 = vunpack.c.l.bf16 %v3021
        %v3073 = vunpack.c.h.bf16 %v3021
        %v3074 = vunpack.c.l.bf16 %v3022
        %v3075 = vunpack.c.h.bf16 %v3022
        %v3076 = vunpack.c.l.bf16 %v3023
        %v3077 = vunpack.c.h.bf16 %v3023
        %v3078 = vunpack.c.l.bf16 %v3024
        %v3079 = vunpack.c.h.bf16 %v3024
        %v3080 = vunpack.c.l.bf16 %v3025
        %v3081 = vunpack.c.h.bf16 %v3025
        %v3082 = vunpack.c.l.bf16 %v3026
        %v3083 = vunpack.c.h.bf16 %v3026
        %v3084 = vunpack.c.l.bf16 %v3027
        %v3085 = vunpack.c.h.bf16 %v3027
        %v3086 = vunpack.c.l.bf16 %v3028
        %v3087 = vunpack.c.h.bf16 %v3028
        %v3088 = vunpack.c.l.bf16 %v3029
        %v3089 = vunpack.c.h.bf16 %v3029
        %v3090 = vunpack.c.l.bf16 %v3030
        %v3091 = vunpack.c.h.bf16 %v3030
        %v3092 = vunpack.c.l.bf16 %v3031
        %v3093 = vunpack.c.h.bf16 %v3031
        %v3094 = vunpack.c.l.bf16 %v3032
        %v3095 = vunpack.c.h.bf16 %v3032
        %v3096 = vunpack.c.l.bf16 %v3033
        %v3097 = vunpack.c.h.bf16 %v3033
        %3098 = vrot.lane.b32.xlu0 %v1597, 112
        %v3099 = vpop.permute.xlu0 %3098
        %3100 = vrot.lane.b32.xlu0 %v1598, 112
        %v3101 = vpop.permute.xlu0 %3100
        %3102 = vrot.lane.b32.xlu0 %v1599, 112
        %v3103 = vpop.permute.xlu0 %3102
        %3104 = vrot.lane.b32.xlu0 %v1600, 112
        %v3105 = vpop.permute.xlu0 %3104
        %3106 = vrot.lane.b32.xlu0 %v1601, 112
        %v3107 = vpop.permute.xlu0 %3106
        %3108 = vrot.lane.b32.xlu0 %v1602, 112
        %v3109 = vpop.permute.xlu0 %3108
        %3110 = vrot.lane.b32.xlu0 %v1603, 112
        %v3111 = vpop.permute.xlu0 %3110
        %3112 = vrot.lane.b32.xlu0 %v1604, 112
        %v3113 = vpop.permute.xlu0 %3112
        %3114 = vrot.lane.b32.xlu0 %v1605, 112
        %v3115 = vpop.permute.xlu0 %3114
        %3116 = vrot.lane.b32.xlu0 %v1606, 112
        %v3117 = vpop.permute.xlu0 %3116
        %3118 = vrot.lane.b32.xlu0 %v1607, 112
        %v3119 = vpop.permute.xlu0 %3118
        %3120 = vrot.lane.b32.xlu0 %v1608, 112
        %v3121 = vpop.permute.xlu0 %3120
        %3122 = vrot.lane.b32.xlu0 %v1609, 112
        %v3123 = vpop.permute.xlu0 %3122
        %3124 = vrot.lane.b32.xlu0 %v1610, 112
        %v3125 = vpop.permute.xlu0 %3124
        %3126 = vrot.lane.b32.xlu0 %v1611, 112
        %v3127 = vpop.permute.xlu0 %3126
        %3128 = vrot.lane.b32.xlu0 %v1612, 112
        %v3129 = vpop.permute.xlu0 %3128
        %3130 = vrot.lane.b32.xlu0 %v1597, 80
        %v3131 = vpop.permute.xlu0 %3130
        %3132 = vrot.lane.b32.xlu0 %v1598, 80
        %v3133 = vpop.permute.xlu0 %3132
        %3134 = vrot.lane.b32.xlu0 %v1599, 80
        %v3135 = vpop.permute.xlu0 %3134
        %3136 = vrot.lane.b32.xlu0 %v1600, 80
        %v3137 = vpop.permute.xlu0 %3136
        %3138 = vrot.lane.b32.xlu0 %v1601, 80
        %v3139 = vpop.permute.xlu0 %3138
        %3140 = vrot.lane.b32.xlu0 %v1602, 80
        %v3141 = vpop.permute.xlu0 %3140
        %3142 = vrot.lane.b32.xlu0 %v1603, 80
        %v3143 = vpop.permute.xlu0 %3142
        %3144 = vrot.lane.b32.xlu0 %v1604, 80
        %v3145 = vpop.permute.xlu0 %3144
        %3146 = vrot.lane.b32.xlu0 %v1605, 80
        %v3147 = vpop.permute.xlu0 %3146
        %3148 = vrot.lane.b32.xlu0 %v1606, 80
        %v3149 = vpop.permute.xlu0 %3148
        %3150 = vrot.lane.b32.xlu0 %v1607, 80
        %v3151 = vpop.permute.xlu0 %3150
        %3152 = vrot.lane.b32.xlu0 %v1608, 80
        %v3153 = vpop.permute.xlu0 %3152
        %3154 = vrot.lane.b32.xlu0 %v1609, 80
        %v3155 = vpop.permute.xlu0 %3154
        %3156 = vrot.lane.b32.xlu0 %v1610, 80
        %v3157 = vpop.permute.xlu0 %3156
        %3158 = vrot.lane.b32.xlu0 %v1611, 80
        %v3159 = vpop.permute.xlu0 %3158
        %3160 = vrot.lane.b32.xlu0 %v1612, 80
        %v3161 = vpop.permute.xlu0 %3160
        %v3163 = vsel %vm1757, %v3099, 0
        %v3166 = vsel %vm1757, %v3101, 0
        %v3169 = vsel %vm1757, %v3103, 0
        %v3172 = vsel %vm1757, %v3105, 0
        %v3175 = vsel %vm1757, %v3107, 0
        %v3178 = vsel %vm1757, %v3109, 0
        %v3181 = vsel %vm1757, %v3111, 0
        %v3184 = vsel %vm1757, %v3113, 0
        %v3187 = vsel %vm1757, %v3115, 0
        %v3190 = vsel %vm1757, %v3117, 0
        %v3193 = vsel %vm1757, %v3119, 0
        %v3196 = vsel %vm1757, %v3121, 0
        %v3199 = vsel %vm1757, %v3123, 0
        %v3202 = vsel %vm1757, %v3125, 0
        %v3205 = vsel %vm1757, %v3127, 0
        %v3208 = vsel %vm1757, %v3129, 0
        %v3211 = vsel %vm1757, %v3131, 0
        %v3214 = vsel %vm1757, %v3133, 0
        %v3217 = vsel %vm1757, %v3135, 0
        %v3220 = vsel %vm1757, %v3137, 0
        %v3223 = vsel %vm1757, %v3139, 0
        %v3226 = vsel %vm1757, %v3141, 0
        %v3229 = vsel %vm1757, %v3143, 0
        %v3232 = vsel %vm1757, %v3145, 0
        %v3235 = vsel %vm1757, %v3147, 0
        %v3238 = vsel %vm1757, %v3149, 0
        %v3241 = vsel %vm1757, %v3151, 0
        %v3244 = vsel %vm1757, %v3153, 0
        %v3247 = vsel %vm1757, %v3155, 0
        %v3250 = vsel %vm1757, %v3157, 0
        %v3253 = vsel %vm1757, %v3159, 0
        %v3256 = vsel %vm1757, %v3161, 0
        %3258 = vmatprep.subr.bf16.mxu0 0
        %3259 = vmatpush1.bf16.xpose.msra.mxu0 %v3211
        %3260 = vmatprep.subr.bf16.mxu0 0
        %3261 = vmatpush1.bf16.xpose.msra.mxu0 %v3214
        %3262 = vmatprep.subr.bf16.mxu0 0
        %3263 = vmatpush1.bf16.xpose.msra.mxu0 %v3217
        %3264 = vmatprep.subr.bf16.mxu0 0
        %3265 = vmatpush1.bf16.xpose.msra.mxu0 %v3220
        %3266 = vmatprep.subr.bf16.mxu0 0
        %3267 = vmatpush1.bf16.xpose.msra.mxu0 %v3223
        %3268 = vmatprep.subr.bf16.mxu0 0
        %3269 = vmatpush1.bf16.xpose.msra.mxu0 %v3226
        %3270 = vmatprep.subr.bf16.mxu0 0
        %3271 = vmatpush1.bf16.xpose.msra.mxu0 %v3229
        %3272 = vmatprep.subr.bf16.mxu0 0
        %3273 = vmatpush1.bf16.xpose.msra.mxu0 %v3232
        %3274 = vmatprep.subr.bf16.mxu0 0
        %3275 = vmatpush1.bf16.xpose.msra.mxu0 %v3235
        %3276 = vmatprep.subr.bf16.mxu0 0
        %3277 = vmatpush1.bf16.xpose.msra.mxu0 %v3238
        %3278 = vmatprep.subr.bf16.mxu0 0
        %3279 = vmatpush1.bf16.xpose.msra.mxu0 %v3241
        %3280 = vmatprep.subr.bf16.mxu0 0
        %3281 = vmatpush1.bf16.xpose.msra.mxu0 %v3244
        %3282 = vmatprep.subr.bf16.mxu0 0
        %3283 = vmatpush1.bf16.xpose.msra.mxu0 %v3247
        %3284 = vmatprep.subr.bf16.mxu0 0
        %3285 = vmatpush1.bf16.xpose.msra.mxu0 %v3250
        %3286 = vmatprep.subr.bf16.mxu0 0
        %3287 = vmatpush1.bf16.xpose.msra.mxu0 %v3253
        %3288 = vmatprep.subr.bf16.mxu0 0
        %3289 = vmatpush1.bf16.xpose.msra.mxu0 %v3256
        %3290 = vmatprep.mubr.bf16.mxu0 0
        %3291 = vmatmul.mubr.bf16.gmra.mrb[0].mxu0 %v3163
        %v3292 = vpop.f32.mrb[0].mxu0
        %v3293 = vadd.f32 %v3034, %v3292
        %v3294 = vpop.f32.mrb[0].mxu0
        %v3295 = vadd.f32 %v3035, %v3294
        %v3296 = vpop.f32.mrb[0].mxu0
        %v3297 = vadd.f32 %v3036, %v3296
        %v3298 = vpop.f32.mrb[0].mxu0
        %v3299 = vadd.f32 %v3037, %v3298
        %3300 = vmatprep.mubr.bf16.mxu0 0
        %3301 = vmatmul.mubr.bf16.gmra.mrb[0].mxu0 %v3166
        %v3302 = vpop.f32.mrb[0].mxu0
        %v3303 = vadd.f32 %v3038, %v3302
        %v3304 = vpop.f32.mrb[0].mxu0
        %v3305 = vadd.f32 %v3039, %v3304
        %v3306 = vpop.f32.mrb[0].mxu0
        %v3307 = vadd.f32 %v3040, %v3306
        %v3308 = vpop.f32.mrb[0].mxu0
        %v3309 = vadd.f32 %v3041, %v3308
        %3310 = vmatprep.mubr.bf16.mxu0 0
        %3311 = vmatmul.mubr.bf16.gmra.mrb[0].mxu0 %v3169
        %v3312 = vpop.f32.mrb[0].mxu0
        %v3313 = vadd.f32 %v3042, %v3312
        %v3314 = vpop.f32.mrb[0].mxu0
        %v3315 = vadd.f32 %v3043, %v3314
        %v3316 = vpop.f32.mrb[0].mxu0
        %v3317 = vadd.f32 %v3044, %v3316
        %v3318 = vpop.f32.mrb[0].mxu0
        %v3319 = vadd.f32 %v3045, %v3318
        %3320 = vmatprep.mubr.bf16.mxu0 0
        %3321 = vmatmul.mubr.bf16.gmra.mrb[0].mxu0 %v3172
        %v3322 = vpop.f32.mrb[0].mxu0
        %v3323 = vadd.f32 %v3046, %v3322
        %v3324 = vpop.f32.mrb[0].mxu0
        %v3325 = vadd.f32 %v3047, %v3324
        %v3326 = vpop.f32.mrb[0].mxu0
        %v3327 = vadd.f32 %v3048, %v3326
        %v3328 = vpop.f32.mrb[0].mxu0
        %v3329 = vadd.f32 %v3049, %v3328
        %3330 = vmatprep.mubr.bf16.mxu0 0
        %3331 = vmatmul.mubr.bf16.gmra.mrb[0].mxu0 %v3175
        %v3332 = vpop.f32.mrb[0].mxu0
        %v3333 = vadd.f32 %v3050, %v3332
        %v3334 = vpop.f32.mrb[0].mxu0
        %v3335 = vadd.f32 %v3051, %v3334
        %v3336 = vpop.f32.mrb[0].mxu0
        %v3337 = vadd.f32 %v3052, %v3336
        %v3338 = vpop.f32.mrb[0].mxu0
        %v3339 = vadd.f32 %v3053, %v3338
        %3340 = vmatprep.mubr.bf16.mxu0 0
        %3341 = vmatmul.mubr.bf16.gmra.mrb[0].mxu0 %v3178
        %v3342 = vpop.f32.mrb[0].mxu0
        %v3343 = vadd.f32 %v3054, %v3342
        %v3344 = vpop.f32.mrb[0].mxu0
        %v3345 = vadd.f32 %v3055, %v3344
        %v3346 = vpop.f32.mrb[0].mxu0
        %v3347 = vadd.f32 %v3056, %v3346
        %v3348 = vpop.f32.mrb[0].mxu0
        %v3349 = vadd.f32 %v3057, %v3348
        %3350 = vmatprep.mubr.bf16.mxu0 0
        %3351 = vmatmul.mubr.bf16.gmra.mrb[0].mxu0 %v3181
        %v3352 = vpop.f32.mrb[0].mxu0
        %v3353 = vadd.f32 %v3058, %v3352
        %v3354 = vpop.f32.mrb[0].mxu0
        %v3355 = vadd.f32 %v3059, %v3354
        %v3356 = vpop.f32.mrb[0].mxu0
        %v3357 = vadd.f32 %v3060, %v3356
        %v3358 = vpop.f32.mrb[0].mxu0
        %v3359 = vadd.f32 %v3061, %v3358
        %3360 = vmatprep.mubr.bf16.mxu0 0
        %3361 = vmatmul.mubr.bf16.gmra.mrb[0].mxu0 %v3184
        %v3362 = vpop.f32.mrb[0].mxu0
        %v3363 = vadd.f32 %v3062, %v3362
        %v3364 = vpop.f32.mrb[0].mxu0
        %v3365 = vadd.f32 %v3063, %v3364
        %v3366 = vpop.f32.mrb[0].mxu0
        %v3367 = vadd.f32 %v3064, %v3366
        %v3368 = vpop.f32.mrb[0].mxu0
        %v3369 = vadd.f32 %v3065, %v3368
        %3370 = vmatprep.mubr.bf16.mxu0 0
        %3371 = vmatmul.mubr.bf16.gmra.mrb[0].mxu0 %v3187
        %v3372 = vpop.f32.mrb[0].mxu0
        %v3373 = vadd.f32 %v3066, %v3372
        %v3374 = vpop.f32.mrb[0].mxu0
        %v3375 = vadd.f32 %v3067, %v3374
        %v3376 = vpop.f32.mrb[0].mxu0
        %v3377 = vadd.f32 %v3068, %v3376
        %v3378 = vpop.f32.mrb[0].mxu0
        %v3379 = vadd.f32 %v3069, %v3378
        %3380 = vmatprep.mubr.bf16.mxu0 0
        %3381 = vmatmul.mubr.bf16.gmra.mrb[0].mxu0 %v3190
        %v3382 = vpop.f32.mrb[0].mxu0
        %v3383 = vadd.f32 %v3070, %v3382
        %v3384 = vpop.f32.mrb[0].mxu0
        %v3385 = vadd.f32 %v3071, %v3384
        %v3386 = vpop.f32.mrb[0].mxu0
        %v3387 = vadd.f32 %v3072, %v3386
        %v3388 = vpop.f32.mrb[0].mxu0
        %v3389 = vadd.f32 %v3073, %v3388
        %3390 = vmatprep.mubr.bf16.mxu0 0
        %3391 = vmatmul.mubr.bf16.gmra.mrb[0].mxu0 %v3193
        %v3392 = vpop.f32.mrb[0].mxu0
        %v3393 = vadd.f32 %v3074, %v3392
        %v3394 = vpop.f32.mrb[0].mxu0
        %v3395 = vadd.f32 %v3075, %v3394
        %v3396 = vpop.f32.mrb[0].mxu0
        %v3397 = vadd.f32 %v3076, %v3396
        %v3398 = vpop.f32.mrb[0].mxu0
        %v3399 = vadd.f32 %v3077, %v3398
        %3400 = vmatprep.mubr.bf16.mxu0 0
        %3401 = vmatmul.mubr.bf16.gmra.mrb[0].mxu0 %v3196
        %v3402 = vpop.f32.mrb[0].mxu0
        %v3403 = vadd.f32 %v3078, %v3402
        %v3404 = vpop.f32.mrb[0].mxu0
        %v3405 = vadd.f32 %v3079, %v3404
        %v3406 = vpop.f32.mrb[0].mxu0
        %v3407 = vadd.f32 %v3080, %v3406
        %v3408 = vpop.f32.mrb[0].mxu0
        %v3409 = vadd.f32 %v3081, %v3408
        %3410 = vmatprep.mubr.bf16.mxu0 0
        %3411 = vmatmul.mubr.bf16.gmra.mrb[0].mxu0 %v3199
        %v3412 = vpop.f32.mrb[0].mxu0
        %v3413 = vadd.f32 %v3082, %v3412
        %v3414 = vpop.f32.mrb[0].mxu0
        %v3415 = vadd.f32 %v3083, %v3414
        %v3416 = vpop.f32.mrb[0].mxu0
        %v3417 = vadd.f32 %v3084, %v3416
        %v3418 = vpop.f32.mrb[0].mxu0
        %v3419 = vadd.f32 %v3085, %v3418
        %3420 = vmatprep.mubr.bf16.mxu0 0
        %3421 = vmatmul.mubr.bf16.gmra.mrb[0].mxu0 %v3202
        %v3422 = vpop.f32.mrb[0].mxu0
        %v3423 = vadd.f32 %v3086, %v3422
        %v3424 = vpop.f32.mrb[0].mxu0
        %v3425 = vadd.f32 %v3087, %v3424
        %v3426 = vpop.f32.mrb[0].mxu0
        %v3427 = vadd.f32 %v3088, %v3426
        %v3428 = vpop.f32.mrb[0].mxu0
        %v3429 = vadd.f32 %v3089, %v3428
        %3430 = vmatprep.mubr.bf16.mxu0 0
        %3431 = vmatmul.mubr.bf16.gmra.mrb[0].mxu0 %v3205
        %v3432 = vpop.f32.mrb[0].mxu0
        %v3433 = vadd.f32 %v3090, %v3432
        %v3434 = vpop.f32.mrb[0].mxu0
        %v3435 = vadd.f32 %v3091, %v3434
        %v3436 = vpop.f32.mrb[0].mxu0
        %v3437 = vadd.f32 %v3092, %v3436
        %v3438 = vpop.f32.mrb[0].mxu0
        %v3439 = vadd.f32 %v3093, %v3438
        %3440 = vmatprep.mubr.bf16.mxu0 0
        %3441 = vmatmul.mubr.bf16.gmra.mrb[0].mxu0 %v3208
        %v3442 = vpop.f32.mrb[0].mxu0
        %v3443 = vadd.f32 %v3094, %v3442
        %v3444 = vpop.f32.mrb[0].mxu0
        %v3445 = vadd.f32 %v3095, %v3444
        %v3446 = vpop.f32.mrb[0].mxu0
        %v3447 = vadd.f32 %v3096, %v3446
        %v3448 = vpop.f32.mrb[0].mxu0
        %v3449 = vadd.f32 %v3097, %v3448
        %3450 = vdwg.mxu0
        %v3451 = vmax.f32 %v3293, %v3295
        %3452 = vmax.xlane.f32.xlu0 %v3451
        %v3453 = vpop.xlane.xlu0 %3452
        %v3454 = vmax.f32 %v3297, %v3299
        %3455 = vmax.xlane.f32.xlu0 %v3454
        %v3456 = vpop.xlane.xlu0 %3455
        %v3457 = vmax.f32 %v3303, %v3305
        %3458 = vmax.xlane.f32.xlu0 %v3457
        %v3459 = vpop.xlane.xlu0 %3458
        %v3460 = vmax.f32 %v3307, %v3309
        %3461 = vmax.xlane.f32.xlu0 %v3460
        %v3462 = vpop.xlane.xlu0 %3461
        %v3463 = vmax.f32 %v3313, %v3315
        %3464 = vmax.xlane.f32.xlu0 %v3463
        %v3465 = vpop.xlane.xlu0 %3464
        %v3466 = vmax.f32 %v3317, %v3319
        %3467 = vmax.xlane.f32.xlu0 %v3466
        %v3468 = vpop.xlane.xlu0 %3467
        %v3469 = vmax.f32 %v3323, %v3325
        %3470 = vmax.xlane.f32.xlu0 %v3469
        %v3471 = vpop.xlane.xlu0 %3470
        %v3472 = vmax.f32 %v3327, %v3329
        %3473 = vmax.xlane.f32.xlu0 %v3472
        %v3474 = vpop.xlane.xlu0 %3473
        %v3475 = vmax.f32 %v3333, %v3335
        %3476 = vmax.xlane.f32.xlu0 %v3475
        %v3477 = vpop.xlane.xlu0 %3476
        %v3478 = vmax.f32 %v3337, %v3339
        %3479 = vmax.xlane.f32.xlu0 %v3478
        %v3480 = vpop.xlane.xlu0 %3479
        %v3481 = vmax.f32 %v3343, %v3345
        %3482 = vmax.xlane.f32.xlu0 %v3481
        %v3483 = vpop.xlane.xlu0 %3482
        %v3484 = vmax.f32 %v3347, %v3349
        %3485 = vmax.xlane.f32.xlu0 %v3484
        %v3486 = vpop.xlane.xlu0 %3485
        %v3487 = vmax.f32 %v3353, %v3355
        %3488 = vmax.xlane.f32.xlu0 %v3487
        %v3489 = vpop.xlane.xlu0 %3488
        %v3490 = vmax.f32 %v3357, %v3359
        %3491 = vmax.xlane.f32.xlu0 %v3490
        %v3492 = vpop.xlane.xlu0 %3491
        %v3493 = vmax.f32 %v3363, %v3365
        %3494 = vmax.xlane.f32.xlu0 %v3493
        %v3495 = vpop.xlane.xlu0 %3494
        %v3496 = vmax.f32 %v3367, %v3369
        %3497 = vmax.xlane.f32.xlu0 %v3496
        %v3498 = vpop.xlane.xlu0 %3497
        %v3499 = vmax.f32 %v3373, %v3375
        %3500 = vmax.xlane.f32.xlu0 %v3499
        %v3501 = vpop.xlane.xlu0 %3500
        %v3502 = vmax.f32 %v3377, %v3379
        %3503 = vmax.xlane.f32.xlu0 %v3502
        %v3504 = vpop.xlane.xlu0 %3503
        %v3505 = vmax.f32 %v3383, %v3385
        %3506 = vmax.xlane.f32.xlu0 %v3505
        %v3507 = vpop.xlane.xlu0 %3506
        %v3508 = vmax.f32 %v3387, %v3389
        %3509 = vmax.xlane.f32.xlu0 %v3508
        %v3510 = vpop.xlane.xlu0 %3509
        %v3511 = vmax.f32 %v3393, %v3395
        %3512 = vmax.xlane.f32.xlu0 %v3511
        %v3513 = vpop.xlane.xlu0 %3512
        %v3514 = vmax.f32 %v3397, %v3399
        %3515 = vmax.xlane.f32.xlu0 %v3514
        %v3516 = vpop.xlane.xlu0 %3515
        %v3517 = vmax.f32 %v3403, %v3405
        %3518 = vmax.xlane.f32.xlu0 %v3517
        %v3519 = vpop.xlane.xlu0 %3518
        %v3520 = vmax.f32 %v3407, %v3409
        %3521 = vmax.xlane.f32.xlu0 %v3520
        %v3522 = vpop.xlane.xlu0 %3521
        %v3523 = vmax.f32 %v3413, %v3415
        %3524 = vmax.xlane.f32.xlu0 %v3523
        %v3525 = vpop.xlane.xlu0 %3524
        %v3526 = vmax.f32 %v3417, %v3419
        %3527 = vmax.xlane.f32.xlu0 %v3526
        %v3528 = vpop.xlane.xlu0 %3527
        %v3529 = vmax.f32 %v3423, %v3425
        %3530 = vmax.xlane.f32.xlu0 %v3529
        %v3531 = vpop.xlane.xlu0 %3530
        %v3532 = vmax.f32 %v3427, %v3429
        %3533 = vmax.xlane.f32.xlu0 %v3532
        %v3534 = vpop.xlane.xlu0 %3533
        %v3535 = vmax.f32 %v3433, %v3435
        %3536 = vmax.xlane.f32.xlu0 %v3535
        %v3537 = vpop.xlane.xlu0 %3536
        %v3538 = vmax.f32 %v3437, %v3439
        %3539 = vmax.xlane.f32.xlu0 %v3538
        %v3540 = vpop.xlane.xlu0 %3539
        %v3541 = vmax.f32 %v3443, %v3445
        %3542 = vmax.xlane.f32.xlu0 %v3541
        %v3543 = vpop.xlane.xlu0 %3542
        %v3544 = vmax.f32 %v3447, %v3449
        %3545 = vmax.xlane.f32.xlu0 %v3544
        %v3546 = vpop.xlane.xlu0 %3545
        %v3547 = vsub.f32 %v3293, %v3453
        %v3548 = vsub.f32 %v3295, %v3453
        %v3549 = vsub.f32 %v3297, %v3456
        %v3550 = vsub.f32 %v3299, %v3456
        %v3551 = vsub.f32 %v3303, %v3459
        %v3552 = vsub.f32 %v3305, %v3459
        %v3553 = vsub.f32 %v3307, %v3462
        %v3554 = vsub.f32 %v3309, %v3462
        %v3555 = vsub.f32 %v3313, %v3465
        %v3556 = vsub.f32 %v3315, %v3465
        %v3557 = vsub.f32 %v3317, %v3468
        %v3558 = vsub.f32 %v3319, %v3468
        %v3559 = vsub.f32 %v3323, %v3471
        %v3560 = vsub.f32 %v3325, %v3471
        %v3561 = vsub.f32 %v3327, %v3474
        %v3562 = vsub.f32 %v3329, %v3474
        %v3563 = vsub.f32 %v3333, %v3477
        %v3564 = vsub.f32 %v3335, %v3477
        %v3565 = vsub.f32 %v3337, %v3480
        %v3566 = vsub.f32 %v3339, %v3480
        %v3567 = vsub.f32 %v3343, %v3483
        %v3568 = vsub.f32 %v3345, %v3483
        %v3569 = vsub.f32 %v3347, %v3486
        %v3570 = vsub.f32 %v3349, %v3486
        %v3571 = vsub.f32 %v3353, %v3489
        %v3572 = vsub.f32 %v3355, %v3489
        %v3573 = vsub.f32 %v3357, %v3492
        %v3574 = vsub.f32 %v3359, %v3492
        %v3575 = vsub.f32 %v3363, %v3495
        %v3576 = vsub.f32 %v3365, %v3495
        %v3577 = vsub.f32 %v3367, %v3498
        %v3578 = vsub.f32 %v3369, %v3498
        %v3579 = vsub.f32 %v3373, %v3501
        %v3580 = vsub.f32 %v3375, %v3501
        %v3581 = vsub.f32 %v3377, %v3504
        %v3582 = vsub.f32 %v3379, %v3504
        %v3583 = vsub.f32 %v3383, %v3507
        %v3584 = vsub.f32 %v3385, %v3507
        %v3585 = vsub.f32 %v3387, %v3510
        %v3586 = vsub.f32 %v3389, %v3510
        %v3587 = vsub.f32 %v3393, %v3513
        %v3588 = vsub.f32 %v3395, %v3513
        %v3589 = vsub.f32 %v3397, %v3516
        %v3590 = vsub.f32 %v3399, %v3516
        %v3591 = vsub.f32 %v3403, %v3519
        %v3592 = vsub.f32 %v3405, %v3519
        %v3593 = vsub.f32 %v3407, %v3522
        %v3594 = vsub.f32 %v3409, %v3522
        %v3595 = vsub.f32 %v3413, %v3525
        %v3596 = vsub.f32 %v3415, %v3525
        %v3597 = vsub.f32 %v3417, %v3528
        %v3598 = vsub.f32 %v3419, %v3528
        %v3599 = vsub.f32 %v3423, %v3531
        %v3600 = vsub.f32 %v3425, %v3531
        %v3601 = vsub.f32 %v3427, %v3534
        %v3602 = vsub.f32 %v3429, %v3534
        %v3603 = vsub.f32 %v3433, %v3537
        %v3604 = vsub.f32 %v3435, %v3537
        %v3605 = vsub.f32 %v3437, %v3540
        %v3606 = vsub.f32 %v3439, %v3540
        %v3607 = vsub.f32 %v3443, %v3543
        %v3608 = vsub.f32 %v3445, %v3543
        %v3609 = vsub.f32 %v3447, %v3546
        %v3610 = vsub.f32 %v3449, %v3546
        %v3611 = vmul.f32 %v3547, 1.442695
        %v3612 = vpow.pop %v3611
        %v3613 = vmul.f32 %v3548, 1.442695
        %v3614 = vpow.pop %v3613
        %v3615 = vmul.f32 %v3549, 1.442695
        %v3616 = vpow.pop %v3615
        %v3617 = vmul.f32 %v3550, 1.442695
        %v3618 = vpow.pop %v3617
        %v3619 = vmul.f32 %v3551, 1.442695
        %v3620 = vpow.pop %v3619
        %v3621 = vmul.f32 %v3552, 1.442695
        %v3622 = vpow.pop %v3621
        %v3623 = vmul.f32 %v3553, 1.442695
        %v3624 = vpow.pop %v3623
        %v3625 = vmul.f32 %v3554, 1.442695
        %v3626 = vpow.pop %v3625
        %v3627 = vmul.f32 %v3555, 1.442695
        %v3628 = vpow.pop %v3627
        %v3629 = vmul.f32 %v3556, 1.442695
        %v3630 = vpow.pop %v3629
        %v3631 = vmul.f32 %v3557, 1.442695
        %v3632 = vpow.pop %v3631
        %v3633 = vmul.f32 %v3558, 1.442695
        %v3634 = vpow.pop %v3633
        %v3635 = vmul.f32 %v3559, 1.442695
        %v3636 = vpow.pop %v3635
        %v3637 = vmul.f32 %v3560, 1.442695
        %v3638 = vpow.pop %v3637
        %v3639 = vmul.f32 %v3561, 1.442695
        %v3640 = vpow.pop %v3639
        %v3641 = vmul.f32 %v3562, 1.442695
        %v3642 = vpow.pop %v3641
        %v3643 = vmul.f32 %v3563, 1.442695
        %v3644 = vpow.pop %v3643
        %v3645 = vmul.f32 %v3564, 1.442695
        %v3646 = vpow.pop %v3645
        %v3647 = vmul.f32 %v3565, 1.442695
        %v3648 = vpow.pop %v3647
        %v3649 = vmul.f32 %v3566, 1.442695
        %v3650 = vpow.pop %v3649
        %v3651 = vmul.f32 %v3567, 1.442695
        %v3652 = vpow.pop %v3651
        %v3653 = vmul.f32 %v3568, 1.442695
        %v3654 = vpow.pop %v3653
        %v3655 = vmul.f32 %v3569, 1.442695
        %v3656 = vpow.pop %v3655
        %v3657 = vmul.f32 %v3570, 1.442695
        %v3658 = vpow.pop %v3657
        %v3659 = vmul.f32 %v3571, 1.442695
        %v3660 = vpow.pop %v3659
        %v3661 = vmul.f32 %v3572, 1.442695
        %v3662 = vpow.pop %v3661
        %v3663 = vmul.f32 %v3573, 1.442695
        %v3664 = vpow.pop %v3663
        %v3665 = vmul.f32 %v3574, 1.442695
        %v3666 = vpow.pop %v3665
        %v3667 = vmul.f32 %v3575, 1.442695
        %v3668 = vpow.pop %v3667
        %v3669 = vmul.f32 %v3576, 1.442695
        %v3670 = vpow.pop %v3669
        %v3671 = vmul.f32 %v3577, 1.442695
        %v3672 = vpow.pop %v3671
        %v3673 = vmul.f32 %v3578, 1.442695
        %v3674 = vpow.pop %v3673
        %v3675 = vmul.f32 %v3579, 1.442695
        %v3676 = vpow.pop %v3675
        %v3677 = vmul.f32 %v3580, 1.442695
        %v3678 = vpow.pop %v3677
        %v3679 = vmul.f32 %v3581, 1.442695
        %v3680 = vpow.pop %v3679
        %v3681 = vmul.f32 %v3582, 1.442695
        %v3682 = vpow.pop %v3681
        %v3683 = vmul.f32 %v3583, 1.442695
        %v3684 = vpow.pop %v3683
        %v3685 = vmul.f32 %v3584, 1.442695
        %v3686 = vpow.pop %v3685
        %v3687 = vmul.f32 %v3585, 1.442695
        %v3688 = vpow.pop %v3687
        %v3689 = vmul.f32 %v3586, 1.442695
        %v3690 = vpow.pop %v3689
        %v3691 = vmul.f32 %v3587, 1.442695
        %v3692 = vpow.pop %v3691
        %v3693 = vmul.f32 %v3588, 1.442695
        %v3694 = vpow.pop %v3693
        %v3695 = vmul.f32 %v3589, 1.442695
        %v3696 = vpow.pop %v3695
        %v3697 = vmul.f32 %v3590, 1.442695
        %v3698 = vpow.pop %v3697
        %v3699 = vmul.f32 %v3591, 1.442695
        %v3700 = vpow.pop %v3699
        %v3701 = vmul.f32 %v3592, 1.442695
        %v3702 = vpow.pop %v3701
        %v3703 = vmul.f32 %v3593, 1.442695
        %v3704 = vpow.pop %v3703
        %v3705 = vmul.f32 %v3594, 1.442695
        %v3706 = vpow.pop %v3705
        %v3707 = vmul.f32 %v3595, 1.442695
        %v3708 = vpow.pop %v3707
        %v3709 = vmul.f32 %v3596, 1.442695
        %v3710 = vpow.pop %v3709
        %v3711 = vmul.f32 %v3597, 1.442695
        %v3712 = vpow.pop %v3711
        %v3713 = vmul.f32 %v3598, 1.442695
        %v3714 = vpow.pop %v3713
        %v3715 = vmul.f32 %v3599, 1.442695
        %v3716 = vpow.pop %v3715
        %v3717 = vmul.f32 %v3600, 1.442695
        %v3718 = vpow.pop %v3717
        %v3719 = vmul.f32 %v3601, 1.442695
        %v3720 = vpow.pop %v3719
        %v3721 = vmul.f32 %v3602, 1.442695
        %v3722 = vpow.pop %v3721
        %v3723 = vmul.f32 %v3603, 1.442695
        %v3724 = vpow.pop %v3723
        %v3725 = vmul.f32 %v3604, 1.442695
        %v3726 = vpow.pop %v3725
        %v3727 = vmul.f32 %v3605, 1.442695
        %v3728 = vpow.pop %v3727
        %v3729 = vmul.f32 %v3606, 1.442695
        %v3730 = vpow.pop %v3729
        %v3731 = vmul.f32 %v3607, 1.442695
        %v3732 = vpow.pop %v3731
        %v3733 = vmul.f32 %v3608, 1.442695
        %v3734 = vpow.pop %v3733
        %v3735 = vmul.f32 %v3609, 1.442695
        %v3736 = vpow.pop %v3735
        %v3737 = vmul.f32 %v3610, 1.442695
        %v3738 = vpow.pop %v3737
        %v3739 = vadd.f32 %v3612, %v3614
        %3740 = vadd.xlane.f32.xlu0 %v3739
        %v3741 = vpop.xlane.xlu0 %3740
        %v3742 = vadd.f32 %v3616, %v3618
        %3743 = vadd.xlane.f32.xlu0 %v3742
        %v3744 = vpop.xlane.xlu0 %3743
        %v3745 = vadd.f32 %v3620, %v3622
        %3746 = vadd.xlane.f32.xlu0 %v3745
        %v3747 = vpop.xlane.xlu0 %3746
        %v3748 = vadd.f32 %v3624, %v3626
        %3749 = vadd.xlane.f32.xlu0 %v3748
        %v3750 = vpop.xlane.xlu0 %3749
        %v3751 = vadd.f32 %v3628, %v3630
        %3752 = vadd.xlane.f32.xlu0 %v3751
        %v3753 = vpop.xlane.xlu0 %3752
        %v3754 = vadd.f32 %v3632, %v3634
        %3755 = vadd.xlane.f32.xlu0 %v3754
        %v3756 = vpop.xlane.xlu0 %3755
        %v3757 = vadd.f32 %v3636, %v3638
        %3758 = vadd.xlane.f32.xlu0 %v3757
        %v3759 = vpop.xlane.xlu0 %3758
        %v3760 = vadd.f32 %v3640, %v3642
        %3761 = vadd.xlane.f32.xlu0 %v3760
        %v3762 = vpop.xlane.xlu0 %3761
        %v3763 = vadd.f32 %v3644, %v3646
        %3764 = vadd.xlane.f32.xlu0 %v3763
        %v3765 = vpop.xlane.xlu0 %3764
        %v3766 = vadd.f32 %v3648, %v3650
        %3767 = vadd.xlane.f32.xlu0 %v3766
        %v3768 = vpop.xlane.xlu0 %3767
        %v3769 = vadd.f32 %v3652, %v3654
        %3770 = vadd.xlane.f32.xlu0 %v3769
        %v3771 = vpop.xlane.xlu0 %3770
        %v3772 = vadd.f32 %v3656, %v3658
        %3773 = vadd.xlane.f32.xlu0 %v3772
        %v3774 = vpop.xlane.xlu0 %3773
        %v3775 = vadd.f32 %v3660, %v3662
        %3776 = vadd.xlane.f32.xlu0 %v3775
        %v3777 = vpop.xlane.xlu0 %3776
        %v3778 = vadd.f32 %v3664, %v3666
        %3779 = vadd.xlane.f32.xlu0 %v3778
        %v3780 = vpop.xlane.xlu0 %3779
        %v3781 = vadd.f32 %v3668, %v3670
        %3782 = vadd.xlane.f32.xlu0 %v3781
        %v3783 = vpop.xlane.xlu0 %3782
        %v3784 = vadd.f32 %v3672, %v3674
        %3785 = vadd.xlane.f32.xlu0 %v3784
        %v3786 = vpop.xlane.xlu0 %3785
        %v3787 = vadd.f32 %v3676, %v3678
        %3788 = vadd.xlane.f32.xlu0 %v3787
        %v3789 = vpop.xlane.xlu0 %3788
        %v3790 = vadd.f32 %v3680, %v3682
        %3791 = vadd.xlane.f32.xlu0 %v3790
        %v3792 = vpop.xlane.xlu0 %3791
        %v3793 = vadd.f32 %v3684, %v3686
        %3794 = vadd.xlane.f32.xlu0 %v3793
        %v3795 = vpop.xlane.xlu0 %3794
        %v3796 = vadd.f32 %v3688, %v3690
        %3797 = vadd.xlane.f32.xlu0 %v3796
        %v3798 = vpop.xlane.xlu0 %3797
        %v3799 = vadd.f32 %v3692, %v3694
        %3800 = vadd.xlane.f32.xlu0 %v3799
        %v3801 = vpop.xlane.xlu0 %3800
        %v3802 = vadd.f32 %v3696, %v3698
        %3803 = vadd.xlane.f32.xlu0 %v3802
        %v3804 = vpop.xlane.xlu0 %3803
        %v3805 = vadd.f32 %v3700, %v3702
        %3806 = vadd.xlane.f32.xlu0 %v3805
        %v3807 = vpop.xlane.xlu0 %3806
        %v3808 = vadd.f32 %v3704, %v3706
        %3809 = vadd.xlane.f32.xlu0 %v3808
        %v3810 = vpop.xlane.xlu0 %3809
        %v3811 = vadd.f32 %v3708, %v3710
        %3812 = vadd.xlane.f32.xlu0 %v3811
        %v3813 = vpop.xlane.xlu0 %3812
        %v3814 = vadd.f32 %v3712, %v3714
        %3815 = vadd.xlane.f32.xlu0 %v3814
        %v3816 = vpop.xlane.xlu0 %3815
        %v3817 = vadd.f32 %v3716, %v3718
        %3818 = vadd.xlane.f32.xlu0 %v3817
        %v3819 = vpop.xlane.xlu0 %3818
        %v3820 = vadd.f32 %v3720, %v3722
        %3821 = vadd.xlane.f32.xlu0 %v3820
        %v3822 = vpop.xlane.xlu0 %3821
        %v3823 = vadd.f32 %v3724, %v3726
        %3824 = vadd.xlane.f32.xlu0 %v3823
        %v3825 = vpop.xlane.xlu0 %3824
        %v3826 = vadd.f32 %v3728, %v3730
        %3827 = vadd.xlane.f32.xlu0 %v3826
        %v3828 = vpop.xlane.xlu0 %3827
        %v3829 = vadd.f32 %v3732, %v3734
        %3830 = vadd.xlane.f32.xlu0 %v3829
        %v3831 = vpop.xlane.xlu0 %3830
        %v3832 = vadd.f32 %v3736, %v3738
        %3833 = vadd.xlane.f32.xlu0 %v3832
        %v3834 = vpop.xlane.xlu0 %3833
        %v3835 = vrcp.pop %v3741
        %v3836 = vrcp.pop %v3744
        %v3837 = vrcp.pop %v3747
        %v3838 = vrcp.pop %v3750
        %v3839 = vrcp.pop %v3753
        %v3840 = vrcp.pop %v3756
        %v3841 = vrcp.pop %v3759
        %v3842 = vrcp.pop %v3762
        %v3843 = vrcp.pop %v3765
        %v3844 = vrcp.pop %v3768
        %v3845 = vrcp.pop %v3771
        %v3846 = vrcp.pop %v3774
        %v3847 = vrcp.pop %v3777
        %v3848 = vrcp.pop %v3780
        %v3849 = vrcp.pop %v3783
        %v3850 = vrcp.pop %v3786
        %v3851 = vrcp.pop %v3789
        %v3852 = vrcp.pop %v3792
        %v3853 = vrcp.pop %v3795
        %v3854 = vrcp.pop %v3798
        %v3855 = vrcp.pop %v3801
        %v3856 = vrcp.pop %v3804
        %v3857 = vrcp.pop %v3807
        %v3858 = vrcp.pop %v3810
        %v3859 = vrcp.pop %v3813
        %v3860 = vrcp.pop %v3816
        %v3861 = vrcp.pop %v3819
        %v3862 = vrcp.pop %v3822
        %v3863 = vrcp.pop %v3825
        %v3864 = vrcp.pop %v3828
        %v3865 = vrcp.pop %v3831
        %v3866 = vrcp.pop %v3834
        %v3867 = vpack.c.bf16 %v3616, %v3612
        %v3868 = vpack.c.bf16 %v3618, %v3614
        %v3869 = vpack.c.bf16 %v3624, %v3620
        %v3870 = vpack.c.bf16 %v3626, %v3622
        %v3871 = vpack.c.bf16 %v3632, %v3628
        %v3872 = vpack.c.bf16 %v3634, %v3630
        %v3873 = vpack.c.bf16 %v3640, %v3636
        %v3874 = vpack.c.bf16 %v3642, %v3638
        %v3875 = vpack.c.bf16 %v3648, %v3644
        %v3876 = vpack.c.bf16 %v3650, %v3646
        %v3877 = vpack.c.bf16 %v3656, %v3652
        %v3878 = vpack.c.bf16 %v3658, %v3654
        %v3879 = vpack.c.bf16 %v3664, %v3660
        %v3880 = vpack.c.bf16 %v3666, %v3662
        %v3881 = vpack.c.bf16 %v3672, %v3668
        %v3882 = vpack.c.bf16 %v3674, %v3670
        %v3883 = vpack.c.bf16 %v3680, %v3676
        %v3884 = vpack.c.bf16 %v3682, %v3678
        %v3885 = vpack.c.bf16 %v3688, %v3684
        %v3886 = vpack.c.bf16 %v3690, %v3686
        %v3887 = vpack.c.bf16 %v3696, %v3692
        %v3888 = vpack.c.bf16 %v3698, %v3694
        %v3889 = vpack.c.bf16 %v3704, %v3700
        %v3890 = vpack.c.bf16 %v3706, %v3702
        %v3891 = vpack.c.bf16 %v3712, %v3708
        %v3892 = vpack.c.bf16 %v3714, %v3710
        %v3893 = vpack.c.bf16 %v3720, %v3716
        %v3894 = vpack.c.bf16 %v3722, %v3718
        %v3895 = vpack.c.bf16 %v3728, %v3724
        %v3896 = vpack.c.bf16 %v3730, %v3726
        %v3897 = vpack.c.bf16 %v3736, %v3732
        %v3898 = vpack.c.bf16 %v3738, %v3734
        %3899 = vrot.lane.b32.xlu0 %v1597, 48
        %v3900 = vpop.permute.xlu0 %3899
        %3901 = vrot.lane.b32.xlu0 %v1598, 48
        %v3902 = vpop.permute.xlu0 %3901
        %3903 = vrot.lane.b32.xlu0 %v1599, 48
        %v3904 = vpop.permute.xlu0 %3903
        %3905 = vrot.lane.b32.xlu0 %v1600, 48
        %v3906 = vpop.permute.xlu0 %3905
        %3907 = vrot.lane.b32.xlu0 %v1601, 48
        %v3908 = vpop.permute.xlu0 %3907
        %3909 = vrot.lane.b32.xlu0 %v1602, 48
        %v3910 = vpop.permute.xlu0 %3909
        %3911 = vrot.lane.b32.xlu0 %v1603, 48
        %v3912 = vpop.permute.xlu0 %3911
        %3913 = vrot.lane.b32.xlu0 %v1604, 48
        %v3914 = vpop.permute.xlu0 %3913
        %3915 = vrot.lane.b32.xlu0 %v1605, 48
        %v3916 = vpop.permute.xlu0 %3915
        %3917 = vrot.lane.b32.xlu0 %v1606, 48
        %v3918 = vpop.permute.xlu0 %3917
        %3919 = vrot.lane.b32.xlu0 %v1607, 48
        %v3920 = vpop.permute.xlu0 %3919
        %3921 = vrot.lane.b32.xlu0 %v1608, 48
        %v3922 = vpop.permute.xlu0 %3921
        %3923 = vrot.lane.b32.xlu0 %v1609, 48
        %v3924 = vpop.permute.xlu0 %3923
        %3925 = vrot.lane.b32.xlu0 %v1610, 48
        %v3926 = vpop.permute.xlu0 %3925
        %3927 = vrot.lane.b32.xlu0 %v1611, 48
        %v3928 = vpop.permute.xlu0 %3927
        %3929 = vrot.lane.b32.xlu0 %v1612, 48
        %v3930 = vpop.permute.xlu0 %3929
        %3947 = vmatprep.subr.bf16.mxu0 0
        %3948 = vmatpush1.bf16.msra.mxu0 %v3900
        %3949 = vmatprep.subr.bf16.mxu0 0
        %3950 = vmatpush1.bf16.msra.mxu0 %v3902
        %3951 = vmatprep.subr.bf16.mxu0 0
        %3952 = vmatpush1.bf16.msra.mxu0 %v3904
        %3953 = vmatprep.subr.bf16.mxu0 0
        %3954 = vmatpush1.bf16.msra.mxu0 %v3906
        %3955 = vmatprep.subr.bf16.mxu0 0
        %3956 = vmatpush1.bf16.msra.mxu0 %v3908
        %3957 = vmatprep.subr.bf16.mxu0 0
        %3958 = vmatpush1.bf16.msra.mxu0 %v3910
        %3959 = vmatprep.subr.bf16.mxu0 0
        %3960 = vmatpush1.bf16.msra.mxu0 %v3912
        %3961 = vmatprep.subr.bf16.mxu0 0
        %3962 = vmatpush1.bf16.msra.mxu0 %v3914
        %3963 = vmatprep.subr.bf16.mxu0 0
        %3964 = vmatpush1.bf16.msra.mxu0 %v3916
        %3965 = vmatprep.subr.bf16.mxu0 0
        %3966 = vmatpush1.bf16.msra.mxu0 %v3918
        %3967 = vmatprep.subr.bf16.mxu0 0
        %3968 = vmatpush1.bf16.msra.mxu0 %v3920
        %3969 = vmatprep.subr.bf16.mxu0 0
        %3970 = vmatpush1.bf16.msra.mxu0 %v3922
        %3971 = vmatprep.subr.bf16.mxu0 0
        %3972 = vmatpush1.bf16.msra.mxu0 %v3924
        %3973 = vmatprep.subr.bf16.mxu0 0
        %3974 = vmatpush1.bf16.msra.mxu0 %v3926
        %3975 = vmatprep.subr.bf16.mxu0 0
        %3976 = vmatpush1.bf16.msra.mxu0 %v3928
        %3977 = vmatprep.subr.bf16.mxu0 0
        %3978 = vmatpush1.bf16.msra.mxu0 %v3930
        %3979 = vmatprep.mubr.bf16.mxu0 %v3868
        %3980 = vmatmul.mubr.bf16.gmra.mrb[0].mxu0 %v3867
        %v3981 = vpop.f32.mrb[0].mxu0
        %v3982 = vadd.f32 0.0, %v3981
        %v3983 = vpop.f32.mrb[0].mxu0
        %v3984 = vpop.f32.mrb[0].mxu0
        %v3985 = vadd.f32 0.0, %v3984
        %v3986 = vpop.f32.mrb[0].mxu0
        %3987 = vmatprep.mubr.bf16.mxu0 %v3870
        %3988 = vmatmul.mubr.bf16.gmra.mrb[0].mxu0 %v3869
        %v3989 = vpop.f32.mrb[0].mxu0
        %v3990 = vadd.f32 0.0, %v3989
        %v3991 = vpop.f32.mrb[0].mxu0
        %v3992 = vpop.f32.mrb[0].mxu0
        %v3993 = vadd.f32 0.0, %v3992
        %v3994 = vpop.f32.mrb[0].mxu0
        %3995 = vmatprep.mubr.bf16.mxu0 %v3872
        %3996 = vmatmul.mubr.bf16.gmra.mrb[0].mxu0 %v3871
        %v3997 = vpop.f32.mrb[0].mxu0
        %v3998 = vadd.f32 0.0, %v3997
        %v3999 = vpop.f32.mrb[0].mxu0
        %v4000 = vpop.f32.mrb[0].mxu0
        %v4001 = vadd.f32 0.0, %v4000
        %v4002 = vpop.f32.mrb[0].mxu0
        %4003 = vmatprep.mubr.bf16.mxu0 %v3874
        %4004 = vmatmul.mubr.bf16.gmra.mrb[0].mxu0 %v3873
        %v4005 = vpop.f32.mrb[0].mxu0
        %v4006 = vadd.f32 0.0, %v4005
        %v4007 = vpop.f32.mrb[0].mxu0
        %v4008 = vpop.f32.mrb[0].mxu0
        %v4009 = vadd.f32 0.0, %v4008
        %v4010 = vpop.f32.mrb[0].mxu0
        %4011 = vmatprep.mubr.bf16.mxu0 %v3876
        %4012 = vmatmul.mubr.bf16.gmra.mrb[0].mxu0 %v3875
        %v4013 = vpop.f32.mrb[0].mxu0
        %v4014 = vadd.f32 0.0, %v4013
        %v4015 = vpop.f32.mrb[0].mxu0
        %v4016 = vpop.f32.mrb[0].mxu0
        %v4017 = vadd.f32 0.0, %v4016
        %v4018 = vpop.f32.mrb[0].mxu0
        %4019 = vmatprep.mubr.bf16.mxu0 %v3878
        %4020 = vmatmul.mubr.bf16.gmra.mrb[0].mxu0 %v3877
        %v4021 = vpop.f32.mrb[0].mxu0
        %v4022 = vadd.f32 0.0, %v4021
        %v4023 = vpop.f32.mrb[0].mxu0
        %v4024 = vpop.f32.mrb[0].mxu0
        %v4025 = vadd.f32 0.0, %v4024
        %v4026 = vpop.f32.mrb[0].mxu0
        %4027 = vmatprep.mubr.bf16.mxu0 %v3880
        %4028 = vmatmul.mubr.bf16.gmra.mrb[0].mxu0 %v3879
        %v4029 = vpop.f32.mrb[0].mxu0
        %v4030 = vadd.f32 0.0, %v4029
        %v4031 = vpop.f32.mrb[0].mxu0
        %v4032 = vpop.f32.mrb[0].mxu0
        %v4033 = vadd.f32 0.0, %v4032
        %v4034 = vpop.f32.mrb[0].mxu0
        %4035 = vmatprep.mubr.bf16.mxu0 %v3882
        %4036 = vmatmul.mubr.bf16.gmra.mrb[0].mxu0 %v3881
        %v4037 = vpop.f32.mrb[0].mxu0
        %v4038 = vadd.f32 0.0, %v4037
        %v4039 = vpop.f32.mrb[0].mxu0
        %v4040 = vpop.f32.mrb[0].mxu0
        %v4041 = vadd.f32 0.0, %v4040
        %v4042 = vpop.f32.mrb[0].mxu0
        %4043 = vmatprep.mubr.bf16.mxu0 %v3884
        %4044 = vmatmul.mubr.bf16.gmra.mrb[0].mxu0 %v3883
        %v4045 = vpop.f32.mrb[0].mxu0
        %v4046 = vadd.f32 0.0, %v4045
        %v4047 = vpop.f32.mrb[0].mxu0
        %v4048 = vpop.f32.mrb[0].mxu0
        %v4049 = vadd.f32 0.0, %v4048
        %v4050 = vpop.f32.mrb[0].mxu0
        %4051 = vmatprep.mubr.bf16.mxu0 %v3886
        %4052 = vmatmul.mubr.bf16.gmra.mrb[0].mxu0 %v3885
        %v4053 = vpop.f32.mrb[0].mxu0
        %v4054 = vadd.f32 0.0, %v4053
        %v4055 = vpop.f32.mrb[0].mxu0
        %v4056 = vpop.f32.mrb[0].mxu0
        %v4057 = vadd.f32 0.0, %v4056
        %v4058 = vpop.f32.mrb[0].mxu0
        %4059 = vmatprep.mubr.bf16.mxu0 %v3888
        %4060 = vmatmul.mubr.bf16.gmra.mrb[0].mxu0 %v3887
        %v4061 = vpop.f32.mrb[0].mxu0
        %v4062 = vadd.f32 0.0, %v4061
        %v4063 = vpop.f32.mrb[0].mxu0
        %v4064 = vpop.f32.mrb[0].mxu0
        %v4065 = vadd.f32 0.0, %v4064
        %v4066 = vpop.f32.mrb[0].mxu0
        %4067 = vmatprep.mubr.bf16.mxu0 %v3890
        %4068 = vmatmul.mubr.bf16.gmra.mrb[0].mxu0 %v3889
        %v4069 = vpop.f32.mrb[0].mxu0
        %v4070 = vadd.f32 0.0, %v4069
        %v4071 = vpop.f32.mrb[0].mxu0
        %v4072 = vpop.f32.mrb[0].mxu0
        %v4073 = vadd.f32 0.0, %v4072
        %v4074 = vpop.f32.mrb[0].mxu0
        %4075 = vmatprep.mubr.bf16.mxu0 %v3892
        %4076 = vmatmul.mubr.bf16.gmra.mrb[0].mxu0 %v3891
        %v4077 = vpop.f32.mrb[0].mxu0
        %v4078 = vadd.f32 0.0, %v4077
        %v4079 = vpop.f32.mrb[0].mxu0
        %v4080 = vpop.f32.mrb[0].mxu0
        %v4081 = vadd.f32 0.0, %v4080
        %v4082 = vpop.f32.mrb[0].mxu0
        %4083 = vmatprep.mubr.bf16.mxu0 %v3894
        %4084 = vmatmul.mubr.bf16.gmra.mrb[0].mxu0 %v3893
        %v4085 = vpop.f32.mrb[0].mxu0
        %v4086 = vadd.f32 0.0, %v4085
        %v4087 = vpop.f32.mrb[0].mxu0
        %v4088 = vpop.f32.mrb[0].mxu0
        %v4089 = vadd.f32 0.0, %v4088
        %v4090 = vpop.f32.mrb[0].mxu0
        %4091 = vmatprep.mubr.bf16.mxu0 %v3896
        %4092 = vmatmul.mubr.bf16.gmra.mrb[0].mxu0 %v3895
        %v4093 = vpop.f32.mrb[0].mxu0
        %v4094 = vadd.f32 0.0, %v4093
        %v4095 = vpop.f32.mrb[0].mxu0
        %v4096 = vpop.f32.mrb[0].mxu0
        %v4097 = vadd.f32 0.0, %v4096
        %v4098 = vpop.f32.mrb[0].mxu0
        %4099 = vmatprep.mubr.bf16.mxu0 %v3898
        %4100 = vmatmul.mubr.bf16.gmra.mrb[0].mxu0 %v3897
        %v4101 = vpop.f32.mrb[0].mxu0
        %v4102 = vadd.f32 0.0, %v4101
        %v4103 = vpop.f32.mrb[0].mxu0
        %v4104 = vpop.f32.mrb[0].mxu0
        %v4105 = vadd.f32 0.0, %v4104
        %v4106 = vpop.f32.mrb[0].mxu0
        %4107 = vdwg.mxu0
        %v4108 = vmul.f32 %v3982, %v3835
        %v4109 = vmul.f32 %v3985, %v3836
        %v4110 = vmul.f32 %v3990, %v3837
        %v4111 = vmul.f32 %v3993, %v3838
        %v4112 = vmul.f32 %v3998, %v3839
        %v4113 = vmul.f32 %v4001, %v3840
        %v4114 = vmul.f32 %v4006, %v3841
        %v4115 = vmul.f32 %v4009, %v3842
        %v4116 = vmul.f32 %v4014, %v3843
        %v4117 = vmul.f32 %v4017, %v3844
        %v4118 = vmul.f32 %v4022, %v3845
        %v4119 = vmul.f32 %v4025, %v3846
        %v4120 = vmul.f32 %v4030, %v3847
        %v4121 = vmul.f32 %v4033, %v3848
        %v4122 = vmul.f32 %v4038, %v3849
        %v4123 = vmul.f32 %v4041, %v3850
        %v4124 = vmul.f32 %v4046, %v3851
        %v4125 = vmul.f32 %v4049, %v3852
        %v4126 = vmul.f32 %v4054, %v3853
        %v4127 = vmul.f32 %v4057, %v3854
        %v4128 = vmul.f32 %v4062, %v3855
        %v4129 = vmul.f32 %v4065, %v3856
        %v4130 = vmul.f32 %v4070, %v3857
        %v4131 = vmul.f32 %v4073, %v3858
        %v4132 = vmul.f32 %v4078, %v3859
        %v4133 = vmul.f32 %v4081, %v3860
        %v4134 = vmul.f32 %v4086, %v3861
        %v4135 = vmul.f32 %v4089, %v3862
        %v4136 = vmul.f32 %v4094, %v3863
        %v4137 = vmul.f32 %v4097, %v3864
        %v4138 = vmul.f32 %v4102, %v3865
        %v4139 = vmul.f32 %v4105, %v3866
        %v4140 = vpack.c.bf16 %v4109, %v4108
        %v4141 = vpack.c.bf16 %v4111, %v4110
        %v4142 = vpack.c.bf16 %v4113, %v4112
        %v4143 = vpack.c.bf16 %v4115, %v4114
        %v4144 = vpack.c.bf16 %v4117, %v4116
        %v4145 = vpack.c.bf16 %v4119, %v4118
        %v4146 = vpack.c.bf16 %v4121, %v4120
        %v4147 = vpack.c.bf16 %v4123, %v4122
        %v4148 = vpack.c.bf16 %v4125, %v4124
        %v4149 = vpack.c.bf16 %v4127, %v4126
        %v4150 = vpack.c.bf16 %v4129, %v4128
        %v4151 = vpack.c.bf16 %v4131, %v4130
        %v4152 = vpack.c.bf16 %v4133, %v4132
        %v4153 = vpack.c.bf16 %v4135, %v4134
        %v4154 = vpack.c.bf16 %v4137, %v4136
        %v4155 = vpack.c.bf16 %v4139, %v4138
        %s4156 = scalar_lea.vmem %s681, 8
        %v4157 = vld [vmem:[%s4156] sm:$0xf]
        %v4158 = vld [vmem:[%s4156 + $0x4] sm:$0xf]
        %v4161 = vunpack.c.l.b16 %v4157
        %v4162 = vunpack.c.l.b16 %v4158
        %v4163 = vpack.c.b16 %v4162, %v4161
        %v4166 = vsel %vm1757, %v4140, 0
        %v4169 = vsel %vm1757, %v4141, 0
        %v4172 = vsel %vm1757, %v4142, 0
        %v4175 = vsel %vm1757, %v4143, 0
        %v4178 = vsel %vm1757, %v4144, 0
        %v4181 = vsel %vm1757, %v4145, 0
        %v4184 = vsel %vm1757, %v4146, 0
        %v4187 = vsel %vm1757, %v4147, 0
        %v4190 = vsel %vm1757, %v4148, 0
        %v4193 = vsel %vm1757, %v4149, 0
        %v4196 = vsel %vm1757, %v4150, 0
        %v4199 = vsel %vm1757, %v4151, 0
        %v4202 = vsel %vm1757, %v4152, 0
        %v4205 = vsel %vm1757, %v4153, 0
        %v4208 = vsel %vm1757, %v4154, 0
        %v4211 = vsel %vm1757, %v4155, 0
        %4213 = vmatprep.subr.bf16.mxu0 0
        %4214 = vmatpush1.bf16.msra.mxu0 %v4163
        %4215 = vmatprep.subr.bf16.mxu0 0
        %4216 = vmatpush1.bf16.msra.mxu0 0
        %4217 = vmatprep.subr.bf16.mxu0 0
        %4218 = vmatpush1.bf16.msra.mxu0 0
        %4219 = vmatprep.subr.bf16.mxu0 0
        %4220 = vmatpush1.bf16.msra.mxu0 0
        %4221 = vmatprep.subr.bf16.mxu0 0
        %4222 = vmatpush1.bf16.msra.mxu0 0
        %4223 = vmatprep.subr.bf16.mxu0 0
        %4224 = vmatpush1.bf16.msra.mxu0 0
        %4225 = vmatprep.subr.bf16.mxu0 0
        %4226 = vmatpush1.bf16.msra.mxu0 0
        %4227 = vmatprep.subr.bf16.mxu0 0
        %4228 = vmatpush1.bf16.msra.mxu0 0
        %4229 = vmatprep.subr.bf16.mxu0 0
        %4230 = vmatpush1.bf16.msra.mxu0 0
        %4231 = vmatprep.subr.bf16.mxu0 0
        %4232 = vmatpush1.bf16.msra.mxu0 0
        %4233 = vmatprep.subr.bf16.mxu0 0
        %4234 = vmatpush1.bf16.msra.mxu0 0
        %4235 = vmatprep.subr.bf16.mxu0 0
        %4236 = vmatpush1.bf16.msra.mxu0 0
        %4237 = vmatprep.subr.bf16.mxu0 0
        %4238 = vmatpush1.bf16.msra.mxu0 0
        %4239 = vmatprep.subr.bf16.mxu0 0
        %4240 = vmatpush1.bf16.msra.mxu0 0
        %4241 = vmatprep.subr.bf16.mxu0 0
        %4242 = vmatpush1.bf16.msra.mxu0 0
        %4243 = vmatprep.subr.bf16.mxu0 0
        %4244 = vmatpush1.bf16.msra.mxu0 0
        %4245 = vmatprep.mubr.bf16.mxu0 0
        %4246 = vmatmul.mubr.bf16.gmra.mrb[0].mxu0 %v4166
        %v4247 = vpop.f32.mrb[0].mxu0
        %v4248 = vadd.f32 0.0, %v4247
        %v4249 = vpop.f32.mrb[0].mxu0
        %v4250 = vpop.f32.mrb[0].mxu0
        %v4251 = vadd.f32 0.0, %v4250
        %v4252 = vpop.f32.mrb[0].mxu0
        %4253 = vmatprep.mubr.bf16.mxu0 0
        %4254 = vmatmul.mubr.bf16.gmra.mrb[0].mxu0 %v4169
        %v4255 = vpop.f32.mrb[0].mxu0
        %v4256 = vadd.f32 0.0, %v4255
        %v4257 = vpop.f32.mrb[0].mxu0
        %v4258 = vpop.f32.mrb[0].mxu0
        %v4259 = vadd.f32 0.0, %v4258
        %v4260 = vpop.f32.mrb[0].mxu0
        %4261 = vmatprep.mubr.bf16.mxu0 0
        %4262 = vmatmul.mubr.bf16.gmra.mrb[0].mxu0 %v4172
        %v4263 = vpop.f32.mrb[0].mxu0
        %v4264 = vadd.f32 0.0, %v4263
        %v4265 = vpop.f32.mrb[0].mxu0
        %v4266 = vpop.f32.mrb[0].mxu0
        %v4267 = vadd.f32 0.0, %v4266
        %v4268 = vpop.f32.mrb[0].mxu0
        %4269 = vmatprep.mubr.bf16.mxu0 0
        %4270 = vmatmul.mubr.bf16.gmra.mrb[0].mxu0 %v4175
        %v4271 = vpop.f32.mrb[0].mxu0
        %v4272 = vadd.f32 0.0, %v4271
        %v4273 = vpop.f32.mrb[0].mxu0
        %v4274 = vpop.f32.mrb[0].mxu0
        %v4275 = vadd.f32 0.0, %v4274
        %v4276 = vpop.f32.mrb[0].mxu0
        %4277 = vmatprep.mubr.bf16.mxu0 0
        %4278 = vmatmul.mubr.bf16.gmra.mrb[0].mxu0 %v4178
        %v4279 = vpop.f32.mrb[0].mxu0
        %v4280 = vadd.f32 0.0, %v4279
        %v4281 = vpop.f32.mrb[0].mxu0
        %v4282 = vpop.f32.mrb[0].mxu0
        %v4283 = vadd.f32 0.0, %v4282
        %v4284 = vpop.f32.mrb[0].mxu0
        %4285 = vmatprep.mubr.bf16.mxu0 0
        %4286 = vmatmul.mubr.bf16.gmra.mrb[0].mxu0 %v4181
        %v4287 = vpop.f32.mrb[0].mxu0
        %v4288 = vadd.f32 0.0, %v4287
        %v4289 = vpop.f32.mrb[0].mxu0
        %v4290 = vpop.f32.mrb[0].mxu0
        %v4291 = vadd.f32 0.0, %v4290
        %v4292 = vpop.f32.mrb[0].mxu0
        %4293 = vmatprep.mubr.bf16.mxu0 0
        %4294 = vmatmul.mubr.bf16.gmra.mrb[0].mxu0 %v4184
        %v4295 = vpop.f32.mrb[0].mxu0
        %v4296 = vadd.f32 0.0, %v4295
        %v4297 = vpop.f32.mrb[0].mxu0
        %v4298 = vpop.f32.mrb[0].mxu0
        %v4299 = vadd.f32 0.0, %v4298
        %v4300 = vpop.f32.mrb[0].mxu0
        %4301 = vmatprep.mubr.bf16.mxu0 0
        %4302 = vmatmul.mubr.bf16.gmra.mrb[0].mxu0 %v4187
        %v4303 = vpop.f32.mrb[0].mxu0
        %v4304 = vadd.f32 0.0, %v4303
        %v4305 = vpop.f32.mrb[0].mxu0
        %v4306 = vpop.f32.mrb[0].mxu0
        %v4307 = vadd.f32 0.0, %v4306
        %v4308 = vpop.f32.mrb[0].mxu0
        %4309 = vmatprep.mubr.bf16.mxu0 0
        %4310 = vmatmul.mubr.bf16.gmra.mrb[0].mxu0 %v4190
        %v4311 = vpop.f32.mrb[0].mxu0
        %v4312 = vadd.f32 0.0, %v4311
        %v4313 = vpop.f32.mrb[0].mxu0
        %v4314 = vpop.f32.mrb[0].mxu0
        %v4315 = vadd.f32 0.0, %v4314
        %v4316 = vpop.f32.mrb[0].mxu0
        %4317 = vmatprep.mubr.bf16.mxu0 0
        %4318 = vmatmul.mubr.bf16.gmra.mrb[0].mxu0 %v4193
        %v4319 = vpop.f32.mrb[0].mxu0
        %v4320 = vadd.f32 0.0, %v4319
        %v4321 = vpop.f32.mrb[0].mxu0
        %v4322 = vpop.f32.mrb[0].mxu0
        %v4323 = vadd.f32 0.0, %v4322
        %v4324 = vpop.f32.mrb[0].mxu0
        %4325 = vmatprep.mubr.bf16.mxu0 0
        %4326 = vmatmul.mubr.bf16.gmra.mrb[0].mxu0 %v4196
        %v4327 = vpop.f32.mrb[0].mxu0
        %v4328 = vadd.f32 0.0, %v4327
        %v4329 = vpop.f32.mrb[0].mxu0
        %v4330 = vpop.f32.mrb[0].mxu0
        %v4331 = vadd.f32 0.0, %v4330
        %v4332 = vpop.f32.mrb[0].mxu0
        %4333 = vmatprep.mubr.bf16.mxu0 0
        %4334 = vmatmul.mubr.bf16.gmra.mrb[0].mxu0 %v4199
        %v4335 = vpop.f32.mrb[0].mxu0
        %v4336 = vadd.f32 0.0, %v4335
        %v4337 = vpop.f32.mrb[0].mxu0
        %v4338 = vpop.f32.mrb[0].mxu0
        %v4339 = vadd.f32 0.0, %v4338
        %v4340 = vpop.f32.mrb[0].mxu0
        %4341 = vmatprep.mubr.bf16.mxu0 0
        %4342 = vmatmul.mubr.bf16.gmra.mrb[0].mxu0 %v4202
        %v4343 = vpop.f32.mrb[0].mxu0
        %v4344 = vadd.f32 0.0, %v4343
        %v4345 = vpop.f32.mrb[0].mxu0
        %v4346 = vpop.f32.mrb[0].mxu0
        %v4347 = vadd.f32 0.0, %v4346
        %v4348 = vpop.f32.mrb[0].mxu0
        %4349 = vmatprep.mubr.bf16.mxu0 0
        %4350 = vmatmul.mubr.bf16.gmra.mrb[0].mxu0 %v4205
        %v4351 = vpop.f32.mrb[0].mxu0
        %v4352 = vadd.f32 0.0, %v4351
        %v4353 = vpop.f32.mrb[0].mxu0
        %v4354 = vpop.f32.mrb[0].mxu0
        %v4355 = vadd.f32 0.0, %v4354
        %v4356 = vpop.f32.mrb[0].mxu0
        %4357 = vmatprep.mubr.bf16.mxu0 0
        %4358 = vmatmul.mubr.bf16.gmra.mrb[0].mxu0 %v4208
        %v4359 = vpop.f32.mrb[0].mxu0
        %v4360 = vadd.f32 0.0, %v4359
        %v4361 = vpop.f32.mrb[0].mxu0
        %v4362 = vpop.f32.mrb[0].mxu0
        %v4363 = vadd.f32 0.0, %v4362
        %v4364 = vpop.f32.mrb[0].mxu0
        %4365 = vmatprep.mubr.bf16.mxu0 0
        %4366 = vmatmul.mubr.bf16.gmra.mrb[0].mxu0 %v4211
        %v4367 = vpop.f32.mrb[0].mxu0
        %v4368 = vadd.f32 0.0, %v4367
        %v4369 = vpop.f32.mrb[0].mxu0
        %v4370 = vpop.f32.mrb[0].mxu0
        %v4371 = vadd.f32 0.0, %v4370
        %v4372 = vpop.f32.mrb[0].mxu0
        %4373 = vdwg.mxu0
        %v4374 = vadd.f32 %v2969, %v4248
        %v4375 = vadd.f32 %v2970, %v4251
        %v4376 = vadd.f32 %v2971, %v4256
        %v4377 = vadd.f32 %v2972, %v4259
        %v4378 = vadd.f32 %v2973, %v4264
        %v4379 = vadd.f32 %v2974, %v4267
        %v4380 = vadd.f32 %v2975, %v4272
        %v4381 = vadd.f32 %v2976, %v4275
        %v4382 = vadd.f32 %v2977, %v4280
        %v4383 = vadd.f32 %v2978, %v4283
        %v4384 = vadd.f32 %v2979, %v4288
        %v4385 = vadd.f32 %v2980, %v4291
        %v4386 = vadd.f32 %v2981, %v4296
        %v4387 = vadd.f32 %v2982, %v4299
        %v4388 = vadd.f32 %v2983, %v4304
        %v4389 = vadd.f32 %v2984, %v4307
        %v4390 = vadd.f32 %v2985, %v4312
        %v4391 = vadd.f32 %v2986, %v4315
        %v4392 = vadd.f32 %v2987, %v4320
        %v4393 = vadd.f32 %v2988, %v4323
        %v4394 = vadd.f32 %v2989, %v4328
        %v4395 = vadd.f32 %v2990, %v4331
        %v4396 = vadd.f32 %v2991, %v4336
        %v4397 = vadd.f32 %v2992, %v4339
        %v4398 = vadd.f32 %v2993, %v4344
        %v4399 = vadd.f32 %v2994, %v4347
        %v4400 = vadd.f32 %v2995, %v4352
        %v4401 = vadd.f32 %v2996, %v4355
        %v4402 = vadd.f32 %v2997, %v4360
        %v4403 = vadd.f32 %v2998, %v4363
        %v4404 = vadd.f32 %v2999, %v4368
        %v4405 = vadd.f32 %v3000, %v4371
        %v4406 = vld [vmem:[%s687] sm:$0x1]
        %v4407 = vld [vmem:[%s690] sm:$0x1]
        %v4408 = vsel %vm816, %v4374, 0.0
        %4409 = vadd.xlane.f32.xlu0 %v4408
        %v4410 = vpop.xlane.xlu0 %4409
        %v4411 = vsel %vm816, %v4375, 0.0
        %4412 = vadd.xlane.f32.xlu0 %v4411
        %v4413 = vpop.xlane.xlu0 %4412
        %v4414 = vsel %vm816, %v4376, 0.0
        %4415 = vadd.xlane.f32.xlu0 %v4414
        %v4416 = vpop.xlane.xlu0 %4415
        %v4417 = vsel %vm816, %v4377, 0.0
        %4418 = vadd.xlane.f32.xlu0 %v4417
        %v4419 = vpop.xlane.xlu0 %4418
        %v4420 = vsel %vm816, %v4378, 0.0
        %4421 = vadd.xlane.f32.xlu0 %v4420
        %v4422 = vpop.xlane.xlu0 %4421
        %v4423 = vsel %vm816, %v4379, 0.0
        %4424 = vadd.xlane.f32.xlu0 %v4423
        %v4425 = vpop.xlane.xlu0 %4424
        %v4426 = vsel %vm816, %v4380, 0.0
        %4427 = vadd.xlane.f32.xlu0 %v4426
        %v4428 = vpop.xlane.xlu0 %4427
        %v4429 = vsel %vm816, %v4381, 0.0
        %4430 = vadd.xlane.f32.xlu0 %v4429
        %v4431 = vpop.xlane.xlu0 %4430
        %v4432 = vsel %vm816, %v4382, 0.0
        %4433 = vadd.xlane.f32.xlu0 %v4432
        %v4434 = vpop.xlane.xlu0 %4433
        %v4435 = vsel %vm816, %v4383, 0.0
        %4436 = vadd.xlane.f32.xlu0 %v4435
        %v4437 = vpop.xlane.xlu0 %4436
        %v4438 = vsel %vm816, %v4384, 0.0
        %4439 = vadd.xlane.f32.xlu0 %v4438
        %v4440 = vpop.xlane.xlu0 %4439
        %v4441 = vsel %vm816, %v4385, 0.0
        %4442 = vadd.xlane.f32.xlu0 %v4441
        %v4443 = vpop.xlane.xlu0 %4442
        %v4444 = vsel %vm816, %v4386, 0.0
        %4445 = vadd.xlane.f32.xlu0 %v4444
        %v4446 = vpop.xlane.xlu0 %4445
        %v4447 = vsel %vm816, %v4387, 0.0
        %4448 = vadd.xlane.f32.xlu0 %v4447
        %v4449 = vpop.xlane.xlu0 %4448
        %v4450 = vsel %vm816, %v4388, 0.0
        %4451 = vadd.xlane.f32.xlu0 %v4450
        %v4452 = vpop.xlane.xlu0 %4451
        %v4453 = vsel %vm816, %v4389, 0.0
        %4454 = vadd.xlane.f32.xlu0 %v4453
        %v4455 = vpop.xlane.xlu0 %4454
        %v4456 = vsel %vm816, %v4390, 0.0
        %4457 = vadd.xlane.f32.xlu0 %v4456
        %v4458 = vpop.xlane.xlu0 %4457
        %v4459 = vsel %vm816, %v4391, 0.0
        %4460 = vadd.xlane.f32.xlu0 %v4459
        %v4461 = vpop.xlane.xlu0 %4460
        %v4462 = vsel %vm816, %v4392, 0.0
        %4463 = vadd.xlane.f32.xlu0 %v4462
        %v4464 = vpop.xlane.xlu0 %4463
        %v4465 = vsel %vm816, %v4393, 0.0
        %4466 = vadd.xlane.f32.xlu0 %v4465
        %v4467 = vpop.xlane.xlu0 %4466
        %v4468 = vsel %vm816, %v4394, 0.0
        %4469 = vadd.xlane.f32.xlu0 %v4468
        %v4470 = vpop.xlane.xlu0 %4469
        %v4471 = vsel %vm816, %v4395, 0.0
        %4472 = vadd.xlane.f32.xlu0 %v4471
        %v4473 = vpop.xlane.xlu0 %4472
        %v4474 = vsel %vm816, %v4396, 0.0
        %4475 = vadd.xlane.f32.xlu0 %v4474
        %v4476 = vpop.xlane.xlu0 %4475
        %v4477 = vsel %vm816, %v4397, 0.0
        %4478 = vadd.xlane.f32.xlu0 %v4477
        %v4479 = vpop.xlane.xlu0 %4478
        %v4480 = vsel %vm816, %v4398, 0.0
        %4481 = vadd.xlane.f32.xlu0 %v4480
        %v4482 = vpop.xlane.xlu0 %4481
        %v4483 = vsel %vm816, %v4399, 0.0
        %4484 = vadd.xlane.f32.xlu0 %v4483
        %v4485 = vpop.xlane.xlu0 %4484
        %v4486 = vsel %vm816, %v4400, 0.0
        %4487 = vadd.xlane.f32.xlu0 %v4486
        %v4488 = vpop.xlane.xlu0 %4487
        %v4489 = vsel %vm816, %v4401, 0.0
        %4490 = vadd.xlane.f32.xlu0 %v4489
        %v4491 = vpop.xlane.xlu0 %4490
        %v4492 = vsel %vm816, %v4402, 0.0
        %4493 = vadd.xlane.f32.xlu0 %v4492
        %v4494 = vpop.xlane.xlu0 %4493
        %v4495 = vsel %vm816, %v4403, 0.0
        %4496 = vadd.xlane.f32.xlu0 %v4495
        %v4497 = vpop.xlane.xlu0 %4496
        %v4498 = vsel %vm816, %v4404, 0.0
        %4499 = vadd.xlane.f32.xlu0 %v4498
        %v4500 = vpop.xlane.xlu0 %4499
        %v4501 = vsel %vm816, %v4405, 0.0
        %4502 = vadd.xlane.f32.xlu0 %v4501
        %v4503 = vpop.xlane.xlu0 %4502
        %v4504 = vmul.f32 %v4410, %v913
        %v4505 = vmul.f32 %v4413, %v913
        %v4506 = vmul.f32 %v4416, %v913
        %v4507 = vmul.f32 %v4419, %v913
        %v4508 = vmul.f32 %v4422, %v913
        %v4509 = vmul.f32 %v4425, %v913
        %v4510 = vmul.f32 %v4428, %v913
        %v4511 = vmul.f32 %v4431, %v913
        %v4512 = vmul.f32 %v4434, %v913
        %v4513 = vmul.f32 %v4437, %v913
        %v4514 = vmul.f32 %v4440, %v913
        %v4515 = vmul.f32 %v4443, %v913
        %v4516 = vmul.f32 %v4446, %v913
        %v4517 = vmul.f32 %v4449, %v913
        %v4518 = vmul.f32 %v4452, %v913
        %v4519 = vmul.f32 %v4455, %v913
        %v4520 = vmul.f32 %v4458, %v913
        %v4521 = vmul.f32 %v4461, %v913
        %v4522 = vmul.f32 %v4464, %v913
        %v4523 = vmul.f32 %v4467, %v913
        %v4524 = vmul.f32 %v4470, %v913
        %v4525 = vmul.f32 %v4473, %v913
        %v4526 = vmul.f32 %v4476, %v913
        %v4527 = vmul.f32 %v4479, %v913
        %v4528 = vmul.f32 %v4482, %v913
        %v4529 = vmul.f32 %v4485, %v913
        %v4530 = vmul.f32 %v4488, %v913
        %v4531 = vmul.f32 %v4491, %v913
        %v4532 = vmul.f32 %v4494, %v913
        %v4533 = vmul.f32 %v4497, %v913
        %v4534 = vmul.f32 %v4500, %v913
        %v4535 = vmul.f32 %v4503, %v913
        %v4536 = vsub.f32 %v4374, %v4504
        %v4537 = vsub.f32 %v4375, %v4505
        %v4538 = vsub.f32 %v4376, %v4506
        %v4539 = vsub.f32 %v4377, %v4507
        %v4540 = vsub.f32 %v4378, %v4508
        %v4541 = vsub.f32 %v4379, %v4509
        %v4542 = vsub.f32 %v4380, %v4510
        %v4543 = vsub.f32 %v4381, %v4511
        %v4544 = vsub.f32 %v4382, %v4512
        %v4545 = vsub.f32 %v4383, %v4513
        %v4546 = vsub.f32 %v4384, %v4514
        %v4547 = vsub.f32 %v4385, %v4515
        %v4548 = vsub.f32 %v4386, %v4516
        %v4549 = vsub.f32 %v4387, %v4517
        %v4550 = vsub.f32 %v4388, %v4518
        %v4551 = vsub.f32 %v4389, %v4519
        %v4552 = vsub.f32 %v4390, %v4520
        %v4553 = vsub.f32 %v4391, %v4521
        %v4554 = vsub.f32 %v4392, %v4522
        %v4555 = vsub.f32 %v4393, %v4523
        %v4556 = vsub.f32 %v4394, %v4524
        %v4557 = vsub.f32 %v4395, %v4525
        %v4558 = vsub.f32 %v4396, %v4526
        %v4559 = vsub.f32 %v4397, %v4527
        %v4560 = vsub.f32 %v4398, %v4528
        %v4561 = vsub.f32 %v4399, %v4529
        %v4562 = vsub.f32 %v4400, %v4530
        %v4563 = vsub.f32 %v4401, %v4531
        %v4564 = vsub.f32 %v4402, %v4532
        %v4565 = vsub.f32 %v4403, %v4533
        %v4566 = vsub.f32 %v4404, %v4534
        %v4567 = vsub.f32 %v4405, %v4535
        %v4568 = vmul.f32 %v4536, %v4536
        %v4569 = vmul.f32 %v4537, %v4537
        %v4570 = vmul.f32 %v4538, %v4538
        %v4571 = vmul.f32 %v4539, %v4539
        %v4572 = vmul.f32 %v4540, %v4540
        %v4573 = vmul.f32 %v4541, %v4541
        %v4574 = vmul.f32 %v4542, %v4542
        %v4575 = vmul.f32 %v4543, %v4543
        %v4576 = vmul.f32 %v4544, %v4544
        %v4577 = vmul.f32 %v4545, %v4545
        %v4578 = vmul.f32 %v4546, %v4546
        %v4579 = vmul.f32 %v4547, %v4547
        %v4580 = vmul.f32 %v4548, %v4548
        %v4581 = vmul.f32 %v4549, %v4549
        %v4582 = vmul.f32 %v4550, %v4550
        %v4583 = vmul.f32 %v4551, %v4551
        %v4584 = vmul.f32 %v4552, %v4552
        %v4585 = vmul.f32 %v4553, %v4553
        %v4586 = vmul.f32 %v4554, %v4554
        %v4587 = vmul.f32 %v4555, %v4555
        %v4588 = vmul.f32 %v4556, %v4556
        %v4589 = vmul.f32 %v4557, %v4557
        %v4590 = vmul.f32 %v4558, %v4558
        %v4591 = vmul.f32 %v4559, %v4559
        %v4592 = vmul.f32 %v4560, %v4560
        %v4593 = vmul.f32 %v4561, %v4561
        %v4594 = vmul.f32 %v4562, %v4562
        %v4595 = vmul.f32 %v4563, %v4563
        %v4596 = vmul.f32 %v4564, %v4564
        %v4597 = vmul.f32 %v4565, %v4565
        %v4598 = vmul.f32 %v4566, %v4566
        %v4599 = vmul.f32 %v4567, %v4567
        %v4600 = vsel %vm816, %v4568, 0.0
        %4601 = vadd.xlane.f32.xlu0 %v4600
        %v4602 = vpop.xlane.xlu0 %4601
        %v4603 = vsel %vm816, %v4569, 0.0
        %4604 = vadd.xlane.f32.xlu0 %v4603
        %v4605 = vpop.xlane.xlu0 %4604
        %v4606 = vsel %vm816, %v4570, 0.0
        %4607 = vadd.xlane.f32.xlu0 %v4606
        %v4608 = vpop.xlane.xlu0 %4607
        %v4609 = vsel %vm816, %v4571, 0.0
        %4610 = vadd.xlane.f32.xlu0 %v4609
        %v4611 = vpop.xlane.xlu0 %4610
        %v4612 = vsel %vm816, %v4572, 0.0
        %4613 = vadd.xlane.f32.xlu0 %v4612
        %v4614 = vpop.xlane.xlu0 %4613
        %v4615 = vsel %vm816, %v4573, 0.0
        %4616 = vadd.xlane.f32.xlu0 %v4615
        %v4617 = vpop.xlane.xlu0 %4616
        %v4618 = vsel %vm816, %v4574, 0.0
        %4619 = vadd.xlane.f32.xlu0 %v4618
        %v4620 = vpop.xlane.xlu0 %4619
        %v4621 = vsel %vm816, %v4575, 0.0
        %4622 = vadd.xlane.f32.xlu0 %v4621
        %v4623 = vpop.xlane.xlu0 %4622
        %v4624 = vsel %vm816, %v4576, 0.0
        %4625 = vadd.xlane.f32.xlu0 %v4624
        %v4626 = vpop.xlane.xlu0 %4625
        %v4627 = vsel %vm816, %v4577, 0.0
        %4628 = vadd.xlane.f32.xlu0 %v4627
        %v4629 = vpop.xlane.xlu0 %4628
        %v4630 = vsel %vm816, %v4578, 0.0
        %4631 = vadd.xlane.f32.xlu0 %v4630
        %v4632 = vpop.xlane.xlu0 %4631
        %v4633 = vsel %vm816, %v4579, 0.0
        %4634 = vadd.xlane.f32.xlu0 %v4633
        %v4635 = vpop.xlane.xlu0 %4634
        %v4636 = vsel %vm816, %v4580, 0.0
        %4637 = vadd.xlane.f32.xlu0 %v4636
        %v4638 = vpop.xlane.xlu0 %4637
        %v4639 = vsel %vm816, %v4581, 0.0
        %4640 = vadd.xlane.f32.xlu0 %v4639
        %v4641 = vpop.xlane.xlu0 %4640
        %v4642 = vsel %vm816, %v4582, 0.0
        %4643 = vadd.xlane.f32.xlu0 %v4642
        %v4644 = vpop.xlane.xlu0 %4643
        %v4645 = vsel %vm816, %v4583, 0.0
        %4646 = vadd.xlane.f32.xlu0 %v4645
        %v4647 = vpop.xlane.xlu0 %4646
        %v4648 = vsel %vm816, %v4584, 0.0
        %4649 = vadd.xlane.f32.xlu0 %v4648
        %v4650 = vpop.xlane.xlu0 %4649
        %v4651 = vsel %vm816, %v4585, 0.0
        %4652 = vadd.xlane.f32.xlu0 %v4651
        %v4653 = vpop.xlane.xlu0 %4652
        %v4654 = vsel %vm816, %v4586, 0.0
        %4655 = vadd.xlane.f32.xlu0 %v4654
        %v4656 = vpop.xlane.xlu0 %4655
        %v4657 = vsel %vm816, %v4587, 0.0
        %4658 = vadd.xlane.f32.xlu0 %v4657
        %v4659 = vpop.xlane.xlu0 %4658
        %v4660 = vsel %vm816, %v4588, 0.0
        %4661 = vadd.xlane.f32.xlu0 %v4660
        %v4662 = vpop.xlane.xlu0 %4661
        %v4663 = vsel %vm816, %v4589, 0.0
        %4664 = vadd.xlane.f32.xlu0 %v4663
        %v4665 = vpop.xlane.xlu0 %4664
        %v4666 = vsel %vm816, %v4590, 0.0
        %4667 = vadd.xlane.f32.xlu0 %v4666
        %v4668 = vpop.xlane.xlu0 %4667
        %v4669 = vsel %vm816, %v4591, 0.0
        %4670 = vadd.xlane.f32.xlu0 %v4669
        %v4671 = vpop.xlane.xlu0 %4670
        %v4672 = vsel %vm816, %v4592, 0.0
        %4673 = vadd.xlane.f32.xlu0 %v4672
        %v4674 = vpop.xlane.xlu0 %4673
        %v4675 = vsel %vm816, %v4593, 0.0
        %4676 = vadd.xlane.f32.xlu0 %v4675
        %v4677 = vpop.xlane.xlu0 %4676
        %v4678 = vsel %vm816, %v4594, 0.0
        %4679 = vadd.xlane.f32.xlu0 %v4678
        %v4680 = vpop.xlane.xlu0 %4679
        %v4681 = vsel %vm816, %v4595, 0.0
        %4682 = vadd.xlane.f32.xlu0 %v4681
        %v4683 = vpop.xlane.xlu0 %4682
        %v4684 = vsel %vm816, %v4596, 0.0
        %4685 = vadd.xlane.f32.xlu0 %v4684
        %v4686 = vpop.xlane.xlu0 %4685
        %v4687 = vsel %vm816, %v4597, 0.0
        %4688 = vadd.xlane.f32.xlu0 %v4687
        %v4689 = vpop.xlane.xlu0 %4688
        %v4690 = vsel %vm816, %v4598, 0.0
        %4691 = vadd.xlane.f32.xlu0 %v4690
        %v4692 = vpop.xlane.xlu0 %4691
        %v4693 = vsel %vm816, %v4599, 0.0
        %4694 = vadd.xlane.f32.xlu0 %v4693
        %v4695 = vpop.xlane.xlu0 %4694
        %v4696 = vmul.f32 %v4602, %v913
        %v4697 = vmul.f32 %v4605, %v913
        %v4698 = vmul.f32 %v4608, %v913
        %v4699 = vmul.f32 %v4611, %v913
        %v4700 = vmul.f32 %v4614, %v913
        %v4701 = vmul.f32 %v4617, %v913
        %v4702 = vmul.f32 %v4620, %v913
        %v4703 = vmul.f32 %v4623, %v913
        %v4704 = vmul.f32 %v4626, %v913
        %v4705 = vmul.f32 %v4629, %v913
        %v4706 = vmul.f32 %v4632, %v913
        %v4707 = vmul.f32 %v4635, %v913
        %v4708 = vmul.f32 %v4638, %v913
        %v4709 = vmul.f32 %v4641, %v913
        %v4710 = vmul.f32 %v4644, %v913
        %v4711 = vmul.f32 %v4647, %v913
        %v4712 = vmul.f32 %v4650, %v913
        %v4713 = vmul.f32 %v4653, %v913
        %v4714 = vmul.f32 %v4656, %v913
        %v4715 = vmul.f32 %v4659, %v913
        %v4716 = vmul.f32 %v4662, %v913
        %v4717 = vmul.f32 %v4665, %v913
        %v4718 = vmul.f32 %v4668, %v913
        %v4719 = vmul.f32 %v4671, %v913
        %v4720 = vmul.f32 %v4674, %v913
        %v4721 = vmul.f32 %v4677, %v913
        %v4722 = vmul.f32 %v4680, %v913
        %v4723 = vmul.f32 %v4683, %v913
        %v4724 = vmul.f32 %v4686, %v913
        %v4725 = vmul.f32 %v4689, %v913
        %v4726 = vmul.f32 %v4692, %v913
        %v4727 = vmul.f32 %v4695, %v913
        %v4728 = vadd.f32 %v4696, 1e-05
        %v4729 = vadd.f32 %v4697, 1e-05
        %v4730 = vadd.f32 %v4698, 1e-05
        %v4731 = vadd.f32 %v4699, 1e-05
        %v4732 = vadd.f32 %v4700, 1e-05
        %v4733 = vadd.f32 %v4701, 1e-05
        %v4734 = vadd.f32 %v4702, 1e-05
        %v4735 = vadd.f32 %v4703, 1e-05
        %v4736 = vadd.f32 %v4704, 1e-05
        %v4737 = vadd.f32 %v4705, 1e-05
        %v4738 = vadd.f32 %v4706, 1e-05
        %v4739 = vadd.f32 %v4707, 1e-05
        %v4740 = vadd.f32 %v4708, 1e-05
        %v4741 = vadd.f32 %v4709, 1e-05
        %v4742 = vadd.f32 %v4710, 1e-05
        %v4743 = vadd.f32 %v4711, 1e-05
        %v4744 = vadd.f32 %v4712, 1e-05
        %v4745 = vadd.f32 %v4713, 1e-05
        %v4746 = vadd.f32 %v4714, 1e-05
        %v4747 = vadd.f32 %v4715, 1e-05
        %v4748 = vadd.f32 %v4716, 1e-05
        %v4749 = vadd.f32 %v4717, 1e-05
        %v4750 = vadd.f32 %v4718, 1e-05
        %v4751 = vadd.f32 %v4719, 1e-05
        %v4752 = vadd.f32 %v4720, 1e-05
        %v4753 = vadd.f32 %v4721, 1e-05
        %v4754 = vadd.f32 %v4722, 1e-05
        %v4755 = vadd.f32 %v4723, 1e-05
        %v4756 = vadd.f32 %v4724, 1e-05
        %v4757 = vadd.f32 %v4725, 1e-05
        %v4758 = vadd.f32 %v4726, 1e-05
        %v4759 = vadd.f32 %v4727, 1e-05
        %v4760 = vrsqrt.pop %v4728
        %v4761 = vrsqrt.pop %v4729
        %v4762 = vrsqrt.pop %v4730
        %v4763 = vrsqrt.pop %v4731
        %v4764 = vrsqrt.pop %v4732
        %v4765 = vrsqrt.pop %v4733
        %v4766 = vrsqrt.pop %v4734
        %v4767 = vrsqrt.pop %v4735
        %v4768 = vrsqrt.pop %v4736
        %v4769 = vrsqrt.pop %v4737
        %v4770 = vrsqrt.pop %v4738
        %v4771 = vrsqrt.pop %v4739
        %v4772 = vrsqrt.pop %v4740
        %v4773 = vrsqrt.pop %v4741
        %v4774 = vrsqrt.pop %v4742
        %v4775 = vrsqrt.pop %v4743
        %v4776 = vrsqrt.pop %v4744
        %v4777 = vrsqrt.pop %v4745
        %v4778 = vrsqrt.pop %v4746
        %v4779 = vrsqrt.pop %v4747
        %v4780 = vrsqrt.pop %v4748
        %v4781 = vrsqrt.pop %v4749
        %v4782 = vrsqrt.pop %v4750
        %v4783 = vrsqrt.pop %v4751
        %v4784 = vrsqrt.pop %v4752
        %v4785 = vrsqrt.pop %v4753
        %v4786 = vrsqrt.pop %v4754
        %v4787 = vrsqrt.pop %v4755
        %v4788 = vrsqrt.pop %v4756
        %v4789 = vrsqrt.pop %v4757
        %v4790 = vrsqrt.pop %v4758
        %v4791 = vrsqrt.pop %v4759
        %v4792 = vmul.f32 %v4536, %v4760
        %v4793 = vmul.f32 %v4537, %v4761
        %v4794 = vmul.f32 %v4538, %v4762
        %v4795 = vmul.f32 %v4539, %v4763
        %v4796 = vmul.f32 %v4540, %v4764
        %v4797 = vmul.f32 %v4541, %v4765
        %v4798 = vmul.f32 %v4542, %v4766
        %v4799 = vmul.f32 %v4543, %v4767
        %v4800 = vmul.f32 %v4544, %v4768
        %v4801 = vmul.f32 %v4545, %v4769
        %v4802 = vmul.f32 %v4546, %v4770
        %v4803 = vmul.f32 %v4547, %v4771
        %v4804 = vmul.f32 %v4548, %v4772
        %v4805 = vmul.f32 %v4549, %v4773
        %v4806 = vmul.f32 %v4550, %v4774
        %v4807 = vmul.f32 %v4551, %v4775
        %v4808 = vmul.f32 %v4552, %v4776
        %v4809 = vmul.f32 %v4553, %v4777
        %v4810 = vmul.f32 %v4554, %v4778
        %v4811 = vmul.f32 %v4555, %v4779
        %v4812 = vmul.f32 %v4556, %v4780
        %v4813 = vmul.f32 %v4557, %v4781
        %v4814 = vmul.f32 %v4558, %v4782
        %v4815 = vmul.f32 %v4559, %v4783
        %v4816 = vmul.f32 %v4560, %v4784
        %v4817 = vmul.f32 %v4561, %v4785
        %v4818 = vmul.f32 %v4562, %v4786
        %v4819 = vmul.f32 %v4563, %v4787
        %v4820 = vmul.f32 %v4564, %v4788
        %v4821 = vmul.f32 %v4565, %v4789
        %v4822 = vmul.f32 %v4566, %v4790
        %v4823 = vmul.f32 %v4567, %v4791
        %v4825 = vlaneseq
        %v4826 = vshrl.u32 %v4825, 7
        %v4827 = vsub.s32 0, %v4826
        %v4828 = vrot.slane %v4406, %v4827
        %v4830 = vmul.f32 %v4792, %v4828
        %v4831 = vmul.f32 %v4793, %v4828
        %v4832 = vmul.f32 %v4794, %v4828
        %v4833 = vmul.f32 %v4795, %v4828
        %v4834 = vmul.f32 %v4796, %v4828
        %v4835 = vmul.f32 %v4797, %v4828
        %v4836 = vmul.f32 %v4798, %v4828
        %v4837 = vmul.f32 %v4799, %v4828
        %v4838 = vmul.f32 %v4800, %v4828
        %v4839 = vmul.f32 %v4801, %v4828
        %v4840 = vmul.f32 %v4802, %v4828
        %v4841 = vmul.f32 %v4803, %v4828
        %v4842 = vmul.f32 %v4804, %v4828
        %v4843 = vmul.f32 %v4805, %v4828
        %v4844 = vmul.f32 %v4806, %v4828
        %v4845 = vmul.f32 %v4807, %v4828
        %v4846 = vmul.f32 %v4808, %v4828
        %v4847 = vmul.f32 %v4809, %v4828
        %v4848 = vmul.f32 %v4810, %v4828
        %v4849 = vmul.f32 %v4811, %v4828
        %v4850 = vmul.f32 %v4812, %v4828
        %v4851 = vmul.f32 %v4813, %v4828
        %v4852 = vmul.f32 %v4814, %v4828
        %v4853 = vmul.f32 %v4815, %v4828
        %v4854 = vmul.f32 %v4816, %v4828
        %v4855 = vmul.f32 %v4817, %v4828
        %v4856 = vmul.f32 %v4818, %v4828
        %v4857 = vmul.f32 %v4819, %v4828
        %v4858 = vmul.f32 %v4820, %v4828
        %v4859 = vmul.f32 %v4821, %v4828
        %v4860 = vmul.f32 %v4822, %v4828
        %v4861 = vmul.f32 %v4823, %v4828
        %v4863 = vlaneseq
        %v4864 = vshrl.u32 %v4863, 7
        %v4865 = vsub.s32 0, %v4864
        %v4866 = vrot.slane %v4407, %v4865
        %v4868 = vadd.f32 %v4830, %v4866
        %v4869 = vadd.f32 %v4831, %v4866
        %v4870 = vadd.f32 %v4832, %v4866
        %v4871 = vadd.f32 %v4833, %v4866
        %v4872 = vadd.f32 %v4834, %v4866
        %v4873 = vadd.f32 %v4835, %v4866
        %v4874 = vadd.f32 %v4836, %v4866
        %v4875 = vadd.f32 %v4837, %v4866
        %v4876 = vadd.f32 %v4838, %v4866
        %v4877 = vadd.f32 %v4839, %v4866
        %v4878 = vadd.f32 %v4840, %v4866
        %v4879 = vadd.f32 %v4841, %v4866
        %v4880 = vadd.f32 %v4842, %v4866
        %v4881 = vadd.f32 %v4843, %v4866
        %v4882 = vadd.f32 %v4844, %v4866
        %v4883 = vadd.f32 %v4845, %v4866
        %v4884 = vadd.f32 %v4846, %v4866
        %v4885 = vadd.f32 %v4847, %v4866
        %v4886 = vadd.f32 %v4848, %v4866
        %v4887 = vadd.f32 %v4849, %v4866
        %v4888 = vadd.f32 %v4850, %v4866
        %v4889 = vadd.f32 %v4851, %v4866
        %v4890 = vadd.f32 %v4852, %v4866
        %v4891 = vadd.f32 %v4853, %v4866
        %v4892 = vadd.f32 %v4854, %v4866
        %v4893 = vadd.f32 %v4855, %v4866
        %v4894 = vadd.f32 %v4856, %v4866
        %v4895 = vadd.f32 %v4857, %v4866
        %v4896 = vadd.f32 %v4858, %v4866
        %v4897 = vadd.f32 %v4859, %v4866
        %v4898 = vadd.f32 %v4860, %v4866
        %v4899 = vadd.f32 %v4861, %v4866
        %v4900 = vpack.c.bf16 %v4869, %v4868
        %v4901 = vpack.c.bf16 %v4871, %v4870
        %v4902 = vpack.c.bf16 %v4873, %v4872
        %v4903 = vpack.c.bf16 %v4875, %v4874
        %v4904 = vpack.c.bf16 %v4877, %v4876
        %v4905 = vpack.c.bf16 %v4879, %v4878
        %v4906 = vpack.c.bf16 %v4881, %v4880
        %v4907 = vpack.c.bf16 %v4883, %v4882
        %v4908 = vpack.c.bf16 %v4885, %v4884
        %v4909 = vpack.c.bf16 %v4887, %v4886
        %v4910 = vpack.c.bf16 %v4889, %v4888
        %v4911 = vpack.c.bf16 %v4891, %v4890
        %v4912 = vpack.c.bf16 %v4893, %v4892
        %v4913 = vpack.c.bf16 %v4895, %v4894
        %v4914 = vpack.c.bf16 %v4897, %v4896
        %v4915 = vpack.c.bf16 %v4899, %v4898
        %v4916 = vld [vmem:[%s695] sm:$0xf]
        %v4917 = vld [vmem:[%s695 + $0x4] sm:$0xf]
        %v4918 = vld [vmem:[%s695 + $0x8] sm:$0xf]
        %v4919 = vld [vmem:[%s695 + $0xc] sm:$0xf]
        %v4920 = vld [vmem:[%s698] sm:$0x1]
        %v4922 = vlaneseq
        %v4923 = vshrl.u32 %v4922, 7
        %v4924 = vsub.s32 0, %v4923
        %v4925 = vrot.slane %v4920, %v4924
        %v4931 = vunpack.c.l.b16 %v4916
        %v4932 = vunpack.c.l.b16 %v4917
        %v4933 = vunpack.c.l.b16 %v4918
        %v4934 = vunpack.c.l.b16 %v4919
        %v4935 = vpack.c.b16 %v4932, %v4931
        %v4936 = vpack.c.b16 %v4934, %v4933
        %v4940 = vsel %vm816, %v4900, 0
        %v4943 = vsel %vm816, %v4901, 0
        %v4946 = vsel %vm816, %v4902, 0
        %v4949 = vsel %vm816, %v4903, 0
        %v4952 = vsel %vm816, %v4904, 0
        %v4955 = vsel %vm816, %v4905, 0
        %v4958 = vsel %vm816, %v4906, 0
        %v4961 = vsel %vm816, %v4907, 0
        %v4964 = vsel %vm816, %v4908, 0
        %v4967 = vsel %vm816, %v4909, 0
        %v4970 = vsel %vm816, %v4910, 0
        %v4973 = vsel %vm816, %v4911, 0
        %v4976 = vsel %vm816, %v4912, 0
        %v4979 = vsel %vm816, %v4913, 0
        %v4982 = vsel %vm816, %v4914, 0
        %v4985 = vsel %vm816, %v4915, 0
        %4987 = vmatprep.subr.bf16.mxu0 0
        %4988 = vmatpush1.bf16.msra.mxu0 %v4935
        %4989 = vmatprep.subr.bf16.mxu0 0
        %4990 = vmatpush1.bf16.msra.mxu0 %v4936
        %4991 = vmatprep.subr.bf16.mxu0 0
        %4992 = vmatpush1.bf16.msra.mxu0 0
        %4993 = vmatprep.subr.bf16.mxu0 0
        %4994 = vmatpush1.bf16.msra.mxu0 0
        %4995 = vmatprep.subr.bf16.mxu0 0
        %4996 = vmatpush1.bf16.msra.mxu0 0
        %4997 = vmatprep.subr.bf16.mxu0 0
        %4998 = vmatpush1.bf16.msra.mxu0 0
        %4999 = vmatprep.subr.bf16.mxu0 0
        %5000 = vmatpush1.bf16.msra.mxu0 0
        %5001 = vmatprep.subr.bf16.mxu0 0
        %5002 = vmatpush1.bf16.msra.mxu0 0
        %5003 = vmatprep.subr.bf16.mxu0 0
        %5004 = vmatpush1.bf16.msra.mxu0 0
        %5005 = vmatprep.subr.bf16.mxu0 0
        %5006 = vmatpush1.bf16.msra.mxu0 0
        %5007 = vmatprep.subr.bf16.mxu0 0
        %5008 = vmatpush1.bf16.msra.mxu0 0
        %5009 = vmatprep.subr.bf16.mxu0 0
        %5010 = vmatpush1.bf16.msra.mxu0 0
        %5011 = vmatprep.subr.bf16.mxu0 0
        %5012 = vmatpush1.bf16.msra.mxu0 0
        %5013 = vmatprep.subr.bf16.mxu0 0
        %5014 = vmatpush1.bf16.msra.mxu0 0
        %5015 = vmatprep.subr.bf16.mxu0 0
        %5016 = vmatpush1.bf16.msra.mxu0 0
        %5017 = vmatprep.subr.bf16.mxu0 0
        %5018 = vmatpush1.bf16.msra.mxu0 0
        %5019 = vmatprep.mubr.bf16.mxu0 0
        %5020 = vmatmul.mubr.bf16.gmra.mrb[0].mxu0 %v4940
        %v5021 = vpop.f32.mrb[0].mxu0
        %v5022 = vadd.f32 %v4925, %v5021
        %v5023 = vpop.f32.mrb[0].mxu0
        %v5024 = vpop.f32.mrb[0].mxu0
        %v5025 = vadd.f32 %v4925, %v5024
        %v5026 = vpop.f32.mrb[0].mxu0
        %5027 = vmatprep.mubr.bf16.mxu0 0
        %5028 = vmatmul.mubr.bf16.gmra.mrb[0].mxu0 %v4943
        %v5029 = vpop.f32.mrb[0].mxu0
        %v5030 = vadd.f32 %v4925, %v5029
        %v5031 = vpop.f32.mrb[0].mxu0
        %v5032 = vpop.f32.mrb[0].mxu0
        %v5033 = vadd.f32 %v4925, %v5032
        %v5034 = vpop.f32.mrb[0].mxu0
        %5035 = vmatprep.mubr.bf16.mxu0 0
        %5036 = vmatmul.mubr.bf16.gmra.mrb[0].mxu0 %v4946
        %v5037 = vpop.f32.mrb[0].mxu0
        %v5038 = vadd.f32 %v4925, %v5037
        %v5039 = vpop.f32.mrb[0].mxu0
        %v5040 = vpop.f32.mrb[0].mxu0
        %v5041 = vadd.f32 %v4925, %v5040
        %v5042 = vpop.f32.mrb[0].mxu0
        %5043 = vmatprep.mubr.bf16.mxu0 0
        %5044 = vmatmul.mubr.bf16.gmra.mrb[0].mxu0 %v4949
        %v5045 = vpop.f32.mrb[0].mxu0
        %v5046 = vadd.f32 %v4925, %v5045
        %v5047 = vpop.f32.mrb[0].mxu0
        %v5048 = vpop.f32.mrb[0].mxu0
        %v5049 = vadd.f32 %v4925, %v5048
        %v5050 = vpop.f32.mrb[0].mxu0
        %5051 = vmatprep.mubr.bf16.mxu0 0
        %5052 = vmatmul.mubr.bf16.gmra.mrb[0].mxu0 %v4952
        %v5053 = vpop.f32.mrb[0].mxu0
        %v5054 = vadd.f32 %v4925, %v5053
        %v5055 = vpop.f32.mrb[0].mxu0
        %v5056 = vpop.f32.mrb[0].mxu0
        %v5057 = vadd.f32 %v4925, %v5056
        %v5058 = vpop.f32.mrb[0].mxu0
        %5059 = vmatprep.mubr.bf16.mxu0 0
        %5060 = vmatmul.mubr.bf16.gmra.mrb[0].mxu0 %v4955
        %v5061 = vpop.f32.mrb[0].mxu0
        %v5062 = vadd.f32 %v4925, %v5061
        %v5063 = vpop.f32.mrb[0].mxu0
        %v5064 = vpop.f32.mrb[0].mxu0
        %v5065 = vadd.f32 %v4925, %v5064
        %v5066 = vpop.f32.mrb[0].mxu0
        %5067 = vmatprep.mubr.bf16.mxu0 0
        %5068 = vmatmul.mubr.bf16.gmra.mrb[0].mxu0 %v4958
        %v5069 = vpop.f32.mrb[0].mxu0
        %v5070 = vadd.f32 %v4925, %v5069
        %v5071 = vpop.f32.mrb[0].mxu0
        %v5072 = vpop.f32.mrb[0].mxu0
        %v5073 = vadd.f32 %v4925, %v5072
        %v5074 = vpop.f32.mrb[0].mxu0
        %5075 = vmatprep.mubr.bf16.mxu0 0
        %5076 = vmatmul.mubr.bf16.gmra.mrb[0].mxu0 %v4961
        %v5077 = vpop.f32.mrb[0].mxu0
        %v5078 = vadd.f32 %v4925, %v5077
        %v5079 = vpop.f32.mrb[0].mxu0
        %v5080 = vpop.f32.mrb[0].mxu0
        %v5081 = vadd.f32 %v4925, %v5080
        %v5082 = vpop.f32.mrb[0].mxu0
        %5083 = vmatprep.mubr.bf16.mxu0 0
        %5084 = vmatmul.mubr.bf16.gmra.mrb[0].mxu0 %v4964
        %v5085 = vpop.f32.mrb[0].mxu0
        %v5086 = vadd.f32 %v4925, %v5085
        %v5087 = vpop.f32.mrb[0].mxu0
        %v5088 = vpop.f32.mrb[0].mxu0
        %v5089 = vadd.f32 %v4925, %v5088
        %v5090 = vpop.f32.mrb[0].mxu0
        %5091 = vmatprep.mubr.bf16.mxu0 0
        %5092 = vmatmul.mubr.bf16.gmra.mrb[0].mxu0 %v4967
        %v5093 = vpop.f32.mrb[0].mxu0
        %v5094 = vadd.f32 %v4925, %v5093
        %v5095 = vpop.f32.mrb[0].mxu0
        %v5096 = vpop.f32.mrb[0].mxu0
        %v5097 = vadd.f32 %v4925, %v5096
        %v5098 = vpop.f32.mrb[0].mxu0
        %5099 = vmatprep.mubr.bf16.mxu0 0
        %5100 = vmatmul.mubr.bf16.gmra.mrb[0].mxu0 %v4970
        %v5101 = vpop.f32.mrb[0].mxu0
        %v5102 = vadd.f32 %v4925, %v5101
        %v5103 = vpop.f32.mrb[0].mxu0
        %v5104 = vpop.f32.mrb[0].mxu0
        %v5105 = vadd.f32 %v4925, %v5104
        %v5106 = vpop.f32.mrb[0].mxu0
        %5107 = vmatprep.mubr.bf16.mxu0 0
        %5108 = vmatmul.mubr.bf16.gmra.mrb[0].mxu0 %v4973
        %v5109 = vpop.f32.mrb[0].mxu0
        %v5110 = vadd.f32 %v4925, %v5109
        %v5111 = vpop.f32.mrb[0].mxu0
        %v5112 = vpop.f32.mrb[0].mxu0
        %v5113 = vadd.f32 %v4925, %v5112
        %v5114 = vpop.f32.mrb[0].mxu0
        %5115 = vmatprep.mubr.bf16.mxu0 0
        %5116 = vmatmul.mubr.bf16.gmra.mrb[0].mxu0 %v4976
        %v5117 = vpop.f32.mrb[0].mxu0
        %v5118 = vadd.f32 %v4925, %v5117
        %v5119 = vpop.f32.mrb[0].mxu0
        %v5120 = vpop.f32.mrb[0].mxu0
        %v5121 = vadd.f32 %v4925, %v5120
        %v5122 = vpop.f32.mrb[0].mxu0
        %5123 = vmatprep.mubr.bf16.mxu0 0
        %5124 = vmatmul.mubr.bf16.gmra.mrb[0].mxu0 %v4979
        %v5125 = vpop.f32.mrb[0].mxu0
        %v5126 = vadd.f32 %v4925, %v5125
        %v5127 = vpop.f32.mrb[0].mxu0
        %v5128 = vpop.f32.mrb[0].mxu0
        %v5129 = vadd.f32 %v4925, %v5128
        %v5130 = vpop.f32.mrb[0].mxu0
        %5131 = vmatprep.mubr.bf16.mxu0 0
        %5132 = vmatmul.mubr.bf16.gmra.mrb[0].mxu0 %v4982
        %v5133 = vpop.f32.mrb[0].mxu0
        %v5134 = vadd.f32 %v4925, %v5133
        %v5135 = vpop.f32.mrb[0].mxu0
        %v5136 = vpop.f32.mrb[0].mxu0
        %v5137 = vadd.f32 %v4925, %v5136
        %v5138 = vpop.f32.mrb[0].mxu0
        %5139 = vmatprep.mubr.bf16.mxu0 0
        %5140 = vmatmul.mubr.bf16.gmra.mrb[0].mxu0 %v4985
        %v5141 = vpop.f32.mrb[0].mxu0
        %v5142 = vadd.f32 %v4925, %v5141
        %v5143 = vpop.f32.mrb[0].mxu0
        %v5144 = vpop.f32.mrb[0].mxu0
        %v5145 = vadd.f32 %v4925, %v5144
        %v5146 = vpop.f32.mrb[0].mxu0
        %5147 = vdwg.mxu0
        %v5148 = vmul.f32 %v5022, 0.5
        %v5149 = vmul.f32 %v5025, 0.5
        %v5150 = vmul.f32 %v5030, 0.5
        %v5151 = vmul.f32 %v5033, 0.5
        %v5152 = vmul.f32 %v5038, 0.5
        %v5153 = vmul.f32 %v5041, 0.5
        %v5154 = vmul.f32 %v5046, 0.5
        %v5155 = vmul.f32 %v5049, 0.5
        %v5156 = vmul.f32 %v5054, 0.5
        %v5157 = vmul.f32 %v5057, 0.5
        %v5158 = vmul.f32 %v5062, 0.5
        %v5159 = vmul.f32 %v5065, 0.5
        %v5160 = vmul.f32 %v5070, 0.5
        %v5161 = vmul.f32 %v5073, 0.5
        %v5162 = vmul.f32 %v5078, 0.5
        %v5163 = vmul.f32 %v5081, 0.5
        %v5164 = vmul.f32 %v5086, 0.5
        %v5165 = vmul.f32 %v5089, 0.5
        %v5166 = vmul.f32 %v5094, 0.5
        %v5167 = vmul.f32 %v5097, 0.5
        %v5168 = vmul.f32 %v5102, 0.5
        %v5169 = vmul.f32 %v5105, 0.5
        %v5170 = vmul.f32 %v5110, 0.5
        %v5171 = vmul.f32 %v5113, 0.5
        %v5172 = vmul.f32 %v5118, 0.5
        %v5173 = vmul.f32 %v5121, 0.5
        %v5174 = vmul.f32 %v5126, 0.5
        %v5175 = vmul.f32 %v5129, 0.5
        %v5176 = vmul.f32 %v5134, 0.5
        %v5177 = vmul.f32 %v5137, 0.5
        %v5178 = vmul.f32 %v5142, 0.5
        %v5179 = vmul.f32 %v5145, 0.5
        %v5180 = vmul.f32 %v5022, 0.044715
        %v5181 = vmul.f32 %v5025, 0.044715
        %v5182 = vmul.f32 %v5030, 0.044715
        %v5183 = vmul.f32 %v5033, 0.044715
        %v5184 = vmul.f32 %v5038, 0.044715
        %v5185 = vmul.f32 %v5041, 0.044715
        %v5186 = vmul.f32 %v5046, 0.044715
        %v5187 = vmul.f32 %v5049, 0.044715
        %v5188 = vmul.f32 %v5054, 0.044715
        %v5189 = vmul.f32 %v5057, 0.044715
        %v5190 = vmul.f32 %v5062, 0.044715
        %v5191 = vmul.f32 %v5065, 0.044715
        %v5192 = vmul.f32 %v5070, 0.044715
        %v5193 = vmul.f32 %v5073, 0.044715
        %v5194 = vmul.f32 %v5078, 0.044715
        %v5195 = vmul.f32 %v5081, 0.044715
        %v5196 = vmul.f32 %v5086, 0.044715
        %v5197 = vmul.f32 %v5089, 0.044715
        %v5198 = vmul.f32 %v5094, 0.044715
        %v5199 = vmul.f32 %v5097, 0.044715
        %v5200 = vmul.f32 %v5102, 0.044715
        %v5201 = vmul.f32 %v5105, 0.044715
        %v5202 = vmul.f32 %v5110, 0.044715
        %v5203 = vmul.f32 %v5113, 0.044715
        %v5204 = vmul.f32 %v5118, 0.044715
        %v5205 = vmul.f32 %v5121, 0.044715
        %v5206 = vmul.f32 %v5126, 0.044715
        %v5207 = vmul.f32 %v5129, 0.044715
        %v5208 = vmul.f32 %v5134, 0.044715
        %v5209 = vmul.f32 %v5137, 0.044715
        %v5210 = vmul.f32 %v5142, 0.044715
        %v5211 = vmul.f32 %v5145, 0.044715
        %v5212 = vmul.f32 %v5180, %v5022
        %v5213 = vmul.f32 %v5181, %v5025
        %v5214 = vmul.f32 %v5182, %v5030
        %v5215 = vmul.f32 %v5183, %v5033
        %v5216 = vmul.f32 %v5184, %v5038
        %v5217 = vmul.f32 %v5185, %v5041
        %v5218 = vmul.f32 %v5186, %v5046
        %v5219 = vmul.f32 %v5187, %v5049
        %v5220 = vmul.f32 %v5188, %v5054
        %v5221 = vmul.f32 %v5189, %v5057
        %v5222 = vmul.f32 %v5190, %v5062
        %v5223 = vmul.f32 %v5191, %v5065
        %v5224 = vmul.f32 %v5192, %v5070
        %v5225 = vmul.f32 %v5193, %v5073
        %v5226 = vmul.f32 %v5194, %v5078
        %v5227 = vmul.f32 %v5195, %v5081
        %v5228 = vmul.f32 %v5196, %v5086
        %v5229 = vmul.f32 %v5197, %v5089
        %v5230 = vmul.f32 %v5198, %v5094
        %v5231 = vmul.f32 %v5199, %v5097
        %v5232 = vmul.f32 %v5200, %v5102
        %v5233 = vmul.f32 %v5201, %v5105
        %v5234 = vmul.f32 %v5202, %v5110
        %v5235 = vmul.f32 %v5203, %v5113
        %v5236 = vmul.f32 %v5204, %v5118
        %v5237 = vmul.f32 %v5205, %v5121
        %v5238 = vmul.f32 %v5206, %v5126
        %v5239 = vmul.f32 %v5207, %v5129
        %v5240 = vmul.f32 %v5208, %v5134
        %v5241 = vmul.f32 %v5209, %v5137
        %v5242 = vmul.f32 %v5210, %v5142
        %v5243 = vmul.f32 %v5211, %v5145
        %v5244 = vmul.f32 %v5212, %v5022
        %v5245 = vmul.f32 %v5213, %v5025
        %v5246 = vmul.f32 %v5214, %v5030
        %v5247 = vmul.f32 %v5215, %v5033
        %v5248 = vmul.f32 %v5216, %v5038
        %v5249 = vmul.f32 %v5217, %v5041
        %v5250 = vmul.f32 %v5218, %v5046
        %v5251 = vmul.f32 %v5219, %v5049
        %v5252 = vmul.f32 %v5220, %v5054
        %v5253 = vmul.f32 %v5221, %v5057
        %v5254 = vmul.f32 %v5222, %v5062
        %v5255 = vmul.f32 %v5223, %v5065
        %v5256 = vmul.f32 %v5224, %v5070
        %v5257 = vmul.f32 %v5225, %v5073
        %v5258 = vmul.f32 %v5226, %v5078
        %v5259 = vmul.f32 %v5227, %v5081
        %v5260 = vmul.f32 %v5228, %v5086
        %v5261 = vmul.f32 %v5229, %v5089
        %v5262 = vmul.f32 %v5230, %v5094
        %v5263 = vmul.f32 %v5231, %v5097
        %v5264 = vmul.f32 %v5232, %v5102
        %v5265 = vmul.f32 %v5233, %v5105
        %v5266 = vmul.f32 %v5234, %v5110
        %v5267 = vmul.f32 %v5235, %v5113
        %v5268 = vmul.f32 %v5236, %v5118
        %v5269 = vmul.f32 %v5237, %v5121
        %v5270 = vmul.f32 %v5238, %v5126
        %v5271 = vmul.f32 %v5239, %v5129
        %v5272 = vmul.f32 %v5240, %v5134
        %v5273 = vmul.f32 %v5241, %v5137
        %v5274 = vmul.f32 %v5242, %v5142
        %v5275 = vmul.f32 %v5243, %v5145
        %v5276 = vadd.f32 %v5022, %v5244
        %v5277 = vadd.f32 %v5025, %v5245
        %v5278 = vadd.f32 %v5030, %v5246
        %v5279 = vadd.f32 %v5033, %v5247
        %v5280 = vadd.f32 %v5038, %v5248
        %v5281 = vadd.f32 %v5041, %v5249
        %v5282 = vadd.f32 %v5046, %v5250
        %v5283 = vadd.f32 %v5049, %v5251
        %v5284 = vadd.f32 %v5054, %v5252
        %v5285 = vadd.f32 %v5057, %v5253
        %v5286 = vadd.f32 %v5062, %v5254
        %v5287 = vadd.f32 %v5065, %v5255
        %v5288 = vadd.f32 %v5070, %v5256
        %v5289 = vadd.f32 %v5073, %v5257
        %v5290 = vadd.f32 %v5078, %v5258
        %v5291 = vadd.f32 %v5081, %v5259
        %v5292 = vadd.f32 %v5086, %v5260
        %v5293 = vadd.f32 %v5089, %v5261
        %v5294 = vadd.f32 %v5094, %v5262
        %v5295 = vadd.f32 %v5097, %v5263
        %v5296 = vadd.f32 %v5102, %v5264
        %v5297 = vadd.f32 %v5105, %v5265
        %v5298 = vadd.f32 %v5110, %v5266
        %v5299 = vadd.f32 %v5113, %v5267
        %v5300 = vadd.f32 %v5118, %v5268
        %v5301 = vadd.f32 %v5121, %v5269
        %v5302 = vadd.f32 %v5126, %v5270
        %v5303 = vadd.f32 %v5129, %v5271
        %v5304 = vadd.f32 %v5134, %v5272
        %v5305 = vadd.f32 %v5137, %v5273
        %v5306 = vadd.f32 %v5142, %v5274
        %v5307 = vadd.f32 %v5145, %v5275
        %v5308 = vmul.f32 %v5276, 0.7978846
        %v5309 = vmul.f32 %v5277, 0.7978846
        %v5310 = vmul.f32 %v5278, 0.7978846
        %v5311 = vmul.f32 %v5279, 0.7978846
        %v5312 = vmul.f32 %v5280, 0.7978846
        %v5313 = vmul.f32 %v5281, 0.7978846
        %v5314 = vmul.f32 %v5282, 0.7978846
        %v5315 = vmul.f32 %v5283, 0.7978846
        %v5316 = vmul.f32 %v5284, 0.7978846
        %v5317 = vmul.f32 %v5285, 0.7978846
        %v5318 = vmul.f32 %v5286, 0.7978846
        %v5319 = vmul.f32 %v5287, 0.7978846
        %v5320 = vmul.f32 %v5288, 0.7978846
        %v5321 = vmul.f32 %v5289, 0.7978846
        %v5322 = vmul.f32 %v5290, 0.7978846
        %v5323 = vmul.f32 %v5291, 0.7978846
        %v5324 = vmul.f32 %v5292, 0.7978846
        %v5325 = vmul.f32 %v5293, 0.7978846
        %v5326 = vmul.f32 %v5294, 0.7978846
        %v5327 = vmul.f32 %v5295, 0.7978846
        %v5328 = vmul.f32 %v5296, 0.7978846
        %v5329 = vmul.f32 %v5297, 0.7978846
        %v5330 = vmul.f32 %v5298, 0.7978846
        %v5331 = vmul.f32 %v5299, 0.7978846
        %v5332 = vmul.f32 %v5300, 0.7978846
        %v5333 = vmul.f32 %v5301, 0.7978846
        %v5334 = vmul.f32 %v5302, 0.7978846
        %v5335 = vmul.f32 %v5303, 0.7978846
        %v5336 = vmul.f32 %v5304, 0.7978846
        %v5337 = vmul.f32 %v5305, 0.7978846
        %v5338 = vmul.f32 %v5306, 0.7978846
        %v5339 = vmul.f32 %v5307, 0.7978846
        %v5340 = vtanh.pop %v5308
        %v5341 = vtanh.pop %v5309
        %v5342 = vtanh.pop %v5310
        %v5343 = vtanh.pop %v5311
        %v5344 = vtanh.pop %v5312
        %v5345 = vtanh.pop %v5313
        %v5346 = vtanh.pop %v5314
        %v5347 = vtanh.pop %v5315
        %v5348 = vtanh.pop %v5316
        %v5349 = vtanh.pop %v5317
        %v5350 = vtanh.pop %v5318
        %v5351 = vtanh.pop %v5319
        %v5352 = vtanh.pop %v5320
        %v5353 = vtanh.pop %v5321
        %v5354 = vtanh.pop %v5322
        %v5355 = vtanh.pop %v5323
        %v5356 = vtanh.pop %v5324
        %v5357 = vtanh.pop %v5325
        %v5358 = vtanh.pop %v5326
        %v5359 = vtanh.pop %v5327
        %v5360 = vtanh.pop %v5328
        %v5361 = vtanh.pop %v5329
        %v5362 = vtanh.pop %v5330
        %v5363 = vtanh.pop %v5331
        %v5364 = vtanh.pop %v5332
        %v5365 = vtanh.pop %v5333
        %v5366 = vtanh.pop %v5334
        %v5367 = vtanh.pop %v5335
        %v5368 = vtanh.pop %v5336
        %v5369 = vtanh.pop %v5337
        %v5370 = vtanh.pop %v5338
        %v5371 = vtanh.pop %v5339
        %v5372 = vadd.f32 %v5340, 1.0
        %v5373 = vadd.f32 %v5341, 1.0
        %v5374 = vadd.f32 %v5342, 1.0
        %v5375 = vadd.f32 %v5343, 1.0
        %v5376 = vadd.f32 %v5344, 1.0
        %v5377 = vadd.f32 %v5345, 1.0
        %v5378 = vadd.f32 %v5346, 1.0
        %v5379 = vadd.f32 %v5347, 1.0
        %v5380 = vadd.f32 %v5348, 1.0
        %v5381 = vadd.f32 %v5349, 1.0
        %v5382 = vadd.f32 %v5350, 1.0
        %v5383 = vadd.f32 %v5351, 1.0
        %v5384 = vadd.f32 %v5352, 1.0
        %v5385 = vadd.f32 %v5353, 1.0
        %v5386 = vadd.f32 %v5354, 1.0
        %v5387 = vadd.f32 %v5355, 1.0
        %v5388 = vadd.f32 %v5356, 1.0
        %v5389 = vadd.f32 %v5357, 1.0
        %v5390 = vadd.f32 %v5358, 1.0
        %v5391 = vadd.f32 %v5359, 1.0
        %v5392 = vadd.f32 %v5360, 1.0
        %v5393 = vadd.f32 %v5361, 1.0
        %v5394 = vadd.f32 %v5362, 1.0
        %v5395 = vadd.f32 %v5363, 1.0
        %v5396 = vadd.f32 %v5364, 1.0
        %v5397 = vadd.f32 %v5365, 1.0
        %v5398 = vadd.f32 %v5366, 1.0
        %v5399 = vadd.f32 %v5367, 1.0
        %v5400 = vadd.f32 %v5368, 1.0
        %v5401 = vadd.f32 %v5369, 1.0
        %v5402 = vadd.f32 %v5370, 1.0
        %v5403 = vadd.f32 %v5371, 1.0
        %v5404 = vmul.f32 %v5148, %v5372
        %v5405 = vmul.f32 %v5149, %v5373
        %v5406 = vmul.f32 %v5150, %v5374
        %v5407 = vmul.f32 %v5151, %v5375
        %v5408 = vmul.f32 %v5152, %v5376
        %v5409 = vmul.f32 %v5153, %v5377
        %v5410 = vmul.f32 %v5154, %v5378
        %v5411 = vmul.f32 %v5155, %v5379
        %v5412 = vmul.f32 %v5156, %v5380
        %v5413 = vmul.f32 %v5157, %v5381
        %v5414 = vmul.f32 %v5158, %v5382
        %v5415 = vmul.f32 %v5159, %v5383
        %v5416 = vmul.f32 %v5160, %v5384
        %v5417 = vmul.f32 %v5161, %v5385
        %v5418 = vmul.f32 %v5162, %v5386
        %v5419 = vmul.f32 %v5163, %v5387
        %v5420 = vmul.f32 %v5164, %v5388
        %v5421 = vmul.f32 %v5165, %v5389
        %v5422 = vmul.f32 %v5166, %v5390
        %v5423 = vmul.f32 %v5167, %v5391
        %v5424 = vmul.f32 %v5168, %v5392
        %v5425 = vmul.f32 %v5169, %v5393
        %v5426 = vmul.f32 %v5170, %v5394
        %v5427 = vmul.f32 %v5171, %v5395
        %v5428 = vmul.f32 %v5172, %v5396
        %v5429 = vmul.f32 %v5173, %v5397
        %v5430 = vmul.f32 %v5174, %v5398
        %v5431 = vmul.f32 %v5175, %v5399
        %v5432 = vmul.f32 %v5176, %v5400
        %v5433 = vmul.f32 %v5177, %v5401
        %v5434 = vmul.f32 %v5178, %v5402
        %v5435 = vmul.f32 %v5179, %v5403
        %v5436 = vpack.c.bf16 %v5405, %v5404
        %v5437 = vpack.c.bf16 %v5407, %v5406
        %v5438 = vpack.c.bf16 %v5409, %v5408
        %v5439 = vpack.c.bf16 %v5411, %v5410
        %v5440 = vpack.c.bf16 %v5413, %v5412
        %v5441 = vpack.c.bf16 %v5415, %v5414
        %v5442 = vpack.c.bf16 %v5417, %v5416
        %v5443 = vpack.c.bf16 %v5419, %v5418
        %v5444 = vpack.c.bf16 %v5421, %v5420
        %v5445 = vpack.c.bf16 %v5423, %v5422
        %v5446 = vpack.c.bf16 %v5425, %v5424
        %v5447 = vpack.c.bf16 %v5427, %v5426
        %v5448 = vpack.c.bf16 %v5429, %v5428
        %v5449 = vpack.c.bf16 %v5431, %v5430
        %v5450 = vpack.c.bf16 %v5433, %v5432
        %v5451 = vpack.c.bf16 %v5435, %v5434
        %v5452 = vld [vmem:[%s703] sm:$0xf]
        %v5453 = vld [vmem:[%s703 + $0x4] sm:$0xf]
        %v5454 = vld [vmem:[%s703 + $0x8] sm:$0xf]
        %v5455 = vld [vmem:[%s703 + $0xc] sm:$0xf]
        %v5456 = vld [vmem:[%s703 + $0x10] sm:$0xf]
        %v5457 = vld [vmem:[%s703 + $0x14] sm:$0xf]
        %v5458 = vld [vmem:[%s703 + $0x18] sm:$0xf]
        %v5459 = vld [vmem:[%s703 + $0x1c] sm:$0xf]
        %v5460 = vld [vmem:[%s703 + $0x20] sm:$0xf]
        %v5461 = vld [vmem:[%s703 + $0x24] sm:$0xf]
        %v5462 = vld [vmem:[%s703 + $0x28] sm:$0xf]
        %v5463 = vld [vmem:[%s703 + $0x2c] sm:$0xf]
        %v5464 = vld [vmem:[%s703 + $0x30] sm:$0xf]
        %v5465 = vld [vmem:[%s703 + $0x34] sm:$0xf]
        %v5466 = vld [vmem:[%s703 + $0x38] sm:$0xf]
        %v5467 = vld [vmem:[%s703 + $0x3c] sm:$0xf]
        %v5484 = vunpack.c.l.b16 %v5452
        %v5485 = vunpack.c.l.b16 %v5453
        %v5486 = vunpack.c.l.b16 %v5454
        %v5487 = vunpack.c.l.b16 %v5455
        %v5488 = vunpack.c.l.b16 %v5456
        %v5489 = vunpack.c.l.b16 %v5457
        %v5490 = vunpack.c.l.b16 %v5458
        %v5491 = vunpack.c.l.b16 %v5459
        %v5492 = vunpack.c.l.b16 %v5460
        %v5493 = vunpack.c.l.b16 %v5461
        %v5494 = vunpack.c.l.b16 %v5462
        %v5495 = vunpack.c.l.b16 %v5463
        %v5496 = vunpack.c.l.b16 %v5464
        %v5497 = vunpack.c.l.b16 %v5465
        %v5498 = vunpack.c.l.b16 %v5466
        %v5499 = vunpack.c.l.b16 %v5467
        %v5500 = vpack.c.b16 %v5485, %v5484
        %v5501 = vpack.c.b16 %v5487, %v5486
        %v5502 = vpack.c.b16 %v5489, %v5488
        %v5503 = vpack.c.b16 %v5491, %v5490
        %v5504 = vpack.c.b16 %v5493, %v5492
        %v5505 = vpack.c.b16 %v5495, %v5494
        %v5506 = vpack.c.b16 %v5497, %v5496
        %v5507 = vpack.c.b16 %v5499, %v5498
        %5516 = vmatprep.subr.bf16.mxu0 0
        %5517 = vmatpush1.bf16.msra.mxu0 %v5500
        %5518 = vmatprep.subr.bf16.mxu0 0
        %5519 = vmatpush1.bf16.msra.mxu0 %v5501
        %5520 = vmatprep.subr.bf16.mxu0 0
        %5521 = vmatpush1.bf16.msra.mxu0 %v5502
        %5522 = vmatprep.subr.bf16.mxu0 0
        %5523 = vmatpush1.bf16.msra.mxu0 %v5503
        %5524 = vmatprep.subr.bf16.mxu0 0
        %5525 = vmatpush1.bf16.msra.mxu0 %v5504
        %5526 = vmatprep.subr.bf16.mxu0 0
        %5527 = vmatpush1.bf16.msra.mxu0 %v5505
        %5528 = vmatprep.subr.bf16.mxu0 0
        %5529 = vmatpush1.bf16.msra.mxu0 %v5506
        %5530 = vmatprep.subr.bf16.mxu0 0
        %5531 = vmatpush1.bf16.msra.mxu0 %v5507
        %5532 = vmatprep.subr.bf16.mxu0 0
        %5533 = vmatpush1.bf16.msra.mxu0 0
        %5534 = vmatprep.subr.bf16.mxu0 0
        %5535 = vmatpush1.bf16.msra.mxu0 0
        %5536 = vmatprep.subr.bf16.mxu0 0
        %5537 = vmatpush1.bf16.msra.mxu0 0
        %5538 = vmatprep.subr.bf16.mxu0 0
        %5539 = vmatpush1.bf16.msra.mxu0 0
        %5540 = vmatprep.subr.bf16.mxu0 0
        %5541 = vmatpush1.bf16.msra.mxu0 0
        %5542 = vmatprep.subr.bf16.mxu0 0
        %5543 = vmatpush1.bf16.msra.mxu0 0
        %5544 = vmatprep.subr.bf16.mxu0 0
        %5545 = vmatpush1.bf16.msra.mxu0 0
        %5546 = vmatprep.subr.bf16.mxu0 0
        %5547 = vmatpush1.bf16.msra.mxu0 0
        %5548 = vmatprep.mubr.bf16.mxu0 0
        %5549 = vmatmul.mubr.bf16.gmra.mrb[0].mxu0 %v5436
        %v5550 = vpop.f32.mrb[0].mxu0
        %v5551 = vadd.f32 0.0, %v5550
        %v5552 = vpop.f32.mrb[0].mxu0
        %v5553 = vpop.f32.mrb[0].mxu0
        %v5554 = vadd.f32 0.0, %v5553
        %v5555 = vpop.f32.mrb[0].mxu0
        %5556 = vmatprep.mubr.bf16.mxu0 0
        %5557 = vmatmul.mubr.bf16.gmra.mrb[0].mxu0 %v5437
        %v5558 = vpop.f32.mrb[0].mxu0
        %v5559 = vadd.f32 0.0, %v5558
        %v5560 = vpop.f32.mrb[0].mxu0
        %v5561 = vpop.f32.mrb[0].mxu0
        %v5562 = vadd.f32 0.0, %v5561
        %v5563 = vpop.f32.mrb[0].mxu0
        %5564 = vmatprep.mubr.bf16.mxu0 0
        %5565 = vmatmul.mubr.bf16.gmra.mrb[0].mxu0 %v5438
        %v5566 = vpop.f32.mrb[0].mxu0
        %v5567 = vadd.f32 0.0, %v5566
        %v5568 = vpop.f32.mrb[0].mxu0
        %v5569 = vpop.f32.mrb[0].mxu0
        %v5570 = vadd.f32 0.0, %v5569
        %v5571 = vpop.f32.mrb[0].mxu0
        %5572 = vmatprep.mubr.bf16.mxu0 0
        %5573 = vmatmul.mubr.bf16.gmra.mrb[0].mxu0 %v5439
        %v5574 = vpop.f32.mrb[0].mxu0
        %v5575 = vadd.f32 0.0, %v5574
        %v5576 = vpop.f32.mrb[0].mxu0
        %v5577 = vpop.f32.mrb[0].mxu0
        %v5578 = vadd.f32 0.0, %v5577
        %v5579 = vpop.f32.mrb[0].mxu0
        %5580 = vmatprep.mubr.bf16.mxu0 0
        %5581 = vmatmul.mubr.bf16.gmra.mrb[0].mxu0 %v5440
        %v5582 = vpop.f32.mrb[0].mxu0
        %v5583 = vadd.f32 0.0, %v5582
        %v5584 = vpop.f32.mrb[0].mxu0
        %v5585 = vpop.f32.mrb[0].mxu0
        %v5586 = vadd.f32 0.0, %v5585
        %v5587 = vpop.f32.mrb[0].mxu0
        %5588 = vmatprep.mubr.bf16.mxu0 0
        %5589 = vmatmul.mubr.bf16.gmra.mrb[0].mxu0 %v5441
        %v5590 = vpop.f32.mrb[0].mxu0
        %v5591 = vadd.f32 0.0, %v5590
        %v5592 = vpop.f32.mrb[0].mxu0
        %v5593 = vpop.f32.mrb[0].mxu0
        %v5594 = vadd.f32 0.0, %v5593
        %v5595 = vpop.f32.mrb[0].mxu0
        %5596 = vmatprep.mubr.bf16.mxu0 0
        %5597 = vmatmul.mubr.bf16.gmra.mrb[0].mxu0 %v5442
        %v5598 = vpop.f32.mrb[0].mxu0
        %v5599 = vadd.f32 0.0, %v5598
        %v5600 = vpop.f32.mrb[0].mxu0
        %v5601 = vpop.f32.mrb[0].mxu0
        %v5602 = vadd.f32 0.0, %v5601
        %v5603 = vpop.f32.mrb[0].mxu0
        %5604 = vmatprep.mubr.bf16.mxu0 0
        %5605 = vmatmul.mubr.bf16.gmra.mrb[0].mxu0 %v5443
        %v5606 = vpop.f32.mrb[0].mxu0
        %v5607 = vadd.f32 0.0, %v5606
        %v5608 = vpop.f32.mrb[0].mxu0
        %v5609 = vpop.f32.mrb[0].mxu0
        %v5610 = vadd.f32 0.0, %v5609
        %v5611 = vpop.f32.mrb[0].mxu0
        %5612 = vmatprep.mubr.bf16.mxu0 0
        %5613 = vmatmul.mubr.bf16.gmra.mrb[0].mxu0 %v5444
        %v5614 = vpop.f32.mrb[0].mxu0
        %v5615 = vadd.f32 0.0, %v5614
        %v5616 = vpop.f32.mrb[0].mxu0
        %v5617 = vpop.f32.mrb[0].mxu0
        %v5618 = vadd.f32 0.0, %v5617
        %v5619 = vpop.f32.mrb[0].mxu0
        %5620 = vmatprep.mubr.bf16.mxu0 0
        %5621 = vmatmul.mubr.bf16.gmra.mrb[0].mxu0 %v5445
        %v5622 = vpop.f32.mrb[0].mxu0
        %v5623 = vadd.f32 0.0, %v5622
        %v5624 = vpop.f32.mrb[0].mxu0
        %v5625 = vpop.f32.mrb[0].mxu0
        %v5626 = vadd.f32 0.0, %v5625
        %v5627 = vpop.f32.mrb[0].mxu0
        %5628 = vmatprep.mubr.bf16.mxu0 0
        %5629 = vmatmul.mubr.bf16.gmra.mrb[0].mxu0 %v5446
        %v5630 = vpop.f32.mrb[0].mxu0
        %v5631 = vadd.f32 0.0, %v5630
        %v5632 = vpop.f32.mrb[0].mxu0
        %v5633 = vpop.f32.mrb[0].mxu0
        %v5634 = vadd.f32 0.0, %v5633
        %v5635 = vpop.f32.mrb[0].mxu0
        %5636 = vmatprep.mubr.bf16.mxu0 0
        %5637 = vmatmul.mubr.bf16.gmra.mrb[0].mxu0 %v5447
        %v5638 = vpop.f32.mrb[0].mxu0
        %v5639 = vadd.f32 0.0, %v5638
        %v5640 = vpop.f32.mrb[0].mxu0
        %v5641 = vpop.f32.mrb[0].mxu0
        %v5642 = vadd.f32 0.0, %v5641
        %v5643 = vpop.f32.mrb[0].mxu0
        %5644 = vmatprep.mubr.bf16.mxu0 0
        %5645 = vmatmul.mubr.bf16.gmra.mrb[0].mxu0 %v5448
        %v5646 = vpop.f32.mrb[0].mxu0
        %v5647 = vadd.f32 0.0, %v5646
        %v5648 = vpop.f32.mrb[0].mxu0
        %v5649 = vpop.f32.mrb[0].mxu0
        %v5650 = vadd.f32 0.0, %v5649
        %v5651 = vpop.f32.mrb[0].mxu0
        %5652 = vmatprep.mubr.bf16.mxu0 0
        %5653 = vmatmul.mubr.bf16.gmra.mrb[0].mxu0 %v5449
        %v5654 = vpop.f32.mrb[0].mxu0
        %v5655 = vadd.f32 0.0, %v5654
        %v5656 = vpop.f32.mrb[0].mxu0
        %v5657 = vpop.f32.mrb[0].mxu0
        %v5658 = vadd.f32 0.0, %v5657
        %v5659 = vpop.f32.mrb[0].mxu0
        %5660 = vmatprep.mubr.bf16.mxu0 0
        %5661 = vmatmul.mubr.bf16.gmra.mrb[0].mxu0 %v5450
        %v5662 = vpop.f32.mrb[0].mxu0
        %v5663 = vadd.f32 0.0, %v5662
        %v5664 = vpop.f32.mrb[0].mxu0
        %v5665 = vpop.f32.mrb[0].mxu0
        %v5666 = vadd.f32 0.0, %v5665
        %v5667 = vpop.f32.mrb[0].mxu0
        %5668 = vmatprep.mubr.bf16.mxu0 0
        %5669 = vmatmul.mubr.bf16.gmra.mrb[0].mxu0 %v5451
        %v5670 = vpop.f32.mrb[0].mxu0
        %v5671 = vadd.f32 0.0, %v5670
        %v5672 = vpop.f32.mrb[0].mxu0
        %v5673 = vpop.f32.mrb[0].mxu0
        %v5674 = vadd.f32 0.0, %v5673
        %v5675 = vpop.f32.mrb[0].mxu0
        %5676 = vdwg.mxu0
        %v5677 = vadd.f32 %v4374, %v5551
        %v5678 = vadd.f32 %v4375, %v5554
        %v5679 = vadd.f32 %v4376, %v5559
        %v5680 = vadd.f32 %v4377, %v5562
        %v5681 = vadd.f32 %v4378, %v5567
        %v5682 = vadd.f32 %v4379, %v5570
        %v5683 = vadd.f32 %v4380, %v5575
        %v5684 = vadd.f32 %v4381, %v5578
        %v5685 = vadd.f32 %v4382, %v5583
        %v5686 = vadd.f32 %v4383, %v5586
        %v5687 = vadd.f32 %v4384, %v5591
        %v5688 = vadd.f32 %v4385, %v5594
        %v5689 = vadd.f32 %v4386, %v5599
        %v5690 = vadd.f32 %v4387, %v5602
        %v5691 = vadd.f32 %v4388, %v5607
        %v5692 = vadd.f32 %v4389, %v5610
        %v5693 = vadd.f32 %v4390, %v5615
        %v5694 = vadd.f32 %v4391, %v5618
        %v5695 = vadd.f32 %v4392, %v5623
        %v5696 = vadd.f32 %v4393, %v5626
        %v5697 = vadd.f32 %v4394, %v5631
        %v5698 = vadd.f32 %v4395, %v5634
        %v5699 = vadd.f32 %v4396, %v5639
        %v5700 = vadd.f32 %v4397, %v5642
        %v5701 = vadd.f32 %v4398, %v5647
        %v5702 = vadd.f32 %v4399, %v5650
        %v5703 = vadd.f32 %v4400, %v5655
        %v5704 = vadd.f32 %v4401, %v5658
        %v5705 = vadd.f32 %v4402, %v5663
        %v5706 = vadd.f32 %v4403, %v5666
        %v5707 = vadd.f32 %v4404, %v5671
        %v5708 = vadd.f32 %v4405, %v5674
        %v5709 = vld [vmem:[%s706] sm:$0x1]
        %v5711 = vlaneseq
        %v5712 = vshrl.u32 %v5711, 7
        %v5713 = vsub.s32 0, %v5712
        %v5714 = vrot.slane %v5709, %v5713
        %v5716 = vadd.f32 %v5677, %v5714
        %v5717 = vadd.f32 %v5678, %v5714
        %v5718 = vadd.f32 %v5679, %v5714
        %v5719 = vadd.f32 %v5680, %v5714
        %v5720 = vadd.f32 %v5681, %v5714
        %v5721 = vadd.f32 %v5682, %v5714
        %v5722 = vadd.f32 %v5683, %v5714
        %v5723 = vadd.f32 %v5684, %v5714
        %v5724 = vadd.f32 %v5685, %v5714
        %v5725 = vadd.f32 %v5686, %v5714
        %v5726 = vadd.f32 %v5687, %v5714
        %v5727 = vadd.f32 %v5688, %v5714
        %v5728 = vadd.f32 %v5689, %v5714
        %v5729 = vadd.f32 %v5690, %v5714
        %v5730 = vadd.f32 %v5691, %v5714
        %v5731 = vadd.f32 %v5692, %v5714
        %v5732 = vadd.f32 %v5693, %v5714
        %v5733 = vadd.f32 %v5694, %v5714
        %v5734 = vadd.f32 %v5695, %v5714
        %v5735 = vadd.f32 %v5696, %v5714
        %v5736 = vadd.f32 %v5697, %v5714
        %v5737 = vadd.f32 %v5698, %v5714
        %v5738 = vadd.f32 %v5699, %v5714
        %v5739 = vadd.f32 %v5700, %v5714
        %v5740 = vadd.f32 %v5701, %v5714
        %v5741 = vadd.f32 %v5702, %v5714
        %v5742 = vadd.f32 %v5703, %v5714
        %v5743 = vadd.f32 %v5704, %v5714
        %v5744 = vadd.f32 %v5705, %v5714
        %v5745 = vadd.f32 %v5706, %v5714
        %v5746 = vadd.f32 %v5707, %v5714
        %v5747 = vadd.f32 %v5708, %v5714
        %5748 = vst.msk [vmem:[%s711] sm:$0xff] %vm816, %v5716
        %5749 = vst.msk [vmem:[%s711 + $0x8] sm:$0xff] %vm816, %v5717
        %5750 = vst.msk [vmem:[%s711 + $0x10] sm:$0xff] %vm816, %v5718
        %5751 = vst.msk [vmem:[%s711 + $0x18] sm:$0xff] %vm816, %v5719
        %5752 = vst.msk [vmem:[%s711 + $0x20] sm:$0xff] %vm816, %v5720
        %5753 = vst.msk [vmem:[%s711 + $0x28] sm:$0xff] %vm816, %v5721
        %5754 = vst.msk [vmem:[%s711 + $0x30] sm:$0xff] %vm816, %v5722
        %5755 = vst.msk [vmem:[%s711 + $0x38] sm:$0xff] %vm816, %v5723
        %5756 = vst.msk [vmem:[%s711 + $0x40] sm:$0xff] %vm816, %v5724
        %5757 = vst.msk [vmem:[%s711 + $0x48] sm:$0xff] %vm816, %v5725
        %5758 = vst.msk [vmem:[%s711 + $0x50] sm:$0xff] %vm816, %v5726
        %5759 = vst.msk [vmem:[%s711 + $0x58] sm:$0xff] %vm816, %v5727
        %5760 = vst.msk [vmem:[%s711 + $0x60] sm:$0xff] %vm816, %v5728
        %5761 = vst.msk [vmem:[%s711 + $0x68] sm:$0xff] %vm816, %v5729
        %5762 = vst.msk [vmem:[%s711 + $0x70] sm:$0xff] %vm816, %v5730
        %5763 = vst.msk [vmem:[%s711 + $0x78] sm:$0xff] %vm816, %v5731
        %5764 = vst.msk [vmem:[%s711 + $0x80] sm:$0xff] %vm816, %v5732
        %5765 = vst.msk [vmem:[%s711 + $0x88] sm:$0xff] %vm816, %v5733
        %5766 = vst.msk [vmem:[%s711 + $0x90] sm:$0xff] %vm816, %v5734
        %5767 = vst.msk [vmem:[%s711 + $0x98] sm:$0xff] %vm816, %v5735
        %5768 = vst.msk [vmem:[%s711 + $0xa0] sm:$0xff] %vm816, %v5736
        %5769 = vst.msk [vmem:[%s711 + $0xa8] sm:$0xff] %vm816, %v5737
        %5770 = vst.msk [vmem:[%s711 + $0xb0] sm:$0xff] %vm816, %v5738
        %5771 = vst.msk [vmem:[%s711 + $0xb8] sm:$0xff] %vm816, %v5739
        %5772 = vst.msk [vmem:[%s711 + $0xc0] sm:$0xff] %vm816, %v5740
        %5773 = vst.msk [vmem:[%s711 + $0xc8] sm:$0xff] %vm816, %v5741
        %5774 = vst.msk [vmem:[%s711 + $0xd0] sm:$0xff] %vm816, %v5742
        %5775 = vst.msk [vmem:[%s711 + $0xd8] sm:$0xff] %vm816, %v5743
        %5776 = vst.msk [vmem:[%s711 + $0xe0] sm:$0xff] %vm816, %v5744
        %5777 = vst.msk [vmem:[%s711 + $0xe8] sm:$0xff] %vm816, %v5745
        %5778 = vst.msk [vmem:[%s711 + $0xf0] sm:$0xff] %vm816, %v5746
        %5779 = vst.msk [vmem:[%s711 + $0xf8] sm:$0xff] %vm816, %v5747
        %p5780 = scmp.lt.s32.totalorder %s32, 1
        %s5781 = scalar_select %p5780, %s32, 1
        %s5782 = smul.addr %s5781, 32
        %s5783 = smul.addr %s5782, 8
        %s5784 = scalar_lea.vmem %s14, %s5783
        // Predicated region
        $region85: #{tpu_custom_call.1} parent=75 // pred_check
          %p5785 = pneg %p422
        $region86: #{tpu_custom_call.1} parent=75 // pred_check_branch
          %5787 = sbr.rel (%p5785) target = $region88
        $region87: #{tpu_custom_call.1} parent=75 // pred_region
          _
        $region88: #{tpu_custom_call.1} parent=75 // pred_fallthru
          _
      $region76: #{tpu_custom_call.1} parent=5 // pred_fallthru
        _
      %p5788 = scmp.le.s32.totalorder 2, %s23
      // Predicated region
      $region89: #{tpu_custom_call.1} parent=5 // pred_check
        %p5789 = pneg %p5788
      $region90: #{tpu_custom_call.1} parent=5 // pred_check_branch
        %5791 = sbr.rel (%p5789) target = $region92
      $region91: #{tpu_custom_call.1} parent=5 // pred_region
        %s5792 = ssub.s32 %s23, 2
        // Predicated region
        $region93: #{tpu_custom_call.1} parent=91 // pred_check
          %p5793 = pneg %p428
        $region94: #{tpu_custom_call.1} parent=91 // pred_check_branch
          %5795 = sbr.rel (%p5793) target = $region96
        $region95: #{tpu_custom_call.1} parent=91 // pred_region
          %p5796 = scmp.lt.s32.totalorder %s34, 1
          %s5797 = scalar_select %p5796, %s34, 1
          %s5798 = smul.addr %s5797, 32
          %s5799 = smul.addr %s5798, 8
          %s5800 = scalar_lea.vmem %s14, %s5799
        $region96: #{tpu_custom_call.1} parent=91 // pred_fallthru
          _
      $region92: #{tpu_custom_call.1} parent=5 // pred_fallthru
        _
    $region6: #{tpu_custom_call.1} parent=1 // loop_footer
      %s27 = sadd.s32 1, %s23
    $region7: #{tpu_custom_call.1} parent=1 // loop_footer_branch
      %22 = sbr.rel target = $region3
    $region8: #{tpu_custom_call.1} parent=1 // loop_exit
      _
    %5801 = vsyncpa [#allocation3], 1
    %s5802 = scalar_lea.sflag [#allocation3], 1
    %5803 = vsyncpa %s5802, 1

</llo_original>
